<compile_context>
chip_gen: v6e
topology: v6e:2x2x1
jax: 0.10.0
libtpu: 0.0.40
codegen_flags: <defaults>
</compile_context>

<pallas_src>
import functools

import jax
import jax.numpy as jnp
import numpy as np
from jax import lax
from jax.experimental import pallas as pl
from jax.experimental.pallas import tpu as pltpu


def _bottleneck_kernel(x_ref, w1_ref, b1_ref, w2_ref, b2_ref, w3_ref, b3_ref,
                       out_ref, *, H, W, cin_pad):
    # x_ref:  (1, HW, CIN_PAD) bf16        out_ref: (1, HW, COUT_PAD) f32
    # w1_ref: (CIN_PAD, M) bf16            b1_ref: (1, M) f32
    # w2_ref: (9, M, M) bf16               b2_ref: (1, M) f32
    # w3_ref: (M, COUT_PAD) bf16           b3_ref: (1, COUT_PAD) f32
    HW = H * W
    M = w1_ref.shape[1]
    cout_pad = out_ref.shape[2]

    x = x_ref[0]                                           # (HW, CIN_PAD) bf16

    # Stage 1: bn1 -> conv1(1x1) -> bn2 -> relu  (BN scales folded into w1/b1)
    v = jnp.maximum(
        jnp.dot(x, w1_ref[...], preferred_element_type=jnp.float32)
        + b1_ref[...], 0.0)                                # (HW, M) f32

    # Stage 2: 3x3 conv (pad=1).  Per tap: sublane roll (XLU) + boundary mask
    # (f32 VPU) + bf16 (HW,M)@(M,M) matmul accumulated in f32 — no im2col
    # scratch buffer.
    row = lax.broadcasted_iota(jnp.int32, (HW, 1), 0)
    jj = row % W
    top = row >= W                 # valid when di == -1  (i - 1 >= 0)
    bot = row < (H - 1) * W        # valid when di == +1  (i + 1 <  H)
    left = jj >= 1                 # valid when dj == -1  (j - 1 >= 0)
    right = jj < (W - 1)           # valid when dj == +1  (j + 1 <  W)

    # Center tap first (no roll / mask) initializes the accumulator.
    acc = jnp.dot(v.astype(jnp.bfloat16), w2_ref[4],
                  preferred_element_type=jnp.float32)      # (HW, M) f32
    for k in (0, 1, 2, 3, 5, 6, 7, 8):
        di = k // 3 - 1
        dj = k % 3 - 1
        s = di * W + dj
        col = pltpu.roll(v, shift=(-s) % HW, axis=0)       # col[r] = v[r + s]
        valid = None
        if di == -1:
            valid = top
        elif di == 1:
            valid = bot
        if dj == -1:
            valid = left if valid is None else (valid & left)
        elif dj == 1:
            valid = right if valid is None else (valid & right)
        if valid is not None:
            col = jnp.where(valid, col, 0.0)
        acc = acc + jnp.dot(col.astype(jnp.bfloat16), w2_ref[k],
                            preferred_element_type=jnp.float32)

    w_act = jnp.maximum(acc + b2_ref[...], 0.0)            # bn3 + relu epilogue

    # Stage 3: conv3(1x1) + bn4 + (1-p_drop) folded into w3/b3; shortcut adds
    # the channel-zero-padded x into the first CIN_PAD lane columns.
    res = (jnp.dot(w_act.astype(jnp.bfloat16), w3_ref[...],
                   preferred_element_type=jnp.float32) + b3_ref[...])
    x_f32 = x.astype(jnp.float32)
    if cin_pad == cout_pad:
        out_ref[0] = res + x_f32
    else:
        out_ref[0, :, 0:cin_pad] = res[:, 0:cin_pad] + x_f32
        out_ref[0, :, cin_pad:] = res[:, cin_pad:]


def _round128(c):
    return max(128, ((c + 127) // 128) * 128)


def bottleneck_forward(x_nchw, params, *, p_drop=0.5, eps=1e-5):
    """x_nchw: (N, Cin, H, W) float32. Returns (N, 4*planes, H, W) float32."""
    (g1, b1, m1, v1, w_conv1,
     g2, b2, m2, v2, w_conv2,
     g3, b3, m3, v3, w_conv3,
     g4, b4, m4, v4) = params

    N, Cin, H, W = x_nchw.shape
    P = w_conv1.shape[0]
    Cout = w_conv3.shape[0]
    assert Cout >= Cin, "PyramidNet Bottleneck requires Cout >= Cin"

    HW = H * W
    CIN_PAD = _round128(Cin)     # lane-dense input-channel width
    COUT_PAD = _round128(Cout)   # lane-dense output-channel width
    M = _round128(P)             # lane-dense mid-channel width

    def fold(g, b, m, v):
        s = g / jnp.sqrt(v + eps)
        return s, b - m * s

    s1, bb1 = fold(g1, b1, m1, v1)
    s2, bb2 = fold(g2, b2, m2, v2)
    s3, bb3 = fold(g3, b3, m3, v3)
    s4, bb4 = fold(g4, b4, m4, v4)

    W1 = w_conv1[:, :, 0, 0].T                    # (Cin, P)
    W2 = jnp.transpose(w_conv2, (2, 3, 1, 0))     # (kh, kw, in, out)
    W3 = w_conv3[:, :, 0, 0].T                    # (P, Cout)

    # Fold BN scales (and eval-mode ShakeDrop factor) into weights/biases.
    sd = jnp.float32(1.0 - p_drop)
    w1_eff = (s1[:, None] * W1) * s2[None, :]               # (Cin, P)
    b1_eff = (bb1 @ W1) * s2 + bb2                          # (P,)
    w2_eff = W2 * s3[None, None, None, :]                   # (3,3,P,P)
    b2_eff = bb3                                            # (P,)
    w3_eff = W3 * (sd * s4)[None, :]                        # (P, Cout)
    b3_eff = sd * bb4                                       # (Cout,)

    # Zero-pad to lane-dense widths; matmul operands stored as bf16 (MXU
    # inputs, f32 accumulation), biases kept f32 for the VPU epilogues.
    w1p = jnp.zeros((CIN_PAD, M), jnp.float32).at[:Cin, :P].set(w1_eff)
    w1p = w1p.astype(jnp.bfloat16)
    b1p = jnp.zeros((1, M), jnp.float32).at[0, :P].set(b1_eff)
    w2p = jnp.zeros((3, 3, M, M), jnp.float32).at[:, :, :P, :P].set(w2_eff)
    w2p = w2p.reshape(9, M, M).astype(jnp.bfloat16)
    b2p = jnp.zeros((1, M), jnp.float32).at[0, :P].set(b2_eff)
    w3p = jnp.zeros((M, COUT_PAD), jnp.float32).at[:P, :Cout].set(w3_eff)
    w3p = w3p.astype(jnp.bfloat16)
    b3p = jnp.zeros((1, COUT_PAD), jnp.float32).at[0, :Cout].set(b3_eff)

    # NCHW -> (N, H*W, CIN_PAD) bf16 slab (reshape/pad is cheap XLA glue).
    x_nhwc = jnp.transpose(x_nchw, (0, 2, 3, 1)).astype(jnp.float32)
    x_flat = x_nhwc.reshape(N, HW, Cin)
    x_pad = jnp.zeros((N, HW, CIN_PAD), jnp.float32).at[:, :, :Cin].set(x_flat)
    x_pad = x_pad.astype(jnp.bfloat16)

    kernel = functools.partial(_bottleneck_kernel, H=H, W=W, cin_pad=CIN_PAD)

    # Advisory cost hint for XLA scheduling around the custom call.
    flops = 2 * N * HW * (CIN_PAD * M + 9 * M * M + M * COUT_PAD)
    bytes_accessed = (N * HW * CIN_PAD * 2 + N * HW * COUT_PAD * 4
                      + (CIN_PAD * M + 9 * M * M + M * COUT_PAD) * 2
                      + (2 * M + COUT_PAD) * 4)
    cost = pl.CostEstimate(flops=int(flops), transcendentals=0,
                           bytes_accessed=int(bytes_accessed))

    # Scoped-VMEM budget from the actual per-step blocks (double-buffered
    # in/out) plus headroom for in-kernel f32 activations.
    in_block_bytes = (HW * CIN_PAD * 2 + CIN_PAD * M * 2 + 9 * M * M * 2
                      + M * COUT_PAD * 2 + (2 * M + COUT_PAD) * 4)
    out_block_bytes = HW * COUT_PAD * 4
    act_bytes = HW * (4 * M + CIN_PAD + COUT_PAD) * 4
    vmem_limit = int(min(100 * 2**20,
                         max(32 * 2**20,
                             2 * (in_block_bytes + out_block_bytes)
                             + 2 * act_bytes)))

    out_pad = pl.pallas_call(
        kernel,
        out_shape=jax.ShapeDtypeStruct((N, HW, COUT_PAD), jnp.float32),
        grid_spec=pltpu.PrefetchScalarGridSpec(
            num_scalar_prefetch=0,
            grid=(N,),
            in_specs=[
                pl.BlockSpec((1, HW, CIN_PAD), lambda n: (n, 0, 0)),   # x
                pl.BlockSpec((CIN_PAD, M), lambda n: (0, 0)),          # w1
                pl.BlockSpec((1, M), lambda n: (0, 0)),                # b1
                pl.BlockSpec((9, M, M), lambda n: (0, 0, 0)),          # w2
                pl.BlockSpec((1, M), lambda n: (0, 0)),                # b2
                pl.BlockSpec((M, COUT_PAD), lambda n: (0, 0)),         # w3
                pl.BlockSpec((1, COUT_PAD), lambda n: (0, 0)),         # b3
            ],
            out_specs=pl.BlockSpec((1, HW, COUT_PAD), lambda n: (n, 0, 0)),
        ),
        compiler_params=pltpu.CompilerParams(
            dimension_semantics=("parallel",),
            vmem_limit_bytes=vmem_limit),
        cost_estimate=cost,
    )(x_pad, w1p, b1p, w2p, b2p, w3p, b3p)

    out = out_pad[:, :, :Cout].reshape(N, H, W, Cout)
    return jnp.transpose(out, (0, 3, 1, 2))


def bottleneck_reference(x, params, *, p_drop=0.5, eps=1e-5):
    """Pure-JAX f32 reference (NCHW, mirrors the PyTorch forward in eval mode)."""
    (g1, b1, m1, v1, w1,
     g2, b2, m2, v2, w2,
     g3, b3, m3, v3, w3,
     g4, b4, m4, v4) = params

    def bn(x, g, b, m, v):
        g, b, m, v = (a[None, :, None, None] for a in (g, b, m, v))
        return (x - m) / jnp.sqrt(v + eps) * g + b

    def conv(x, w, pad):
        return lax.conv_general_dilated(
            x, w, window_strides=(1, 1), padding=((pad, pad), (pad, pad)),
            dimension_numbers=("NCHW", "OIHW", "NCHW"))

    out = bn(x, g1, b1, m1, v1)
    out = conv(out, w1, 0)
    out = jax.nn.relu(bn(out, g2, b2, m2, v2))
    out = conv(out, w2, 1)
    out = jax.nn.relu(bn(out, g3, b3, m3, v3))
    out = conv(out, w3, 0)
    out = bn(out, g4, b4, m4, v4)
    out = (1.0 - p_drop) * out
    cout, cin = out.shape[1], x.shape[1]
    shortcut = x
    if cout != cin:
        padz = jnp.zeros((x.shape[0], cout - cin) + x.shape[2:], x.dtype)
        shortcut = jnp.concatenate([x, padz], axis=1)
    return out + shortcut


def init_params(key, inplanes, planes, outratio=4):
    ks = jax.random.split(key, 16)

    def bn_params(k, c):
        k1, k2, k3, k4 = jax.random.split(k, 4)
        gamma = jax.random.uniform(k1, (c,), jnp.float32, 0.5, 1.5)
        beta = 0.1 * jax.random.normal(k2, (c,), jnp.float32)
        mean = 0.1 * jax.random.normal(k3, (c,), jnp.float32)
        var = jax.random.uniform(k4, (c,), jnp.float32, 0.5, 1.5)
        return gamma, beta, mean, var

    p4 = planes * outratio
    g1, b1, m1, v1 = bn_params(ks[0], inplanes)
    w1 = 0.2 * jax.random.normal(ks[1], (planes, inplanes, 1, 1), jnp.float32)
    g2, b2, m2, v2 = bn_params(ks[2], planes)
    w2 = 0.2 * jax.random.normal(ks[3], (planes, planes, 3, 3), jnp.float32)
    g3, b3, m3, v3 = bn_params(ks[4], planes)
    w3 = 0.2 * jax.random.normal(ks[5], (p4, planes, 1, 1), jnp.float32)
    g4, b4, m4, v4 = bn_params(ks[6], p4)
    return (g1, b1, m1, v1, w1,
            g2, b2, m2, v2, w2,
            g3, b3, m3, v3, w3,
            g4, b4, m4, v4)


if __name__ == "__main__":
    key = jax.random.PRNGKey(0)
    k_x, k_p = jax.random.split(key)

    N, Cin, H, W = 2, 8, 16, 16   # batch, inplanes, spatial
    planes = 8                    # -> output channels = 4 * planes = 32
    p_drop = 0.5

    x = jax.random.normal(k_x, (N, Cin, H, W), jnp.float32)
    params = init_params(k_p, Cin, planes)

    out = bottleneck_forward(x, params, p_drop=p_drop)
    out = jax.block_until_ready(out)

    ref = jax.block_until_ready(bottleneck_reference(x, params, p_drop=p_drop))
    # bf16 MXU operands (f32 accumulation) -> ~1e-2-class error vs f32 ref.
    np.testing.assert_allclose(np.asarray(out), np.asarray(ref),
                               rtol=3e-2, atol=3e-2)
    print("KERNEL_OK")
</pallas_src>

<mosaic_0001>
module attributes {stable_mosaic.version = 11 : i64} {
  func.func @_bottleneck_kernel(%arg0: i32, %arg1: memref<1x256x128xbf16, #tpu.memory_space<vmem>>, %arg2: memref<128x128xbf16, #tpu.memory_space<vmem>>, %arg3: memref<1x128xf32, #tpu.memory_space<vmem>>, %arg4: memref<9x128x128xbf16, #tpu.memory_space<vmem>>, %arg5: memref<1x128xf32, #tpu.memory_space<vmem>>, %arg6: memref<128x128xbf16, #tpu.memory_space<vmem>>, %arg7: memref<1x128xf32, #tpu.memory_space<vmem>>, %arg8: memref<1x256x128xf32, #tpu.memory_space<vmem>>) attributes {dimension_semantics = [#tpu.dimension_semantics<parallel>], iteration_bounds = array<i64: 2>, scalar_prefetch = 0 : i64, scratch_operands = 0 : i64, tpu.core_type = #tpu.core_type<tc>, window_params = [{transform_indices = @transform_0, window_bounds = array<i64: 1, 256, 128>}, {pipeline_mode = #tpu.pipeline_mode<synchronous>, transform_indices = @transform_1, window_bounds = array<i64: 128, 128>}, {pipeline_mode = #tpu.pipeline_mode<synchronous>, transform_indices = @transform_2, window_bounds = array<i64: 1, 128>}, {pipeline_mode = #tpu.pipeline_mode<synchronous>, transform_indices = @transform_3, window_bounds = array<i64: 9, 128, 128>}, {pipeline_mode = #tpu.pipeline_mode<synchronous>, transform_indices = @transform_4, window_bounds = array<i64: 1, 128>}, {pipeline_mode = #tpu.pipeline_mode<synchronous>, transform_indices = @transform_5, window_bounds = array<i64: 128, 128>}, {pipeline_mode = #tpu.pipeline_mode<synchronous>, transform_indices = @transform_6, window_bounds = array<i64: 1, 128>}, {transform_indices = @transform_7, window_bounds = array<i64: 1, 256, 128>}]} {
    %c0 = arith.constant 0 : index
    %c0_0 = arith.constant 0 : index
    %c0_1 = arith.constant 0 : index
    %0 = vector.load %arg1[%c0, %c0_0, %c0_1] : memref<1x256x128xbf16, #tpu.memory_space<vmem>>, vector<1x256x128xbf16>
    %1 = vector.shape_cast %0 : vector<1x256x128xbf16> to vector<256x128xbf16>
    %c0_2 = arith.constant 0 : index
    %c0_3 = arith.constant 0 : index
    %2 = vector.load %arg2[%c0_2, %c0_3] : memref<128x128xbf16, #tpu.memory_space<vmem>>, vector<128x128xbf16>
    %cst = arith.constant dense<0.000000e+00> : vector<256x128xf32>
    %3 = tpu.matmul %1, %2, %cst {dimension_numbers = #tpu.dot_dimension_numbers<[1], [0], [0], [1], [0, 0, 1, 1], [], []>} : vector<256x128xbf16>, vector<128x128xbf16>, vector<256x128xf32> -> vector<256x128xf32>
    %c0_4 = arith.constant 0 : index
    %c0_5 = arith.constant 0 : index
    %4 = vector.load %arg3[%c0_4, %c0_5] : memref<1x128xf32, #tpu.memory_space<vmem>>, vector<1x128xf32>
    %5 = vector.broadcast %4 : vector<1x128xf32> to vector<256x128xf32>
    %6 = arith.addf %3, %5 : vector<256x128xf32>
    %cst_6 = arith.constant 0.000000e+00 : f32
    %7 = vector.broadcast %cst_6 : f32 to vector<256x128xf32>
    %8 = arith.maximumf %6, %7 : vector<256x128xf32>
    %9 = tpu.iota {dimensions = array<i32: 0>} : vector<256x1xi32>
    %c16_i32 = arith.constant 16 : i32
    %c0_i32 = arith.constant 0 : i32
    %10 = arith.cmpi eq, %c16_i32, %c0_i32 : i32
    %c1_i32 = arith.constant 1 : i32
    %11 = arith.select %10, %c1_i32, %c16_i32 : i32
    %12 = vector.broadcast %11 : i32 to vector<256x1xi32>
    %13 = arith.remsi %9, %12 : vector<256x1xi32>
    %c0_i32_7 = arith.constant 0 : i32
    %14 = vector.broadcast %c0_i32_7 : i32 to vector<256x1xi32>
    %15 = arith.cmpi ne, %13, %14 : vector<256x1xi32>
    %c0_i32_8 = arith.constant 0 : i32
    %16 = vector.broadcast %c0_i32_8 : i32 to vector<256x1xi32>
    %17 = arith.cmpi slt, %13, %16 : vector<256x1xi32>
    %c0_i32_9 = arith.constant 0 : i32
    %18 = arith.cmpi slt, %11, %c0_i32_9 : i32
    %19 = vector.broadcast %18 : i1 to vector<256x1xi1>
    %20 = vector.broadcast %19 : vector<256x1xi1> to vector<256x1xi1>
    %21 = arith.xori %17, %20 : vector<256x1xi1>
    %22 = arith.andi %21, %15 : vector<256x1xi1>
    %23 = vector.broadcast %11 : i32 to vector<256x1xi32>
    %24 = arith.addi %13, %23 : vector<256x1xi32>
    %25 = arith.select %22, %24, %13 : vector<256x1xi1>, vector<256x1xi32>
    %c16_i32_10 = arith.constant 16 : i32
    %26 = vector.broadcast %c16_i32_10 : i32 to vector<256x1xi32>
    %27 = arith.cmpi sge, %9, %26 : vector<256x1xi32>
    %c240_i32 = arith.constant 240 : i32
    %28 = vector.broadcast %c240_i32 : i32 to vector<256x1xi32>
    %29 = arith.cmpi slt, %9, %28 : vector<256x1xi32>
    %c1_i32_11 = arith.constant 1 : i32
    %30 = vector.broadcast %c1_i32_11 : i32 to vector<256x1xi32>
    %31 = arith.cmpi sge, %25, %30 : vector<256x1xi32>
    %c15_i32 = arith.constant 15 : i32
    %32 = vector.broadcast %c15_i32 : i32 to vector<256x1xi32>
    %33 = arith.cmpi slt, %25, %32 : vector<256x1xi32>
    %34 = arith.truncf %8 : vector<256x128xf32> to vector<256x128xbf16>
    %c4 = arith.constant 4 : index
    %c0_12 = arith.constant 0 : index
    %c0_13 = arith.constant 0 : index
    %35 = vector.load %arg4[%c4, %c0_12, %c0_13] : memref<9x128x128xbf16, #tpu.memory_space<vmem>>, vector<1x128x128xbf16>
    %36 = vector.shape_cast %35 : vector<1x128x128xbf16> to vector<128x128xbf16>
    %cst_14 = arith.constant dense<0.000000e+00> : vector<256x128xf32>
    %37 = tpu.matmul %34, %36, %cst_14 {dimension_numbers = #tpu.dot_dimension_numbers<[1], [0], [0], [1], [0, 0, 1, 1], [], []>} : vector<256x128xbf16>, vector<128x128xbf16>, vector<256x128xf32> -> vector<256x128xf32>
    %c17_i32 = arith.constant 17 : i32
    %38 = tpu.dynamic_rotate %8 by %c17_i32 dim 0 : vector<256x128xf32>, i32 -> vector<256x128xf32>
    %39 = arith.andi %27, %31 : vector<256x1xi1>
    %cst_15 = arith.constant 0.000000e+00 : f32
    %40 = vector.shape_cast %39 : vector<256x1xi1> to vector<256x1xi1>
    %41 = vector.broadcast %40 : vector<256x1xi1> to vector<256x128xi1>
    %42 = vector.broadcast %cst_15 : f32 to vector<256x128xf32>
    %43 = arith.select %41, %38, %42 : vector<256x128xi1>, vector<256x128xf32>
    %44 = arith.truncf %43 : vector<256x128xf32> to vector<256x128xbf16>
    %c0_16 = arith.constant 0 : index
    %c0_17 = arith.constant 0 : index
    %c0_18 = arith.constant 0 : index
    %45 = vector.load %arg4[%c0_16, %c0_17, %c0_18] : memref<9x128x128xbf16, #tpu.memory_space<vmem>>, vector<1x128x128xbf16>
    %46 = vector.shape_cast %45 : vector<1x128x128xbf16> to vector<128x128xbf16>
    %cst_19 = arith.constant dense<0.000000e+00> : vector<256x128xf32>
    %47 = tpu.matmul %44, %46, %cst_19 {dimension_numbers = #tpu.dot_dimension_numbers<[1], [0], [0], [1], [0, 0, 1, 1], [], []>} : vector<256x128xbf16>, vector<128x128xbf16>, vector<256x128xf32> -> vector<256x128xf32>
    %48 = arith.addf %37, %47 : vector<256x128xf32>
    %c16_i32_20 = arith.constant 16 : i32
    %49 = tpu.dynamic_rotate %8 by %c16_i32_20 dim 0 : vector<256x128xf32>, i32 -> vector<256x128xf32>
    %cst_21 = arith.constant 0.000000e+00 : f32
    %50 = vector.shape_cast %27 : vector<256x1xi1> to vector<256x1xi1>
    %51 = vector.broadcast %50 : vector<256x1xi1> to vector<256x128xi1>
    %52 = vector.broadcast %cst_21 : f32 to vector<256x128xf32>
    %53 = arith.select %51, %49, %52 : vector<256x128xi1>, vector<256x128xf32>
    %54 = arith.truncf %53 : vector<256x128xf32> to vector<256x128xbf16>
    %c1 = arith.constant 1 : index
    %c0_22 = arith.constant 0 : index
    %c0_23 = arith.constant 0 : index
    %55 = vector.load %arg4[%c1, %c0_22, %c0_23] : memref<9x128x128xbf16, #tpu.memory_space<vmem>>, vector<1x128x128xbf16>
    %56 = vector.shape_cast %55 : vector<1x128x128xbf16> to vector<128x128xbf16>
    %cst_24 = arith.constant dense<0.000000e+00> : vector<256x128xf32>
    %57 = tpu.matmul %54, %56, %cst_24 {dimension_numbers = #tpu.dot_dimension_numbers<[1], [0], [0], [1], [0, 0, 1, 1], [], []>} : vector<256x128xbf16>, vector<128x128xbf16>, vector<256x128xf32> -> vector<256x128xf32>
    %58 = arith.addf %48, %57 : vector<256x128xf32>
    %c15_i32_25 = arith.constant 15 : i32
    %59 = tpu.dynamic_rotate %8 by %c15_i32_25 dim 0 : vector<256x128xf32>, i32 -> vector<256x128xf32>
    %60 = arith.andi %27, %33 : vector<256x1xi1>
    %cst_26 = arith.constant 0.000000e+00 : f32
    %61 = vector.shape_cast %60 : vector<256x1xi1> to vector<256x1xi1>
    %62 = vector.broadcast %61 : vector<256x1xi1> to vector<256x128xi1>
    %63 = vector.broadcast %cst_26 : f32 to vector<256x128xf32>
    %64 = arith.select %62, %59, %63 : vector<256x128xi1>, vector<256x128xf32>
    %65 = arith.truncf %64 : vector<256x128xf32> to vector<256x128xbf16>
    %c2 = arith.constant 2 : index
    %c0_27 = arith.constant 0 : index
    %c0_28 = arith.constant 0 : index
    %66 = vector.load %arg4[%c2, %c0_27, %c0_28] : memref<9x128x128xbf16, #tpu.memory_space<vmem>>, vector<1x128x128xbf16>
    %67 = vector.shape_cast %66 : vector<1x128x128xbf16> to vector<128x128xbf16>
    %cst_29 = arith.constant dense<0.000000e+00> : vector<256x128xf32>
    %68 = tpu.matmul %65, %67, %cst_29 {dimension_numbers = #tpu.dot_dimension_numbers<[1], [0], [0], [1], [0, 0, 1, 1], [], []>} : vector<256x128xbf16>, vector<128x128xbf16>, vector<256x128xf32> -> vector<256x128xf32>
    %69 = arith.addf %58, %68 : vector<256x128xf32>
    %c1_i32_30 = arith.constant 1 : i32
    %70 = tpu.dynamic_rotate %8 by %c1_i32_30 dim 0 : vector<256x128xf32>, i32 -> vector<256x128xf32>
    %cst_31 = arith.constant 0.000000e+00 : f32
    %71 = vector.shape_cast %31 : vector<256x1xi1> to vector<256x1xi1>
    %72 = vector.broadcast %71 : vector<256x1xi1> to vector<256x128xi1>
    %73 = vector.broadcast %cst_31 : f32 to vector<256x128xf32>
    %74 = arith.select %72, %70, %73 : vector<256x128xi1>, vector<256x128xf32>
    %75 = arith.truncf %74 : vector<256x128xf32> to vector<256x128xbf16>
    %c3 = arith.constant 3 : index
    %c0_32 = arith.constant 0 : index
    %c0_33 = arith.constant 0 : index
    %76 = vector.load %arg4[%c3, %c0_32, %c0_33] : memref<9x128x128xbf16, #tpu.memory_space<vmem>>, vector<1x128x128xbf16>
    %77 = vector.shape_cast %76 : vector<1x128x128xbf16> to vector<128x128xbf16>
    %cst_34 = arith.constant dense<0.000000e+00> : vector<256x128xf32>
    %78 = tpu.matmul %75, %77, %cst_34 {dimension_numbers = #tpu.dot_dimension_numbers<[1], [0], [0], [1], [0, 0, 1, 1], [], []>} : vector<256x128xbf16>, vector<128x128xbf16>, vector<256x128xf32> -> vector<256x128xf32>
    %79 = arith.addf %69, %78 : vector<256x128xf32>
    %c255_i32 = arith.constant 255 : i32
    %80 = tpu.dynamic_rotate %8 by %c255_i32 dim 0 : vector<256x128xf32>, i32 -> vector<256x128xf32>
    %cst_35 = arith.constant 0.000000e+00 : f32
    %81 = vector.shape_cast %33 : vector<256x1xi1> to vector<256x1xi1>
    %82 = vector.broadcast %81 : vector<256x1xi1> to vector<256x128xi1>
    %83 = vector.broadcast %cst_35 : f32 to vector<256x128xf32>
    %84 = arith.select %82, %80, %83 : vector<256x128xi1>, vector<256x128xf32>
    %85 = arith.truncf %84 : vector<256x128xf32> to vector<256x128xbf16>
    %c5 = arith.constant 5 : index
    %c0_36 = arith.constant 0 : index
    %c0_37 = arith.constant 0 : index
    %86 = vector.load %arg4[%c5, %c0_36, %c0_37] : memref<9x128x128xbf16, #tpu.memory_space<vmem>>, vector<1x128x128xbf16>
    %87 = vector.shape_cast %86 : vector<1x128x128xbf16> to vector<128x128xbf16>
    %cst_38 = arith.constant dense<0.000000e+00> : vector<256x128xf32>
    %88 = tpu.matmul %85, %87, %cst_38 {dimension_numbers = #tpu.dot_dimension_numbers<[1], [0], [0], [1], [0, 0, 1, 1], [], []>} : vector<256x128xbf16>, vector<128x128xbf16>, vector<256x128xf32> -> vector<256x128xf32>
    %89 = arith.addf %79, %88 : vector<256x128xf32>
    %c241_i32 = arith.constant 241 : i32
    %90 = tpu.dynamic_rotate %8 by %c241_i32 dim 0 : vector<256x128xf32>, i32 -> vector<256x128xf32>
    %91 = arith.andi %29, %31 : vector<256x1xi1>
    %cst_39 = arith.constant 0.000000e+00 : f32
    %92 = vector.shape_cast %91 : vector<256x1xi1> to vector<256x1xi1>
    %93 = vector.broadcast %92 : vector<256x1xi1> to vector<256x128xi1>
    %94 = vector.broadcast %cst_39 : f32 to vector<256x128xf32>
    %95 = arith.select %93, %90, %94 : vector<256x128xi1>, vector<256x128xf32>
    %96 = arith.truncf %95 : vector<256x128xf32> to vector<256x128xbf16>
    %c6 = arith.constant 6 : index
    %c0_40 = arith.constant 0 : index
    %c0_41 = arith.constant 0 : index
    %97 = vector.load %arg4[%c6, %c0_40, %c0_41] : memref<9x128x128xbf16, #tpu.memory_space<vmem>>, vector<1x128x128xbf16>
    %98 = vector.shape_cast %97 : vector<1x128x128xbf16> to vector<128x128xbf16>
    %cst_42 = arith.constant dense<0.000000e+00> : vector<256x128xf32>
    %99 = tpu.matmul %96, %98, %cst_42 {dimension_numbers = #tpu.dot_dimension_numbers<[1], [0], [0], [1], [0, 0, 1, 1], [], []>} : vector<256x128xbf16>, vector<128x128xbf16>, vector<256x128xf32> -> vector<256x128xf32>
    %100 = arith.addf %89, %99 : vector<256x128xf32>
    %c240_i32_43 = arith.constant 240 : i32
    %101 = tpu.dynamic_rotate %8 by %c240_i32_43 dim 0 : vector<256x128xf32>, i32 -> vector<256x128xf32>
    %cst_44 = arith.constant 0.000000e+00 : f32
    %102 = vector.shape_cast %29 : vector<256x1xi1> to vector<256x1xi1>
    %103 = vector.broadcast %102 : vector<256x1xi1> to vector<256x128xi1>
    %104 = vector.broadcast %cst_44 : f32 to vector<256x128xf32>
    %105 = arith.select %103, %101, %104 : vector<256x128xi1>, vector<256x128xf32>
    %106 = arith.truncf %105 : vector<256x128xf32> to vector<256x128xbf16>
    %c7 = arith.constant 7 : index
    %c0_45 = arith.constant 0 : index
    %c0_46 = arith.constant 0 : index
    %107 = vector.load %arg4[%c7, %c0_45, %c0_46] : memref<9x128x128xbf16, #tpu.memory_space<vmem>>, vector<1x128x128xbf16>
    %108 = vector.shape_cast %107 : vector<1x128x128xbf16> to vector<128x128xbf16>
    %cst_47 = arith.constant dense<0.000000e+00> : vector<256x128xf32>
    %109 = tpu.matmul %106, %108, %cst_47 {dimension_numbers = #tpu.dot_dimension_numbers<[1], [0], [0], [1], [0, 0, 1, 1], [], []>} : vector<256x128xbf16>, vector<128x128xbf16>, vector<256x128xf32> -> vector<256x128xf32>
    %110 = arith.addf %100, %109 : vector<256x128xf32>
    %c239_i32 = arith.constant 239 : i32
    %111 = tpu.dynamic_rotate %8 by %c239_i32 dim 0 : vector<256x128xf32>, i32 -> vector<256x128xf32>
    %112 = arith.andi %29, %33 : vector<256x1xi1>
    %cst_48 = arith.constant 0.000000e+00 : f32
    %113 = vector.shape_cast %112 : vector<256x1xi1> to vector<256x1xi1>
    %114 = vector.broadcast %113 : vector<256x1xi1> to vector<256x128xi1>
    %115 = vector.broadcast %cst_48 : f32 to vector<256x128xf32>
    %116 = arith.select %114, %111, %115 : vector<256x128xi1>, vector<256x128xf32>
    %117 = arith.truncf %116 : vector<256x128xf32> to vector<256x128xbf16>
    %c8 = arith.constant 8 : index
    %c0_49 = arith.constant 0 : index
    %c0_50 = arith.constant 0 : index
    %118 = vector.load %arg4[%c8, %c0_49, %c0_50] : memref<9x128x128xbf16, #tpu.memory_space<vmem>>, vector<1x128x128xbf16>
    %119 = vector.shape_cast %118 : vector<1x128x128xbf16> to vector<128x128xbf16>
    %cst_51 = arith.constant dense<0.000000e+00> : vector<256x128xf32>
    %120 = tpu.matmul %117, %119, %cst_51 {dimension_numbers = #tpu.dot_dimension_numbers<[1], [0], [0], [1], [0, 0, 1, 1], [], []>} : vector<256x128xbf16>, vector<128x128xbf16>, vector<256x128xf32> -> vector<256x128xf32>
    %121 = arith.addf %110, %120 : vector<256x128xf32>
    %c0_52 = arith.constant 0 : index
    %c0_53 = arith.constant 0 : index
    %122 = vector.load %arg5[%c0_52, %c0_53] : memref<1x128xf32, #tpu.memory_space<vmem>>, vector<1x128xf32>
    %123 = vector.broadcast %122 : vector<1x128xf32> to vector<256x128xf32>
    %124 = arith.addf %121, %123 : vector<256x128xf32>
    %cst_54 = arith.constant 0.000000e+00 : f32
    %125 = vector.broadcast %cst_54 : f32 to vector<256x128xf32>
    %126 = arith.maximumf %124, %125 : vector<256x128xf32>
    %127 = arith.truncf %126 : vector<256x128xf32> to vector<256x128xbf16>
    %c0_55 = arith.constant 0 : index
    %c0_56 = arith.constant 0 : index
    %128 = vector.load %arg6[%c0_55, %c0_56] : memref<128x128xbf16, #tpu.memory_space<vmem>>, vector<128x128xbf16>
    %cst_57 = arith.constant dense<0.000000e+00> : vector<256x128xf32>
    %129 = tpu.matmul %127, %128, %cst_57 {dimension_numbers = #tpu.dot_dimension_numbers<[1], [0], [0], [1], [0, 0, 1, 1], [], []>} : vector<256x128xbf16>, vector<128x128xbf16>, vector<256x128xf32> -> vector<256x128xf32>
    %c0_58 = arith.constant 0 : index
    %c0_59 = arith.constant 0 : index
    %130 = vector.load %arg7[%c0_58, %c0_59] : memref<1x128xf32, #tpu.memory_space<vmem>>, vector<1x128xf32>
    %131 = vector.broadcast %130 : vector<1x128xf32> to vector<256x128xf32>
    %132 = arith.addf %129, %131 : vector<256x128xf32>
    %133 = arith.extf %1 : vector<256x128xbf16> to vector<256x128xf32>
    %134 = arith.addf %132, %133 : vector<256x128xf32>
    %c0_60 = arith.constant 0 : index
    %c0_61 = arith.constant 0 : index
    %c0_62 = arith.constant 0 : index
    %135 = vector.load %arg8[%c0_60, %c0_61, %c0_62] : memref<1x256x128xf32, #tpu.memory_space<vmem>>, vector<1x256x128xf32>
    %136 = vector.shape_cast %135 : vector<1x256x128xf32> to vector<256x128xf32>
    %137 = vector.shape_cast %134 : vector<256x128xf32> to vector<1x256x128xf32>
    tpu.vector_store %arg8[%c0_60, %c0_61, %c0_62], %137 {strides = array<i32>} : memref<1x256x128xf32, #tpu.memory_space<vmem>>, vector<1x256x128xf32>,
    return
  }
  func.func @transform_0(%arg0: i32) -> (i32, i32, i32) {
    %c0_i32 = arith.constant 0 : i32
    %c0_i32_0 = arith.constant 0 : i32
    %c0_i32_1 = arith.constant 0 : i32
    return %arg0, %c0_i32, %c0_i32_0 : i32, i32, i32
  }
  func.func @transform_1(%arg0: i32) -> (i32, i32) {
    %c0_i32 = arith.constant 0 : i32
    %c0_i32_0 = arith.constant 0 : i32
    %c0_i32_1 = arith.constant 0 : i32
    return %c0_i32, %c0_i32_0 : i32, i32
  }
  func.func @transform_2(%arg0: i32) -> (i32, i32) {
    %c0_i32 = arith.constant 0 : i32
    %c0_i32_0 = arith.constant 0 : i32
    %c0_i32_1 = arith.constant 0 : i32
    return %c0_i32, %c0_i32_0 : i32, i32
  }
  func.func @transform_3(%arg0: i32) -> (i32, i32, i32) {
    %c0_i32 = arith.constant 0 : i32
    %c0_i32_0 = arith.constant 0 : i32
    %c0_i32_1 = arith.constant 0 : i32
    %c0_i32_2 = arith.constant 0 : i32
    return %c0_i32, %c0_i32_0, %c0_i32_1 : i32, i32, i32
  }
  func.func @transform_4(%arg0: i32) -> (i32, i32) {
    %c0_i32 = arith.constant 0 : i32
    %c0_i32_0 = arith.constant 0 : i32
    %c0_i32_1 = arith.constant 0 : i32
    return %c0_i32, %c0_i32_0 : i32, i32
  }
  func.func @transform_5(%arg0: i32) -> (i32, i32) {
    %c0_i32 = arith.constant 0 : i32
    %c0_i32_0 = arith.constant 0 : i32
    %c0_i32_1 = arith.constant 0 : i32
    return %c0_i32, %c0_i32_0 : i32, i32
  }
  func.func @transform_6(%arg0: i32) -> (i32, i32) {
    %c0_i32 = arith.constant 0 : i32
    %c0_i32_0 = arith.constant 0 : i32
    %c0_i32_1 = arith.constant 0 : i32
    return %c0_i32, %c0_i32_0 : i32, i32
  }
  func.func @transform_7(%arg0: i32) -> (i32, i32, i32) {
    %c0_i32 = arith.constant 0 : i32
    %c0_i32_0 = arith.constant 0 : i32
    %c0_i32_1 = arith.constant 0 : i32
    return %arg0, %c0_i32, %c0_i32_0 : i32, i32, i32
  }
}

</mosaic_0001>

<llo_original>
// kernel: tpu_custom_call.1
$region0: #{tpu_custom_call.1}
  #allocation0 [shape = 'u32[]', space=smem, size = 0x4, offset = 0x4, fixed_abs, tag = 'smem constant byte address 0x4 - core index']
  #allocation1 [shape = 'u32[144,128]{1,0:T(1,128)}', space=vmem, size = 0x12000, scoped, tag = 'internal scratch']
  %s0 = inlined_call_operand.hbm [shape: bf16[2,256,128], index: 0, kind: input, shape index: {}]
  %s1 = inlined_call_operand.hbm [shape: bf16[128,128], index: 1, kind: input, shape index: {}]
  %s2 = inlined_call_operand.vmem [shape: f32[1,128], index: 2, kind: input, shape index: {}]
  %s3 = inlined_call_operand.hbm [shape: bf16[9,128,128], index: 3, kind: input, shape index: {}]
  %s4 = inlined_call_operand.vmem [shape: f32[1,128], index: 4, kind: input, shape index: {}]
  %s5 = inlined_call_operand.hbm [shape: bf16[128,128], index: 5, kind: input, shape index: {}]
  %s6 = inlined_call_operand.vmem [shape: f32[1,128], index: 6, kind: input, shape index: {}]
  %s7 = inlined_call_operand.hbm [shape: f32[2,256,128], index: 7, kind: output, shape index: {}]
  %s8 = sld [smem:[#allocation0]]
  $region77: #{tpu_custom_call.1} parent=0
    _
  %s10 = ssub.s32 1, %s8
  %s11 = scalar_select 0, %s10, %s8
  $region1: #{tpu_custom_call.1} parent=0
    #allocation2 [shape = 'u8[131072]{0}', space=vmem, size = 0x20000, scoped, tag = 'input window, operand 0']
    #allocation3 [shape = 's32[2]{0}', space=sflag, size = 0x8, scoped, tag = 'scoped memory for tpu_custom_call.1']
    #allocation4 [shape = 's32[2]{0}', space=sflag, size = 0x8, scoped, tag = 'scoped memory for tpu_custom_call.1']
    #allocation5 [shape = 'u8[32768]{0}', space=vmem, size = 0x8000, scoped, tag = 'input window, operand 1, single buffered']
    #allocation6 [shape = 's32[1]{0}', space=sflag, size = 0x4, scoped, tag = 'scoped memory for tpu_custom_call.1']
    #allocation7 [shape = 'u8[294912]{0}', space=vmem, size = 0x48000, scoped, tag = 'input window, operand 3, single buffered']
    #allocation8 [shape = 'u8[32768]{0}', space=vmem, size = 0x8000, scoped, tag = 'input window, operand 5, single buffered']
    #allocation9 [shape = 's32[1]{0}', space=sflag, size = 0x4, scoped, tag = 'scoped memory for tpu_custom_call.1']
    #allocation10 [shape = 'u8[262144]{0}', space=vmem, size = 0x40000, scoped, tag = 'output window, operand 0']
    %12 = vsyncpa [#allocation3], 0
    %s13 = scalar_lea.sflag [#allocation3], 1
    %14 = vsyncpa %s13, 0
    %15 = vsyncpa [#allocation6], 0
    %16 = vsyncpa [#allocation9], 0
    %17 = vsyncpa [#allocation4], 0
    %s18 = scalar_lea.sflag [#allocation4], 1
    %19 = vsyncpa %s18, 0
    loop: start=0, step=1, limit=4
    $region2: #{tpu_custom_call.1} parent=1 // loop_pre_header
      _
    $region3: #{tpu_custom_call.1} parent=1 // loop_header
      %s21 = sphi 0, %s25
      %p22 = scmp.ge.s32.totalorder %s21, 4
      %s31 = sphi 0, %s33
      %s34 = sphi 0, %s31
      %s35 = sphi 0, %s34
      %s51 = sphi 0, %s35
      %s55 = sphi 0, %s55
      %s57 = sphi 0, %s55
      %s58 = sphi 0, %s57
      %s72 = sphi 0, %s58
      %s76 = sphi 0, %s76
      %s78 = sphi 0, %s76
      %s79 = sphi 0, %s78
      %s93 = sphi 0, %s79
      %s97 = sphi 0, %s97
      %s99 = sphi 0, %s97
      %s100 = sphi 0, %s99
      %s114 = sphi 0, %s100
      %s118 = sphi 0, %s118
      %s120 = sphi 0, %s118
      %s121 = sphi 0, %s120
      %s135 = sphi 0, %s121
      %s139 = sphi 0, %s139
      %s141 = sphi 0, %s139
      %s142 = sphi 0, %s141
      %s156 = sphi 0, %s142
      %s160 = sphi 0, %s160
      %s162 = sphi 0, %s160
      %s163 = sphi 0, %s162
      %s177 = sphi 0, %s163
      %s183 = sphi 0, %s185
      %s186 = sphi 0, %s183
      %s187 = sphi 0, %s186
      %s203 = sphi 0, %s187
    $region4: #{tpu_custom_call.1} parent=1 // loop_header_branch
      %24 = sbr.rel (%p22) target = $region8
    $region5: #{tpu_custom_call.1} parent=1 // loop_body
      %s26 = ssub.s32 %s21, 1
      %s27 = ssub.s32 %s21, 2
      %s28 = sadd.s32 %s21, 1
      %s29 = ssub.s32 %s21, %s28
      %p30 = scmp.eq.s32.totalorder %s29, 0
      %s32 = sadd.s32 %s31, 1
      %s33 = scalar_select %p30, %s31, %s32
      %p36 = pneg %p30
      %p37 = scmp.eq.s32.totalorder %s21, 1
      %p38 = por %p36, %p37
      %p39 = scmp.ne.s32.totalorder %s31, %s34
      %p40 = scmp.eq.s32.totalorder %s21, 0
      %p41 = por %p39, %p40
      %p42 = scmp.ne.s32.totalorder %s31, %s34
      %p43 = scmp.eq.s32.totalorder %s26, 1
      %p44 = por %p42, %p43
      %p45 = scmp.ne.s32.totalorder %s34, %s35
      %p46 = scmp.eq.s32.totalorder %s26, 0
      %p47 = por %p45, %p46
      %p48 = scmp.ne.s32.totalorder %s34, %s35
      %p49 = scmp.eq.s32.totalorder %s27, 1
      %p50 = por %p48, %p49
      %p52 = scmp.ne.s32.totalorder %s35, %s51
      %p53 = scmp.eq.s32.totalorder %s27, 0
      %p54 = por %p52, %p53
      %s56 = sadd.s32 %s55, 1
      %p59 = scmp.eq.s32.totalorder %s21, 1
      %p60 = scmp.ne.s32.totalorder %s55, %s57
      %p61 = scmp.eq.s32.totalorder %s21, 0
      %p62 = por %p60, %p61
      %p63 = scmp.ne.s32.totalorder %s55, %s57
      %p64 = scmp.eq.s32.totalorder %s26, 1
      %p65 = por %p63, %p64
      %p66 = scmp.ne.s32.totalorder %s57, %s58
      %p67 = scmp.eq.s32.totalorder %s26, 0
      %p68 = por %p66, %p67
      %p69 = scmp.ne.s32.totalorder %s57, %s58
      %p70 = scmp.eq.s32.totalorder %s27, 1
      %p71 = por %p69, %p70
      %p73 = scmp.ne.s32.totalorder %s58, %s72
      %p74 = scmp.eq.s32.totalorder %s27, 0
      %p75 = por %p73, %p74
      %s77 = sadd.s32 %s76, 1
      %p80 = scmp.eq.s32.totalorder %s21, 1
      %p81 = scmp.ne.s32.totalorder %s76, %s78
      %p82 = scmp.eq.s32.totalorder %s21, 0
      %p83 = por %p81, %p82
      %p84 = scmp.ne.s32.totalorder %s76, %s78
      %p85 = scmp.eq.s32.totalorder %s26, 1
      %p86 = por %p84, %p85
      %p87 = scmp.ne.s32.totalorder %s78, %s79
      %p88 = scmp.eq.s32.totalorder %s26, 0
      %p89 = por %p87, %p88
      %p90 = scmp.ne.s32.totalorder %s78, %s79
      %p91 = scmp.eq.s32.totalorder %s27, 1
      %p92 = por %p90, %p91
      %p94 = scmp.ne.s32.totalorder %s79, %s93
      %p95 = scmp.eq.s32.totalorder %s27, 0
      %p96 = por %p94, %p95
      %s98 = sadd.s32 %s97, 1
      %p101 = scmp.eq.s32.totalorder %s21, 1
      %p102 = scmp.ne.s32.totalorder %s97, %s99
      %p103 = scmp.eq.s32.totalorder %s21, 0
      %p104 = por %p102, %p103
      %p105 = scmp.ne.s32.totalorder %s97, %s99
      %p106 = scmp.eq.s32.totalorder %s26, 1
      %p107 = por %p105, %p106
      %p108 = scmp.ne.s32.totalorder %s99, %s100
      %p109 = scmp.eq.s32.totalorder %s26, 0
      %p110 = por %p108, %p109
      %p111 = scmp.ne.s32.totalorder %s99, %s100
      %p112 = scmp.eq.s32.totalorder %s27, 1
      %p113 = por %p111, %p112
      %p115 = scmp.ne.s32.totalorder %s100, %s114
      %p116 = scmp.eq.s32.totalorder %s27, 0
      %p117 = por %p115, %p116
      %s119 = sadd.s32 %s118, 1
      %p122 = scmp.eq.s32.totalorder %s21, 1
      %p123 = scmp.ne.s32.totalorder %s118, %s120
      %p124 = scmp.eq.s32.totalorder %s21, 0
      %p125 = por %p123, %p124
      %p126 = scmp.ne.s32.totalorder %s118, %s120
      %p127 = scmp.eq.s32.totalorder %s26, 1
      %p128 = por %p126, %p127
      %p129 = scmp.ne.s32.totalorder %s120, %s121
      %p130 = scmp.eq.s32.totalorder %s26, 0
      %p131 = por %p129, %p130
      %p132 = scmp.ne.s32.totalorder %s120, %s121
      %p133 = scmp.eq.s32.totalorder %s27, 1
      %p134 = por %p132, %p133
      %p136 = scmp.ne.s32.totalorder %s121, %s135
      %p137 = scmp.eq.s32.totalorder %s27, 0
      %p138 = por %p136, %p137
      %s140 = sadd.s32 %s139, 1
      %p143 = scmp.eq.s32.totalorder %s21, 1
      %p144 = scmp.ne.s32.totalorder %s139, %s141
      %p145 = scmp.eq.s32.totalorder %s21, 0
      %p146 = por %p144, %p145
      %p147 = scmp.ne.s32.totalorder %s139, %s141
      %p148 = scmp.eq.s32.totalorder %s26, 1
      %p149 = por %p147, %p148
      %p150 = scmp.ne.s32.totalorder %s141, %s142
      %p151 = scmp.eq.s32.totalorder %s26, 0
      %p152 = por %p150, %p151
      %p153 = scmp.ne.s32.totalorder %s141, %s142
      %p154 = scmp.eq.s32.totalorder %s27, 1
      %p155 = por %p153, %p154
      %p157 = scmp.ne.s32.totalorder %s142, %s156
      %p158 = scmp.eq.s32.totalorder %s27, 0
      %p159 = por %p157, %p158
      %s161 = sadd.s32 %s160, 1
      %p164 = scmp.eq.s32.totalorder %s21, 1
      %p165 = scmp.ne.s32.totalorder %s160, %s162
      %p166 = scmp.eq.s32.totalorder %s21, 0
      %p167 = por %p165, %p166
      %p168 = scmp.ne.s32.totalorder %s160, %s162
      %p169 = scmp.eq.s32.totalorder %s26, 1
      %p170 = por %p168, %p169
      %p171 = scmp.ne.s32.totalorder %s162, %s163
      %p172 = scmp.eq.s32.totalorder %s26, 0
      %p173 = por %p171, %p172
      %p174 = scmp.ne.s32.totalorder %s162, %s163
      %p175 = scmp.eq.s32.totalorder %s27, 1
      %p176 = por %p174, %p175
      %p178 = scmp.ne.s32.totalorder %s163, %s177
      %p179 = scmp.eq.s32.totalorder %s27, 0
      %p180 = por %p178, %p179
      %s181 = ssub.s32 %s21, %s28
      %p182 = scmp.eq.s32.totalorder %s181, 0
      %s184 = sadd.s32 %s183, 1
      %s185 = scalar_select %p182, %s183, %s184
      %p188 = pneg %p182
      %p189 = scmp.eq.s32.totalorder %s21, 1
      %p190 = por %p188, %p189
      %p191 = scmp.ne.s32.totalorder %s183, %s186
      %p192 = scmp.eq.s32.totalorder %s21, 0
      %p193 = por %p191, %p192
      %p194 = scmp.ne.s32.totalorder %s183, %s186
      %p195 = scmp.eq.s32.totalorder %s26, 1
      %p196 = por %p194, %p195
      %p197 = scmp.ne.s32.totalorder %s186, %s187
      %p198 = scmp.eq.s32.totalorder %s26, 0
      %p199 = por %p197, %p198
      %p200 = scmp.ne.s32.totalorder %s186, %s187
      %p201 = scmp.eq.s32.totalorder %s27, 1
      %p202 = por %p200, %p201
      %p204 = scmp.ne.s32.totalorder %s187, %s203
      %p205 = scmp.eq.s32.totalorder %s27, 0
      %p206 = por %p204, %p205
      %p207 = scmp.le.s32.totalorder 1, %s21
      %p208 = scmp.lt.s32.totalorder %s21, 3
      %p209 = pnand %p207, %p208
      %p210 = pneg %p209
      // Predicated region
      $region9: #{tpu_custom_call.1} parent=5 // pred_check
        _
      $region10: #{tpu_custom_call.1} parent=5 // pred_check_branch
        %212 = sbr.rel (%p209) target = $region12
      $region11: #{tpu_custom_call.1} parent=5 // pred_region
        %s213 = ssub.s32 %s21, 1
        // Predicated region
        $region13: #{tpu_custom_call.1} parent=11 // pred_check
          %p214 = pneg %p68
        $region14: #{tpu_custom_call.1} parent=11 // pred_check_branch
          %216 = sbr.rel (%p214) target = $region16
        $region15: #{tpu_custom_call.1} parent=11 // pred_region
          %s218 = ssub.s32 1024, 1024
          %219 = vsyncadd [#allocation6], %s218
          %s220 = sshll.u32 [#allocation5], 4
          %s221 = int_to_ptr.vmem [resolvable:$true] %s220
          %226 = dma.hbm_to_vmem [thread:$0]  %s1, 1024, %s221, [#allocation6], 64, 64, 4
        $region16: #{tpu_custom_call.1} parent=11 // pred_fallthru
          _
        // Predicated region
        $region17: #{tpu_custom_call.1} parent=11 // pred_check
          %p227 = pneg %p89
        $region18: #{tpu_custom_call.1} parent=11 // pred_check_branch
          %229 = sbr.rel (%p227) target = $region20
        $region19: #{tpu_custom_call.1} parent=11 // pred_region
          _
        $region20: #{tpu_custom_call.1} parent=11 // pred_fallthru
          _
        // Predicated region
        $region21: #{tpu_custom_call.1} parent=11 // pred_check
          %p230 = pneg %p110
        $region22: #{tpu_custom_call.1} parent=11 // pred_check_branch
          %232 = sbr.rel (%p230) target = $region24
        $region23: #{tpu_custom_call.1} parent=11 // pred_region
          %s234 = ssub.s32 9216, 9216
          %235 = vsyncadd [#allocation6], %s234
          %s236 = sshll.u32 [#allocation7], 4
          %s237 = int_to_ptr.vmem [resolvable:$true] %s236
          %242 = dma.hbm_to_vmem [thread:$0]  %s3, 9216, %s237, [#allocation6], 64, 64, 4
        $region24: #{tpu_custom_call.1} parent=11 // pred_fallthru
          _
        // Predicated region
        $region25: #{tpu_custom_call.1} parent=11 // pred_check
          %p243 = pneg %p131
        $region26: #{tpu_custom_call.1} parent=11 // pred_check_branch
          %245 = sbr.rel (%p243) target = $region28
        $region27: #{tpu_custom_call.1} parent=11 // pred_region
          _
        $region28: #{tpu_custom_call.1} parent=11 // pred_fallthru
          _
        // Predicated region
        $region29: #{tpu_custom_call.1} parent=11 // pred_check
          %p246 = pneg %p152
        $region30: #{tpu_custom_call.1} parent=11 // pred_check_branch
          %248 = sbr.rel (%p246) target = $region32
        $region31: #{tpu_custom_call.1} parent=11 // pred_region
          %s250 = ssub.s32 1024, 1024
          %251 = vsyncadd [#allocation9], %s250
          %s252 = sshll.u32 [#allocation8], 4
          %s253 = int_to_ptr.vmem [resolvable:$true] %s252
          %258 = dma.hbm_to_vmem [thread:$0]  %s5, 1024, %s253, [#allocation9], 64, 64, 4
        $region32: #{tpu_custom_call.1} parent=11 // pred_fallthru
          _
        // Predicated region
        $region33: #{tpu_custom_call.1} parent=11 // pred_check
          %p259 = pneg %p173
        $region34: #{tpu_custom_call.1} parent=11 // pred_check_branch
          %261 = sbr.rel (%p259) target = $region36
        $region35: #{tpu_custom_call.1} parent=11 // pred_region
          _
        $region36: #{tpu_custom_call.1} parent=11 // pred_fallthru
          _
      $region12: #{tpu_custom_call.1} parent=5 // pred_fallthru
        _
      %p262 = scmp.lt.s32.totalorder %s21, 2
      // Predicated region
      $region37: #{tpu_custom_call.1} parent=5 // pred_check
        %p263 = pneg %p262
      $region38: #{tpu_custom_call.1} parent=5 // pred_check_branch
        %265 = sbr.rel (%p263) target = $region40
      $region39: #{tpu_custom_call.1} parent=5 // pred_region
        // Predicated region
        $region41: #{tpu_custom_call.1} parent=39 // pred_check
          %p266 = pneg %p41
        $region42: #{tpu_custom_call.1} parent=39 // pred_check_branch
          %268 = sbr.rel (%p266) target = $region44
        $region43: #{tpu_custom_call.1} parent=39 // pred_region
          %s269 = sand.u32 %s31, 1
          %s270 = scalar_lea.sflag [#allocation3], %s269
          %s271 = sand.u32 %s31, 1
          %s272 = smul.addr %s271, 128
          %s273 = scalar_lea.vmem [#allocation2], %s272
          %s275 = ssub.s32 2048, 2048
          %276 = vsyncadd %s270, %s275
          %s277 = smul.addr %s21, 32
          %s278 = smul.addr %s277, 64
          %s279 = scalar_lea.hbm %s0, %s278
          %s280 = sshll.u32 %s273, 4
          %s281 = int_to_ptr.vmem [resolvable:$true] %s280
          %286 = dma.hbm_to_vmem [thread:$0]  %s279, 2048, %s281, %s270, 64, 64, 4
        $region44: #{tpu_custom_call.1} parent=39 // pred_fallthru
          _
      $region40: #{tpu_custom_call.1} parent=5 // pred_fallthru
        _
      %p287 = scmp.le.s32.totalorder 1, %s21
      %p288 = scmp.lt.s32.totalorder %s21, 3
      %p289 = pnand %p287, %p288
      %p290 = pneg %p289
      // Predicated region
      $region45: #{tpu_custom_call.1} parent=5 // pred_check
        _
      $region46: #{tpu_custom_call.1} parent=5 // pred_check_branch
        %292 = sbr.rel (%p289) target = $region48
      $region47: #{tpu_custom_call.1} parent=5 // pred_region
        %s293 = ssub.s32 %s21, 1
        %s294 = sand.u32 %s34, 1
        %s295 = scalar_lea.sflag [#allocation3], %s294
        %s296 = sand.u32 %s34, 1
        %s297 = smul.addr %s296, 128
        %s298 = scalar_lea.vmem [#allocation2], %s297
        // Predicated region
        $region49: #{tpu_custom_call.1} parent=47 // pred_check
          %p299 = pneg %p47
        $region50: #{tpu_custom_call.1} parent=47 // pred_check_branch
          %301 = sbr.rel (%p299) target = $region52
        $region51: #{tpu_custom_call.1} parent=47 // pred_region
          %302 = dma.done %s295, 2048
        $region52: #{tpu_custom_call.1} parent=47 // pred_fallthru
          _
        // Predicated region
        $region53: #{tpu_custom_call.1} parent=47 // pred_check
          %p303 = pneg %p68
        $region54: #{tpu_custom_call.1} parent=47 // pred_check_branch
          %305 = sbr.rel (%p303) target = $region56
        $region55: #{tpu_custom_call.1} parent=47 // pred_region
          %306 = dma.done [#allocation6], 1024
        $region56: #{tpu_custom_call.1} parent=47 // pred_fallthru
          _
        // Predicated region
        $region57: #{tpu_custom_call.1} parent=47 // pred_check
          %p307 = pneg %p110
        $region58: #{tpu_custom_call.1} parent=47 // pred_check_branch
          %309 = sbr.rel (%p307) target = $region60
        $region59: #{tpu_custom_call.1} parent=47 // pred_region
          %310 = dma.done [#allocation6], 9216
        $region60: #{tpu_custom_call.1} parent=47 // pred_fallthru
          _
        // Predicated region
        $region61: #{tpu_custom_call.1} parent=47 // pred_check
          %p311 = pneg %p152
        $region62: #{tpu_custom_call.1} parent=47 // pred_check_branch
          %313 = sbr.rel (%p311) target = $region64
        $region63: #{tpu_custom_call.1} parent=47 // pred_region
          %314 = dma.done [#allocation9], 1024
        $region64: #{tpu_custom_call.1} parent=47 // pred_fallthru
          _
        %s315 = sand.u32 %s34, 1
        %s316 = scalar_lea.sflag [#allocation3], %s315
        %s317 = sand.u32 %s34, 1
        %s318 = smul.addr %s317, 128
        %s319 = scalar_lea.vmem [#allocation2], %s318
        %p320 = pneg %p47
        %p321 = pneg %p44
        %p322 = pneg %p68
        %p323 = pneg %p65
        %p324 = pneg %p89
        %p325 = pneg %p86
        %p326 = pneg %p110
        %p327 = pneg %p107
        %p328 = pneg %p131
        %p329 = pneg %p128
        %p330 = pneg %p152
        %p331 = pneg %p149
        %p332 = pneg %p173
        %p333 = pneg %p170
        %p334 = pneg %p199
        %p335 = pneg %p196
        %s336 = sand.u32 %s186, 1
        %s337 = scalar_lea.sflag [#allocation4], %s336
        %s338 = sand.u32 %s186, 1
        %s339 = smul.addr %s338, 256
        %s340 = scalar_lea.vmem [#allocation10], %s339
        %v342 = vld [vmem:[%s298] sm:$0xf]
        %v343 = vld [vmem:[%s298 + $0x4] sm:$0xf]
        %v344 = vld [vmem:[%s298 + $0x8] sm:$0xf]
        %v345 = vld [vmem:[%s298 + $0xc] sm:$0xf]
        %v346 = vld [vmem:[%s298 + $0x10] sm:$0xf]
        %v347 = vld [vmem:[%s298 + $0x14] sm:$0xf]
        %v348 = vld [vmem:[%s298 + $0x18] sm:$0xf]
        %v349 = vld [vmem:[%s298 + $0x1c] sm:$0xf]
        %v350 = vld [vmem:[%s298 + $0x20] sm:$0xf]
        %v351 = vld [vmem:[%s298 + $0x24] sm:$0xf]
        %v352 = vld [vmem:[%s298 + $0x28] sm:$0xf]
        %v353 = vld [vmem:[%s298 + $0x2c] sm:$0xf]
        %v354 = vld [vmem:[%s298 + $0x30] sm:$0xf]
        %v355 = vld [vmem:[%s298 + $0x34] sm:$0xf]
        %v356 = vld [vmem:[%s298 + $0x38] sm:$0xf]
        %v357 = vld [vmem:[%s298 + $0x3c] sm:$0xf]
        %v358 = vld [vmem:[%s298 + $0x40] sm:$0xf]
        %v359 = vld [vmem:[%s298 + $0x44] sm:$0xf]
        %v360 = vld [vmem:[%s298 + $0x48] sm:$0xf]
        %v361 = vld [vmem:[%s298 + $0x4c] sm:$0xf]
        %v362 = vld [vmem:[%s298 + $0x50] sm:$0xf]
        %v363 = vld [vmem:[%s298 + $0x54] sm:$0xf]
        %v364 = vld [vmem:[%s298 + $0x58] sm:$0xf]
        %v365 = vld [vmem:[%s298 + $0x5c] sm:$0xf]
        %v366 = vld [vmem:[%s298 + $0x60] sm:$0xf]
        %v367 = vld [vmem:[%s298 + $0x64] sm:$0xf]
        %v368 = vld [vmem:[%s298 + $0x68] sm:$0xf]
        %v369 = vld [vmem:[%s298 + $0x6c] sm:$0xf]
        %v370 = vld [vmem:[%s298 + $0x70] sm:$0xf]
        %v371 = vld [vmem:[%s298 + $0x74] sm:$0xf]
        %v372 = vld [vmem:[%s298 + $0x78] sm:$0xf]
        %v373 = vld [vmem:[%s298 + $0x7c] sm:$0xf]
        %v374 = vld [vmem:[#allocation5] sm:$0xf]
        %v375 = vld [vmem:[#allocation5 + $0x4] sm:$0xf]
        %v376 = vld [vmem:[#allocation5 + $0x8] sm:$0xf]
        %v377 = vld [vmem:[#allocation5 + $0xc] sm:$0xf]
        %v378 = vld [vmem:[#allocation5 + $0x10] sm:$0xf]
        %v379 = vld [vmem:[#allocation5 + $0x14] sm:$0xf]
        %v380 = vld [vmem:[#allocation5 + $0x18] sm:$0xf]
        %v381 = vld [vmem:[#allocation5 + $0x1c] sm:$0xf]
        %v382 = vld [vmem:[#allocation5 + $0x20] sm:$0xf]
        %v383 = vld [vmem:[#allocation5 + $0x24] sm:$0xf]
        %v384 = vld [vmem:[#allocation5 + $0x28] sm:$0xf]
        %v385 = vld [vmem:[#allocation5 + $0x2c] sm:$0xf]
        %v386 = vld [vmem:[#allocation5 + $0x30] sm:$0xf]
        %v387 = vld [vmem:[#allocation5 + $0x34] sm:$0xf]
        %v388 = vld [vmem:[#allocation5 + $0x38] sm:$0xf]
        %v389 = vld [vmem:[#allocation5 + $0x3c] sm:$0xf]
        %v390 = vld [vmem:[%s2] sm:$0x1]
        %v392 = vlaneseq
        %v393 = vshrl.u32 %v392, 7
        %v394 = vsub.s32 0, %v393
        %v395 = vrot.slane %v390, %v394
        %v429 = vunpack.c.l.b16 %v342
        %v430 = vunpack.c.l.b16 %v343
        %v431 = vunpack.c.l.b16 %v344
        %v432 = vunpack.c.l.b16 %v345
        %v433 = vunpack.c.l.b16 %v346
        %v434 = vunpack.c.l.b16 %v347
        %v435 = vunpack.c.l.b16 %v348
        %v436 = vunpack.c.l.b16 %v349
        %v437 = vunpack.c.l.b16 %v350
        %v438 = vunpack.c.l.b16 %v351
        %v439 = vunpack.c.l.b16 %v352
        %v440 = vunpack.c.l.b16 %v353
        %v441 = vunpack.c.l.b16 %v354
        %v442 = vunpack.c.l.b16 %v355
        %v443 = vunpack.c.l.b16 %v356
        %v444 = vunpack.c.l.b16 %v357
        %v445 = vunpack.c.l.b16 %v358
        %v446 = vunpack.c.l.b16 %v359
        %v447 = vunpack.c.l.b16 %v360
        %v448 = vunpack.c.l.b16 %v361
        %v449 = vunpack.c.l.b16 %v362
        %v450 = vunpack.c.l.b16 %v363
        %v451 = vunpack.c.l.b16 %v364
        %v452 = vunpack.c.l.b16 %v365
        %v453 = vunpack.c.l.b16 %v366
        %v454 = vunpack.c.l.b16 %v367
        %v455 = vunpack.c.l.b16 %v368
        %v456 = vunpack.c.l.b16 %v369
        %v457 = vunpack.c.l.b16 %v370
        %v458 = vunpack.c.l.b16 %v371
        %v459 = vunpack.c.l.b16 %v372
        %v460 = vunpack.c.l.b16 %v373
        %v461 = vpack.c.b16 %v430, %v429
        %v462 = vpack.c.b16 %v432, %v431
        %v463 = vpack.c.b16 %v434, %v433
        %v464 = vpack.c.b16 %v436, %v435
        %v465 = vpack.c.b16 %v438, %v437
        %v466 = vpack.c.b16 %v440, %v439
        %v467 = vpack.c.b16 %v442, %v441
        %v468 = vpack.c.b16 %v444, %v443
        %v469 = vpack.c.b16 %v446, %v445
        %v470 = vpack.c.b16 %v448, %v447
        %v471 = vpack.c.b16 %v450, %v449
        %v472 = vpack.c.b16 %v452, %v451
        %v473 = vpack.c.b16 %v454, %v453
        %v474 = vpack.c.b16 %v456, %v455
        %v475 = vpack.c.b16 %v458, %v457
        %v476 = vpack.c.b16 %v460, %v459
        %v509 = vunpack.c.l.b16 %v374
        %v510 = vunpack.c.l.b16 %v375
        %v511 = vunpack.c.l.b16 %v376
        %v512 = vunpack.c.l.b16 %v377
        %v513 = vunpack.c.l.b16 %v378
        %v514 = vunpack.c.l.b16 %v379
        %v515 = vunpack.c.l.b16 %v380
        %v516 = vunpack.c.l.b16 %v381
        %v517 = vunpack.c.l.b16 %v382
        %v518 = vunpack.c.l.b16 %v383
        %v519 = vunpack.c.l.b16 %v384
        %v520 = vunpack.c.l.b16 %v385
        %v521 = vunpack.c.l.b16 %v386
        %v522 = vunpack.c.l.b16 %v387
        %v523 = vunpack.c.l.b16 %v388
        %v524 = vunpack.c.l.b16 %v389
        %v525 = vpack.c.b16 %v510, %v509
        %v526 = vpack.c.b16 %v512, %v511
        %v527 = vpack.c.b16 %v514, %v513
        %v528 = vpack.c.b16 %v516, %v515
        %v529 = vpack.c.b16 %v518, %v517
        %v530 = vpack.c.b16 %v520, %v519
        %v531 = vpack.c.b16 %v522, %v521
        %v532 = vpack.c.b16 %v524, %v523
        %541 = vmatprep.subr.bf16.mxu0 0
        %542 = vmatpush1.bf16.msra.mxu0 %v532
        %543 = vmatprep.subr.bf16.mxu0 0
        %544 = vmatpush1.bf16.msra.mxu0 %v531
        %545 = vmatprep.subr.bf16.mxu0 0
        %546 = vmatpush1.bf16.msra.mxu0 %v530
        %547 = vmatprep.subr.bf16.mxu0 0
        %548 = vmatpush1.bf16.msra.mxu0 %v529
        %549 = vmatprep.subr.bf16.mxu0 0
        %550 = vmatpush1.bf16.msra.mxu0 %v528
        %551 = vmatprep.subr.bf16.mxu0 0
        %552 = vmatpush1.bf16.msra.mxu0 %v527
        %553 = vmatprep.subr.bf16.mxu0 0
        %554 = vmatpush1.bf16.msra.mxu0 %v526
        %555 = vmatprep.subr.bf16.mxu0 0
        %556 = vmatpush1.bf16.msra.mxu0 %v525
        %557 = vmatprep.subr.bf16.mxu0 0
        %558 = vmatpush2.bf16.msra.mxu0 0
        %559 = vmatprep.subr.bf16.mxu0 0
        %560 = vmatpush2.bf16.msra.mxu0 0
        %561 = vmatprep.subr.bf16.mxu0 0
        %562 = vmatpush2.bf16.msra.mxu0 0
        %563 = vmatprep.subr.bf16.mxu0 0
        %564 = vmatpush2.bf16.msra.mxu0 0
        %565 = vmatprep.subr.bf16.mxu0 0
        %566 = vmatpush2.bf16.msra.mxu0 0
        %567 = vmatprep.subr.bf16.mxu0 0
        %568 = vmatpush2.bf16.msra.mxu0 0
        %569 = vmatprep.subr.bf16.mxu0 0
        %570 = vmatpush2.bf16.msra.mxu0 0
        %571 = vmatprep.subr.bf16.mxu0 0
        %572 = vmatpush2.bf16.msra.mxu0 0
        %573 = vmatprep.mubr.bf16.mxu0 0
        %574 = vmatmul.mubr.bf16.gmra.mxu0 %v461
        %v575 = vpop.f32.mrf.mxu0
        %v576 = vadd.f32 %v395, %v575
        %v577 = vpop.f32.mrf.mxu0
        %v578 = vpop.f32.mrf.mxu0
        %v579 = vadd.f32 %v395, %v578
        %v580 = vpop.f32.mrf.mxu0
        %581 = vmatprep.mubr.bf16.mxu0 0
        %582 = vmatmul.mubr.bf16.gmra.mxu0 %v462
        %v583 = vpop.f32.mrf.mxu0
        %v584 = vadd.f32 %v395, %v583
        %v585 = vpop.f32.mrf.mxu0
        %v586 = vpop.f32.mrf.mxu0
        %v587 = vadd.f32 %v395, %v586
        %v588 = vpop.f32.mrf.mxu0
        %589 = vmatprep.mubr.bf16.mxu0 0
        %590 = vmatmul.mubr.bf16.gmra.mxu0 %v463
        %v591 = vpop.f32.mrf.mxu0
        %v592 = vadd.f32 %v395, %v591
        %v593 = vpop.f32.mrf.mxu0
        %v594 = vpop.f32.mrf.mxu0
        %v595 = vadd.f32 %v395, %v594
        %v596 = vpop.f32.mrf.mxu0
        %597 = vmatprep.mubr.bf16.mxu0 0
        %598 = vmatmul.mubr.bf16.gmra.mxu0 %v464
        %v599 = vpop.f32.mrf.mxu0
        %v600 = vadd.f32 %v395, %v599
        %v601 = vpop.f32.mrf.mxu0
        %v602 = vpop.f32.mrf.mxu0
        %v603 = vadd.f32 %v395, %v602
        %v604 = vpop.f32.mrf.mxu0
        %605 = vmatprep.mubr.bf16.mxu0 0
        %606 = vmatmul.mubr.bf16.gmra.mxu0 %v465
        %v607 = vpop.f32.mrf.mxu0
        %v608 = vadd.f32 %v395, %v607
        %v609 = vpop.f32.mrf.mxu0
        %v610 = vpop.f32.mrf.mxu0
        %v611 = vadd.f32 %v395, %v610
        %v612 = vpop.f32.mrf.mxu0
        %613 = vmatprep.mubr.bf16.mxu0 0
        %614 = vmatmul.mubr.bf16.gmra.mxu0 %v466
        %v615 = vpop.f32.mrf.mxu0
        %v616 = vadd.f32 %v395, %v615
        %v617 = vpop.f32.mrf.mxu0
        %v618 = vpop.f32.mrf.mxu0
        %v619 = vadd.f32 %v395, %v618
        %v620 = vpop.f32.mrf.mxu0
        %621 = vmatprep.mubr.bf16.mxu0 0
        %622 = vmatmul.mubr.bf16.gmra.mxu0 %v467
        %v623 = vpop.f32.mrf.mxu0
        %v624 = vadd.f32 %v395, %v623
        %v625 = vpop.f32.mrf.mxu0
        %v626 = vpop.f32.mrf.mxu0
        %v627 = vadd.f32 %v395, %v626
        %v628 = vpop.f32.mrf.mxu0
        %629 = vmatprep.mubr.bf16.mxu0 0
        %630 = vmatmul.mubr.bf16.gmra.mxu0 %v468
        %v631 = vpop.f32.mrf.mxu0
        %v632 = vadd.f32 %v395, %v631
        %v633 = vpop.f32.mrf.mxu0
        %v634 = vpop.f32.mrf.mxu0
        %v635 = vadd.f32 %v395, %v634
        %v636 = vpop.f32.mrf.mxu0
        %637 = vmatprep.mubr.bf16.mxu0 0
        %638 = vmatmul.mubr.bf16.gmra.mxu0 %v469
        %v639 = vpop.f32.mrf.mxu0
        %v640 = vadd.f32 %v395, %v639
        %v641 = vpop.f32.mrf.mxu0
        %v642 = vpop.f32.mrf.mxu0
        %v643 = vadd.f32 %v395, %v642
        %v644 = vpop.f32.mrf.mxu0
        %645 = vmatprep.mubr.bf16.mxu0 0
        %646 = vmatmul.mubr.bf16.gmra.mxu0 %v470
        %v647 = vpop.f32.mrf.mxu0
        %v648 = vadd.f32 %v395, %v647
        %v649 = vpop.f32.mrf.mxu0
        %v650 = vpop.f32.mrf.mxu0
        %v651 = vadd.f32 %v395, %v650
        %v652 = vpop.f32.mrf.mxu0
        %653 = vmatprep.mubr.bf16.mxu0 0
        %654 = vmatmul.mubr.bf16.gmra.mxu0 %v471
        %v655 = vpop.f32.mrf.mxu0
        %v656 = vadd.f32 %v395, %v655
        %v657 = vpop.f32.mrf.mxu0
        %v658 = vpop.f32.mrf.mxu0
        %v659 = vadd.f32 %v395, %v658
        %v660 = vpop.f32.mrf.mxu0
        %661 = vmatprep.mubr.bf16.mxu0 0
        %662 = vmatmul.mubr.bf16.gmra.mxu0 %v472
        %v663 = vpop.f32.mrf.mxu0
        %v664 = vadd.f32 %v395, %v663
        %v665 = vpop.f32.mrf.mxu0
        %v666 = vpop.f32.mrf.mxu0
        %v667 = vadd.f32 %v395, %v666
        %v668 = vpop.f32.mrf.mxu0
        %669 = vmatprep.mubr.bf16.mxu0 0
        %670 = vmatmul.mubr.bf16.gmra.mxu0 %v473
        %v671 = vpop.f32.mrf.mxu0
        %v672 = vadd.f32 %v395, %v671
        %v673 = vpop.f32.mrf.mxu0
        %v674 = vpop.f32.mrf.mxu0
        %v675 = vadd.f32 %v395, %v674
        %v676 = vpop.f32.mrf.mxu0
        %677 = vmatprep.mubr.bf16.mxu0 0
        %678 = vmatmul.mubr.bf16.gmra.mxu0 %v474
        %v679 = vpop.f32.mrf.mxu0
        %v680 = vadd.f32 %v395, %v679
        %v681 = vpop.f32.mrf.mxu0
        %v682 = vpop.f32.mrf.mxu0
        %v683 = vadd.f32 %v395, %v682
        %v684 = vpop.f32.mrf.mxu0
        %685 = vmatprep.mubr.bf16.mxu0 0
        %686 = vmatmul.mubr.bf16.gmra.mxu0 %v475
        %v687 = vpop.f32.mrf.mxu0
        %v688 = vadd.f32 %v395, %v687
        %v689 = vpop.f32.mrf.mxu0
        %v690 = vpop.f32.mrf.mxu0
        %v691 = vadd.f32 %v395, %v690
        %v692 = vpop.f32.mrf.mxu0
        %693 = vmatprep.mubr.bf16.mxu0 0
        %694 = vmatmul.mubr.bf16.gmra.mxu0 %v476
        %v695 = vpop.f32.mrf.mxu0
        %v696 = vadd.f32 %v395, %v695
        %v697 = vpop.f32.mrf.mxu0
        %v698 = vpop.f32.mrf.mxu0
        %v699 = vadd.f32 %v395, %v698
        %v700 = vpop.f32.mrf.mxu0
        %701 = vdwg.mxu0
        %v702 = vmax.f32 %v576, 0.0
        %v703 = vmax.f32 %v579, 0.0
        %v704 = vmax.f32 %v584, 0.0
        %v705 = vmax.f32 %v587, 0.0
        %v706 = vmax.f32 %v592, 0.0
        %v707 = vmax.f32 %v595, 0.0
        %v708 = vmax.f32 %v600, 0.0
        %v709 = vmax.f32 %v603, 0.0
        %v710 = vmax.f32 %v608, 0.0
        %v711 = vmax.f32 %v611, 0.0
        %v712 = vmax.f32 %v616, 0.0
        %v713 = vmax.f32 %v619, 0.0
        %v714 = vmax.f32 %v624, 0.0
        %v715 = vmax.f32 %v627, 0.0
        %v716 = vmax.f32 %v632, 0.0
        %v717 = vmax.f32 %v635, 0.0
        %v718 = vmax.f32 %v640, 0.0
        %v719 = vmax.f32 %v643, 0.0
        %v720 = vmax.f32 %v648, 0.0
        %v721 = vmax.f32 %v651, 0.0
        %v722 = vmax.f32 %v656, 0.0
        %v723 = vmax.f32 %v659, 0.0
        %v724 = vmax.f32 %v664, 0.0
        %v725 = vmax.f32 %v667, 0.0
        %v726 = vmax.f32 %v672, 0.0
        %v727 = vmax.f32 %v675, 0.0
        %v728 = vmax.f32 %v680, 0.0
        %v729 = vmax.f32 %v683, 0.0
        %v730 = vmax.f32 %v688, 0.0
        %v731 = vmax.f32 %v691, 0.0
        %v732 = vmax.f32 %v696, 0.0
        %v733 = vmax.f32 %v699, 0.0
        %v734 = vlaneseq
        %v735 = vshrl.u32 %v734, 7
        %v736 = vadd.s32 %v735, 8
        %v737 = vadd.s32 %v735, 16
        %v738 = vadd.s32 %v735, 24
        %v739 = vadd.s32 %v735, 32
        %v740 = vadd.s32 %v735, 40
        %v741 = vadd.s32 %v735, 48
        %v742 = vadd.s32 %v735, 56
        %v743 = vadd.s32 %v735, 64
        %v744 = vadd.s32 %v735, 72
        %v745 = vadd.s32 %v735, 80
        %v746 = vadd.s32 %v735, 88
        %v747 = vadd.s32 %v735, 96
        %v748 = vadd.s32 %v735, 104
        %v749 = vadd.s32 %v735, 112
        %v750 = vadd.s32 %v735, 120
        %v751 = vadd.s32 %v735, 128
        %v752 = vadd.s32 %v735, 136
        %v753 = vadd.s32 %v735, 144
        %v754 = vadd.s32 %v735, 152
        %v755 = vadd.s32 %v735, 160
        %v756 = vadd.s32 %v735, 168
        %v757 = vadd.s32 %v735, 176
        %v758 = vadd.s32 %v735, 184
        %v759 = vadd.s32 %v735, 192
        %v760 = vadd.s32 %v735, 200
        %v761 = vadd.s32 %v735, 208
        %v762 = vadd.s32 %v735, 216
        %v763 = vadd.s32 %v735, 224
        %v764 = vadd.s32 %v735, 232
        %v765 = vadd.s32 %v735, 240
        %v766 = vadd.s32 %v735, 248
        %vm767 = vcmp.lt.s32.totalorder %v735, 0
        %v768 = vsub.s32 0, %v735
        %v769 = vsel %vm767, %v768, %v735
        %v770 = vshrl.u32 %v769, 4
        %v771 = vand.u32 %v769, 15
        %v772 = vsub.s32 0, %v771
        %v773 = vsel %vm767, %v772, %v771
        %vm774 = vcmp.lt.s32.totalorder %v736, 0
        %v775 = vsub.s32 0, %v736
        %v776 = vsel %vm774, %v775, %v736
        %v777 = vshrl.u32 %v776, 4
        %v778 = vand.u32 %v776, 15
        %v779 = vsub.s32 0, %v778
        %v780 = vsel %vm774, %v779, %v778
        %vm781 = vcmp.lt.s32.totalorder %v737, 0
        %v782 = vsub.s32 0, %v737
        %v783 = vsel %vm781, %v782, %v737
        %v784 = vshrl.u32 %v783, 4
        %v785 = vand.u32 %v783, 15
        %v786 = vsub.s32 0, %v785
        %v787 = vsel %vm781, %v786, %v785
        %vm788 = vcmp.lt.s32.totalorder %v738, 0
        %v789 = vsub.s32 0, %v738
        %v790 = vsel %vm788, %v789, %v738
        %v791 = vshrl.u32 %v790, 4
        %v792 = vand.u32 %v790, 15
        %v793 = vsub.s32 0, %v792
        %v794 = vsel %vm788, %v793, %v792
        %vm795 = vcmp.lt.s32.totalorder %v739, 0
        %v796 = vsub.s32 0, %v739
        %v797 = vsel %vm795, %v796, %v739
        %v798 = vshrl.u32 %v797, 4
        %v799 = vand.u32 %v797, 15
        %v800 = vsub.s32 0, %v799
        %v801 = vsel %vm795, %v800, %v799
        %vm802 = vcmp.lt.s32.totalorder %v740, 0
        %v803 = vsub.s32 0, %v740
        %v804 = vsel %vm802, %v803, %v740
        %v805 = vshrl.u32 %v804, 4
        %v806 = vand.u32 %v804, 15
        %v807 = vsub.s32 0, %v806
        %v808 = vsel %vm802, %v807, %v806
        %vm809 = vcmp.lt.s32.totalorder %v741, 0
        %v810 = vsub.s32 0, %v741
        %v811 = vsel %vm809, %v810, %v741
        %v812 = vshrl.u32 %v811, 4
        %v813 = vand.u32 %v811, 15
        %v814 = vsub.s32 0, %v813
        %v815 = vsel %vm809, %v814, %v813
        %vm816 = vcmp.lt.s32.totalorder %v742, 0
        %v817 = vsub.s32 0, %v742
        %v818 = vsel %vm816, %v817, %v742
        %v819 = vshrl.u32 %v818, 4
        %v820 = vand.u32 %v818, 15
        %v821 = vsub.s32 0, %v820
        %v822 = vsel %vm816, %v821, %v820
        %vm823 = vcmp.lt.s32.totalorder %v743, 0
        %v824 = vsub.s32 0, %v743
        %v825 = vsel %vm823, %v824, %v743
        %v826 = vshrl.u32 %v825, 4
        %v827 = vand.u32 %v825, 15
        %v828 = vsub.s32 0, %v827
        %v829 = vsel %vm823, %v828, %v827
        %vm830 = vcmp.lt.s32.totalorder %v744, 0
        %v831 = vsub.s32 0, %v744
        %v832 = vsel %vm830, %v831, %v744
        %v833 = vshrl.u32 %v832, 4
        %v834 = vand.u32 %v832, 15
        %v835 = vsub.s32 0, %v834
        %v836 = vsel %vm830, %v835, %v834
        %vm837 = vcmp.lt.s32.totalorder %v745, 0
        %v838 = vsub.s32 0, %v745
        %v839 = vsel %vm837, %v838, %v745
        %v840 = vshrl.u32 %v839, 4
        %v841 = vand.u32 %v839, 15
        %v842 = vsub.s32 0, %v841
        %v843 = vsel %vm837, %v842, %v841
        %vm844 = vcmp.lt.s32.totalorder %v746, 0
        %v845 = vsub.s32 0, %v746
        %v846 = vsel %vm844, %v845, %v746
        %v847 = vshrl.u32 %v846, 4
        %v848 = vand.u32 %v846, 15
        %v849 = vsub.s32 0, %v848
        %v850 = vsel %vm844, %v849, %v848
        %vm851 = vcmp.lt.s32.totalorder %v747, 0
        %v852 = vsub.s32 0, %v747
        %v853 = vsel %vm851, %v852, %v747
        %v854 = vshrl.u32 %v853, 4
        %v855 = vand.u32 %v853, 15
        %v856 = vsub.s32 0, %v855
        %v857 = vsel %vm851, %v856, %v855
        %vm858 = vcmp.lt.s32.totalorder %v748, 0
        %v859 = vsub.s32 0, %v748
        %v860 = vsel %vm858, %v859, %v748
        %v861 = vshrl.u32 %v860, 4
        %v862 = vand.u32 %v860, 15
        %v863 = vsub.s32 0, %v862
        %v864 = vsel %vm858, %v863, %v862
        %vm865 = vcmp.lt.s32.totalorder %v749, 0
        %v866 = vsub.s32 0, %v749
        %v867 = vsel %vm865, %v866, %v749
        %v868 = vshrl.u32 %v867, 4
        %v869 = vand.u32 %v867, 15
        %v870 = vsub.s32 0, %v869
        %v871 = vsel %vm865, %v870, %v869
        %vm872 = vcmp.lt.s32.totalorder %v750, 0
        %v873 = vsub.s32 0, %v750
        %v874 = vsel %vm872, %v873, %v750
        %v875 = vshrl.u32 %v874, 4
        %v876 = vand.u32 %v874, 15
        %v877 = vsub.s32 0, %v876
        %v878 = vsel %vm872, %v877, %v876
        %vm879 = vcmp.lt.s32.totalorder %v751, 0
        %v880 = vsub.s32 0, %v751
        %v881 = vsel %vm879, %v880, %v751
        %v882 = vshrl.u32 %v881, 4
        %v883 = vand.u32 %v881, 15
        %v884 = vsub.s32 0, %v883
        %v885 = vsel %vm879, %v884, %v883
        %vm886 = vcmp.lt.s32.totalorder %v752, 0
        %v887 = vsub.s32 0, %v752
        %v888 = vsel %vm886, %v887, %v752
        %v889 = vshrl.u32 %v888, 4
        %v890 = vand.u32 %v888, 15
        %v891 = vsub.s32 0, %v890
        %v892 = vsel %vm886, %v891, %v890
        %vm893 = vcmp.lt.s32.totalorder %v753, 0
        %v894 = vsub.s32 0, %v753
        %v895 = vsel %vm893, %v894, %v753
        %v896 = vshrl.u32 %v895, 4
        %v897 = vand.u32 %v895, 15
        %v898 = vsub.s32 0, %v897
        %v899 = vsel %vm893, %v898, %v897
        %vm900 = vcmp.lt.s32.totalorder %v754, 0
        %v901 = vsub.s32 0, %v754
        %v902 = vsel %vm900, %v901, %v754
        %v903 = vshrl.u32 %v902, 4
        %v904 = vand.u32 %v902, 15
        %v905 = vsub.s32 0, %v904
        %v906 = vsel %vm900, %v905, %v904
        %vm907 = vcmp.lt.s32.totalorder %v755, 0
        %v908 = vsub.s32 0, %v755
        %v909 = vsel %vm907, %v908, %v755
        %v910 = vshrl.u32 %v909, 4
        %v911 = vand.u32 %v909, 15
        %v912 = vsub.s32 0, %v911
        %v913 = vsel %vm907, %v912, %v911
        %vm914 = vcmp.lt.s32.totalorder %v756, 0
        %v915 = vsub.s32 0, %v756
        %v916 = vsel %vm914, %v915, %v756
        %v917 = vshrl.u32 %v916, 4
        %v918 = vand.u32 %v916, 15
        %v919 = vsub.s32 0, %v918
        %v920 = vsel %vm914, %v919, %v918
        %vm921 = vcmp.lt.s32.totalorder %v757, 0
        %v922 = vsub.s32 0, %v757
        %v923 = vsel %vm921, %v922, %v757
        %v924 = vshrl.u32 %v923, 4
        %v925 = vand.u32 %v923, 15
        %v926 = vsub.s32 0, %v925
        %v927 = vsel %vm921, %v926, %v925
        %vm928 = vcmp.lt.s32.totalorder %v758, 0
        %v929 = vsub.s32 0, %v758
        %v930 = vsel %vm928, %v929, %v758
        %v931 = vshrl.u32 %v930, 4
        %v932 = vand.u32 %v930, 15
        %v933 = vsub.s32 0, %v932
        %v934 = vsel %vm928, %v933, %v932
        %vm935 = vcmp.lt.s32.totalorder %v759, 0
        %v936 = vsub.s32 0, %v759
        %v937 = vsel %vm935, %v936, %v759
        %v938 = vshrl.u32 %v937, 4
        %v939 = vand.u32 %v937, 15
        %v940 = vsub.s32 0, %v939
        %v941 = vsel %vm935, %v940, %v939
        %vm942 = vcmp.lt.s32.totalorder %v760, 0
        %v943 = vsub.s32 0, %v760
        %v944 = vsel %vm942, %v943, %v760
        %v945 = vshrl.u32 %v944, 4
        %v946 = vand.u32 %v944, 15
        %v947 = vsub.s32 0, %v946
        %v948 = vsel %vm942, %v947, %v946
        %vm949 = vcmp.lt.s32.totalorder %v761, 0
        %v950 = vsub.s32 0, %v761
        %v951 = vsel %vm949, %v950, %v761
        %v952 = vshrl.u32 %v951, 4
        %v953 = vand.u32 %v951, 15
        %v954 = vsub.s32 0, %v953
        %v955 = vsel %vm949, %v954, %v953
        %vm956 = vcmp.lt.s32.totalorder %v762, 0
        %v957 = vsub.s32 0, %v762
        %v958 = vsel %vm956, %v957, %v762
        %v959 = vshrl.u32 %v958, 4
        %v960 = vand.u32 %v958, 15
        %v961 = vsub.s32 0, %v960
        %v962 = vsel %vm956, %v961, %v960
        %vm963 = vcmp.lt.s32.totalorder %v763, 0
        %v964 = vsub.s32 0, %v763
        %v965 = vsel %vm963, %v964, %v763
        %v966 = vshrl.u32 %v965, 4
        %v967 = vand.u32 %v965, 15
        %v968 = vsub.s32 0, %v967
        %v969 = vsel %vm963, %v968, %v967
        %vm970 = vcmp.lt.s32.totalorder %v764, 0
        %v971 = vsub.s32 0, %v764
        %v972 = vsel %vm970, %v971, %v764
        %v973 = vshrl.u32 %v972, 4
        %v974 = vand.u32 %v972, 15
        %v975 = vsub.s32 0, %v974
        %v976 = vsel %vm970, %v975, %v974
        %vm977 = vcmp.lt.s32.totalorder %v765, 0
        %v978 = vsub.s32 0, %v765
        %v979 = vsel %vm977, %v978, %v765
        %v980 = vshrl.u32 %v979, 4
        %v981 = vand.u32 %v979, 15
        %v982 = vsub.s32 0, %v981
        %v983 = vsel %vm977, %v982, %v981
        %vm984 = vcmp.lt.s32.totalorder %v766, 0
        %v985 = vsub.s32 0, %v766
        %v986 = vsel %vm984, %v985, %v766
        %v987 = vshrl.u32 %v986, 4
        %v988 = vand.u32 %v986, 15
        %v989 = vsub.s32 0, %v988
        %v990 = vsel %vm984, %v989, %v988
        %vm991 = vcmp.ne.s32.totalorder %v773, 0
        %vm992 = vcmp.ne.s32.totalorder %v780, 0
        %vm993 = vcmp.ne.s32.totalorder %v787, 0
        %vm994 = vcmp.ne.s32.totalorder %v794, 0
        %vm995 = vcmp.ne.s32.totalorder %v801, 0
        %vm996 = vcmp.ne.s32.totalorder %v808, 0
        %vm997 = vcmp.ne.s32.totalorder %v815, 0
        %vm998 = vcmp.ne.s32.totalorder %v822, 0
        %vm999 = vcmp.ne.s32.totalorder %v829, 0
        %vm1000 = vcmp.ne.s32.totalorder %v836, 0
        %vm1001 = vcmp.ne.s32.totalorder %v843, 0
        %vm1002 = vcmp.ne.s32.totalorder %v850, 0
        %vm1003 = vcmp.ne.s32.totalorder %v857, 0
        %vm1004 = vcmp.ne.s32.totalorder %v864, 0
        %vm1005 = vcmp.ne.s32.totalorder %v871, 0
        %vm1006 = vcmp.ne.s32.totalorder %v878, 0
        %vm1007 = vcmp.ne.s32.totalorder %v885, 0
        %vm1008 = vcmp.ne.s32.totalorder %v892, 0
        %vm1009 = vcmp.ne.s32.totalorder %v899, 0
        %vm1010 = vcmp.ne.s32.totalorder %v906, 0
        %vm1011 = vcmp.ne.s32.totalorder %v913, 0
        %vm1012 = vcmp.ne.s32.totalorder %v920, 0
        %vm1013 = vcmp.ne.s32.totalorder %v927, 0
        %vm1014 = vcmp.ne.s32.totalorder %v934, 0
        %vm1015 = vcmp.ne.s32.totalorder %v941, 0
        %vm1016 = vcmp.ne.s32.totalorder %v948, 0
        %vm1017 = vcmp.ne.s32.totalorder %v955, 0
        %vm1018 = vcmp.ne.s32.totalorder %v962, 0
        %vm1019 = vcmp.ne.s32.totalorder %v969, 0
        %vm1020 = vcmp.ne.s32.totalorder %v976, 0
        %vm1021 = vcmp.ne.s32.totalorder %v983, 0
        %vm1022 = vcmp.ne.s32.totalorder %v990, 0
        %vm1023 = vcmp.lt.s32.totalorder %v773, 0
        %vm1024 = vcmp.lt.s32.totalorder %v780, 0
        %vm1025 = vcmp.lt.s32.totalorder %v787, 0
        %vm1026 = vcmp.lt.s32.totalorder %v794, 0
        %vm1027 = vcmp.lt.s32.totalorder %v801, 0
        %vm1028 = vcmp.lt.s32.totalorder %v808, 0
        %vm1029 = vcmp.lt.s32.totalorder %v815, 0
        %vm1030 = vcmp.lt.s32.totalorder %v822, 0
        %vm1031 = vcmp.lt.s32.totalorder %v829, 0
        %vm1032 = vcmp.lt.s32.totalorder %v836, 0
        %vm1033 = vcmp.lt.s32.totalorder %v843, 0
        %vm1034 = vcmp.lt.s32.totalorder %v850, 0
        %vm1035 = vcmp.lt.s32.totalorder %v857, 0
        %vm1036 = vcmp.lt.s32.totalorder %v864, 0
        %vm1037 = vcmp.lt.s32.totalorder %v871, 0
        %vm1038 = vcmp.lt.s32.totalorder %v878, 0
        %vm1039 = vcmp.lt.s32.totalorder %v885, 0
        %vm1040 = vcmp.lt.s32.totalorder %v892, 0
        %vm1041 = vcmp.lt.s32.totalorder %v899, 0
        %vm1042 = vcmp.lt.s32.totalorder %v906, 0
        %vm1043 = vcmp.lt.s32.totalorder %v913, 0
        %vm1044 = vcmp.lt.s32.totalorder %v920, 0
        %vm1045 = vcmp.lt.s32.totalorder %v927, 0
        %vm1046 = vcmp.lt.s32.totalorder %v934, 0
        %vm1047 = vcmp.lt.s32.totalorder %v941, 0
        %vm1048 = vcmp.lt.s32.totalorder %v948, 0
        %vm1049 = vcmp.lt.s32.totalorder %v955, 0
        %vm1050 = vcmp.lt.s32.totalorder %v962, 0
        %vm1051 = vcmp.lt.s32.totalorder %v969, 0
        %vm1052 = vcmp.lt.s32.totalorder %v976, 0
        %vm1053 = vcmp.lt.s32.totalorder %v983, 0
        %vm1054 = vcmp.lt.s32.totalorder %v990, 0
        %vm1055 = vmand %vm1023, %vm991
        %vm1056 = vmand %vm1024, %vm992
        %vm1057 = vmand %vm1025, %vm993
        %vm1058 = vmand %vm1026, %vm994
        %vm1059 = vmand %vm1027, %vm995
        %vm1060 = vmand %vm1028, %vm996
        %vm1061 = vmand %vm1029, %vm997
        %vm1062 = vmand %vm1030, %vm998
        %vm1063 = vmand %vm1031, %vm999
        %vm1064 = vmand %vm1032, %vm1000
        %vm1065 = vmand %vm1033, %vm1001
        %vm1066 = vmand %vm1034, %vm1002
        %vm1067 = vmand %vm1035, %vm1003
        %vm1068 = vmand %vm1036, %vm1004
        %vm1069 = vmand %vm1037, %vm1005
        %vm1070 = vmand %vm1038, %vm1006
        %vm1071 = vmand %vm1039, %vm1007
        %vm1072 = vmand %vm1040, %vm1008
        %vm1073 = vmand %vm1041, %vm1009
        %vm1074 = vmand %vm1042, %vm1010
        %vm1075 = vmand %vm1043, %vm1011
        %vm1076 = vmand %vm1044, %vm1012
        %vm1077 = vmand %vm1045, %vm1013
        %vm1078 = vmand %vm1046, %vm1014
        %vm1079 = vmand %vm1047, %vm1015
        %vm1080 = vmand %vm1048, %vm1016
        %vm1081 = vmand %vm1049, %vm1017
        %vm1082 = vmand %vm1050, %vm1018
        %vm1083 = vmand %vm1051, %vm1019
        %vm1084 = vmand %vm1052, %vm1020
        %vm1085 = vmand %vm1053, %vm1021
        %vm1086 = vmand %vm1054, %vm1022
        %v1087 = vadd.s32 %v773, 16
        %v1088 = vadd.s32 %v780, 16
        %v1089 = vadd.s32 %v787, 16
        %v1090 = vadd.s32 %v794, 16
        %v1091 = vadd.s32 %v801, 16
        %v1092 = vadd.s32 %v808, 16
        %v1093 = vadd.s32 %v815, 16
        %v1094 = vadd.s32 %v822, 16
        %v1095 = vadd.s32 %v829, 16
        %v1096 = vadd.s32 %v836, 16
        %v1097 = vadd.s32 %v843, 16
        %v1098 = vadd.s32 %v850, 16
        %v1099 = vadd.s32 %v857, 16
        %v1100 = vadd.s32 %v864, 16
        %v1101 = vadd.s32 %v871, 16
        %v1102 = vadd.s32 %v878, 16
        %v1103 = vadd.s32 %v885, 16
        %v1104 = vadd.s32 %v892, 16
        %v1105 = vadd.s32 %v899, 16
        %v1106 = vadd.s32 %v906, 16
        %v1107 = vadd.s32 %v913, 16
        %v1108 = vadd.s32 %v920, 16
        %v1109 = vadd.s32 %v927, 16
        %v1110 = vadd.s32 %v934, 16
        %v1111 = vadd.s32 %v941, 16
        %v1112 = vadd.s32 %v948, 16
        %v1113 = vadd.s32 %v955, 16
        %v1114 = vadd.s32 %v962, 16
        %v1115 = vadd.s32 %v969, 16
        %v1116 = vadd.s32 %v976, 16
        %v1117 = vadd.s32 %v983, 16
        %v1118 = vadd.s32 %v990, 16
        %v1119 = vsel %vm1055, %v1087, %v773
        %v1120 = vsel %vm1056, %v1088, %v780
        %v1121 = vsel %vm1057, %v1089, %v787
        %v1122 = vsel %vm1058, %v1090, %v794
        %v1123 = vsel %vm1059, %v1091, %v801
        %v1124 = vsel %vm1060, %v1092, %v808
        %v1125 = vsel %vm1061, %v1093, %v815
        %v1126 = vsel %vm1062, %v1094, %v822
        %v1127 = vsel %vm1063, %v1095, %v829
        %v1128 = vsel %vm1064, %v1096, %v836
        %v1129 = vsel %vm1065, %v1097, %v843
        %v1130 = vsel %vm1066, %v1098, %v850
        %v1131 = vsel %vm1067, %v1099, %v857
        %v1132 = vsel %vm1068, %v1100, %v864
        %v1133 = vsel %vm1069, %v1101, %v871
        %v1134 = vsel %vm1070, %v1102, %v878
        %v1135 = vsel %vm1071, %v1103, %v885
        %v1136 = vsel %vm1072, %v1104, %v892
        %v1137 = vsel %vm1073, %v1105, %v899
        %v1138 = vsel %vm1074, %v1106, %v906
        %v1139 = vsel %vm1075, %v1107, %v913
        %v1140 = vsel %vm1076, %v1108, %v920
        %v1141 = vsel %vm1077, %v1109, %v927
        %v1142 = vsel %vm1078, %v1110, %v934
        %v1143 = vsel %vm1079, %v1111, %v941
        %v1144 = vsel %vm1080, %v1112, %v948
        %v1145 = vsel %vm1081, %v1113, %v955
        %v1146 = vsel %vm1082, %v1114, %v962
        %v1147 = vsel %vm1083, %v1115, %v969
        %v1148 = vsel %vm1084, %v1116, %v976
        %v1149 = vsel %vm1085, %v1117, %v983
        %v1150 = vsel %vm1086, %v1118, %v990
        %vm1151 = vcmp.ge.s32.totalorder %v735, 16
        %vm1152 = vcmp.ge.s32.totalorder %v736, 16
        %vm1153 = vcmp.ge.s32.totalorder %v737, 16
        %vm1154 = vcmp.ge.s32.totalorder %v738, 16
        %vm1155 = vcmp.ge.s32.totalorder %v739, 16
        %vm1156 = vcmp.ge.s32.totalorder %v740, 16
        %vm1157 = vcmp.ge.s32.totalorder %v741, 16
        %vm1158 = vcmp.ge.s32.totalorder %v742, 16
        %vm1159 = vcmp.ge.s32.totalorder %v743, 16
        %vm1160 = vcmp.ge.s32.totalorder %v744, 16
        %vm1161 = vcmp.ge.s32.totalorder %v745, 16
        %vm1162 = vcmp.ge.s32.totalorder %v746, 16
        %vm1163 = vcmp.ge.s32.totalorder %v747, 16
        %vm1164 = vcmp.ge.s32.totalorder %v748, 16
        %vm1165 = vcmp.ge.s32.totalorder %v749, 16
        %vm1166 = vcmp.ge.s32.totalorder %v750, 16
        %vm1167 = vcmp.ge.s32.totalorder %v751, 16
        %vm1168 = vcmp.ge.s32.totalorder %v752, 16
        %vm1169 = vcmp.ge.s32.totalorder %v753, 16
        %vm1170 = vcmp.ge.s32.totalorder %v754, 16
        %vm1171 = vcmp.ge.s32.totalorder %v755, 16
        %vm1172 = vcmp.ge.s32.totalorder %v756, 16
        %vm1173 = vcmp.ge.s32.totalorder %v757, 16
        %vm1174 = vcmp.ge.s32.totalorder %v758, 16
        %vm1175 = vcmp.ge.s32.totalorder %v759, 16
        %vm1176 = vcmp.ge.s32.totalorder %v760, 16
        %vm1177 = vcmp.ge.s32.totalorder %v761, 16
        %vm1178 = vcmp.ge.s32.totalorder %v762, 16
        %vm1179 = vcmp.ge.s32.totalorder %v763, 16
        %vm1180 = vcmp.ge.s32.totalorder %v764, 16
        %vm1181 = vcmp.ge.s32.totalorder %v765, 16
        %vm1182 = vcmp.ge.s32.totalorder %v766, 16
        %vm1183 = vcmp.lt.s32.totalorder %v735, 240
        %vm1184 = vcmp.lt.s32.totalorder %v736, 240
        %vm1185 = vcmp.lt.s32.totalorder %v737, 240
        %vm1186 = vcmp.lt.s32.totalorder %v738, 240
        %vm1187 = vcmp.lt.s32.totalorder %v739, 240
        %vm1188 = vcmp.lt.s32.totalorder %v740, 240
        %vm1189 = vcmp.lt.s32.totalorder %v741, 240
        %vm1190 = vcmp.lt.s32.totalorder %v742, 240
        %vm1191 = vcmp.lt.s32.totalorder %v743, 240
        %vm1192 = vcmp.lt.s32.totalorder %v744, 240
        %vm1193 = vcmp.lt.s32.totalorder %v745, 240
        %vm1194 = vcmp.lt.s32.totalorder %v746, 240
        %vm1195 = vcmp.lt.s32.totalorder %v747, 240
        %vm1196 = vcmp.lt.s32.totalorder %v748, 240
        %vm1197 = vcmp.lt.s32.totalorder %v749, 240
        %vm1198 = vcmp.lt.s32.totalorder %v750, 240
        %vm1199 = vcmp.lt.s32.totalorder %v751, 240
        %vm1200 = vcmp.lt.s32.totalorder %v752, 240
        %vm1201 = vcmp.lt.s32.totalorder %v753, 240
        %vm1202 = vcmp.lt.s32.totalorder %v754, 240
        %vm1203 = vcmp.lt.s32.totalorder %v755, 240
        %vm1204 = vcmp.lt.s32.totalorder %v756, 240
        %vm1205 = vcmp.lt.s32.totalorder %v757, 240
        %vm1206 = vcmp.lt.s32.totalorder %v758, 240
        %vm1207 = vcmp.lt.s32.totalorder %v759, 240
        %vm1208 = vcmp.lt.s32.totalorder %v760, 240
        %vm1209 = vcmp.lt.s32.totalorder %v761, 240
        %vm1210 = vcmp.lt.s32.totalorder %v762, 240
        %vm1211 = vcmp.lt.s32.totalorder %v763, 240
        %vm1212 = vcmp.lt.s32.totalorder %v764, 240
        %vm1213 = vcmp.lt.s32.totalorder %v765, 240
        %vm1214 = vcmp.lt.s32.totalorder %v766, 240
        %vm1215 = vcmp.ge.s32.totalorder %v1119, 1
        %vm1216 = vcmp.ge.s32.totalorder %v1120, 1
        %vm1217 = vcmp.ge.s32.totalorder %v1121, 1
        %vm1218 = vcmp.ge.s32.totalorder %v1122, 1
        %vm1219 = vcmp.ge.s32.totalorder %v1123, 1
        %vm1220 = vcmp.ge.s32.totalorder %v1124, 1
        %vm1221 = vcmp.ge.s32.totalorder %v1125, 1
        %vm1222 = vcmp.ge.s32.totalorder %v1126, 1
        %vm1223 = vcmp.ge.s32.totalorder %v1127, 1
        %vm1224 = vcmp.ge.s32.totalorder %v1128, 1
        %vm1225 = vcmp.ge.s32.totalorder %v1129, 1
        %vm1226 = vcmp.ge.s32.totalorder %v1130, 1
        %vm1227 = vcmp.ge.s32.totalorder %v1131, 1
        %vm1228 = vcmp.ge.s32.totalorder %v1132, 1
        %vm1229 = vcmp.ge.s32.totalorder %v1133, 1
        %vm1230 = vcmp.ge.s32.totalorder %v1134, 1
        %vm1231 = vcmp.ge.s32.totalorder %v1135, 1
        %vm1232 = vcmp.ge.s32.totalorder %v1136, 1
        %vm1233 = vcmp.ge.s32.totalorder %v1137, 1
        %vm1234 = vcmp.ge.s32.totalorder %v1138, 1
        %vm1235 = vcmp.ge.s32.totalorder %v1139, 1
        %vm1236 = vcmp.ge.s32.totalorder %v1140, 1
        %vm1237 = vcmp.ge.s32.totalorder %v1141, 1
        %vm1238 = vcmp.ge.s32.totalorder %v1142, 1
        %vm1239 = vcmp.ge.s32.totalorder %v1143, 1
        %vm1240 = vcmp.ge.s32.totalorder %v1144, 1
        %vm1241 = vcmp.ge.s32.totalorder %v1145, 1
        %vm1242 = vcmp.ge.s32.totalorder %v1146, 1
        %vm1243 = vcmp.ge.s32.totalorder %v1147, 1
        %vm1244 = vcmp.ge.s32.totalorder %v1148, 1
        %vm1245 = vcmp.ge.s32.totalorder %v1149, 1
        %vm1246 = vcmp.ge.s32.totalorder %v1150, 1
        %vm1247 = vcmp.lt.s32.totalorder %v1119, 15
        %vm1248 = vcmp.lt.s32.totalorder %v1120, 15
        %vm1249 = vcmp.lt.s32.totalorder %v1121, 15
        %vm1250 = vcmp.lt.s32.totalorder %v1122, 15
        %vm1251 = vcmp.lt.s32.totalorder %v1123, 15
        %vm1252 = vcmp.lt.s32.totalorder %v1124, 15
        %vm1253 = vcmp.lt.s32.totalorder %v1125, 15
        %vm1254 = vcmp.lt.s32.totalorder %v1126, 15
        %vm1255 = vcmp.lt.s32.totalorder %v1127, 15
        %vm1256 = vcmp.lt.s32.totalorder %v1128, 15
        %vm1257 = vcmp.lt.s32.totalorder %v1129, 15
        %vm1258 = vcmp.lt.s32.totalorder %v1130, 15
        %vm1259 = vcmp.lt.s32.totalorder %v1131, 15
        %vm1260 = vcmp.lt.s32.totalorder %v1132, 15
        %vm1261 = vcmp.lt.s32.totalorder %v1133, 15
        %vm1262 = vcmp.lt.s32.totalorder %v1134, 15
        %vm1263 = vcmp.lt.s32.totalorder %v1135, 15
        %vm1264 = vcmp.lt.s32.totalorder %v1136, 15
        %vm1265 = vcmp.lt.s32.totalorder %v1137, 15
        %vm1266 = vcmp.lt.s32.totalorder %v1138, 15
        %vm1267 = vcmp.lt.s32.totalorder %v1139, 15
        %vm1268 = vcmp.lt.s32.totalorder %v1140, 15
        %vm1269 = vcmp.lt.s32.totalorder %v1141, 15
        %vm1270 = vcmp.lt.s32.totalorder %v1142, 15
        %vm1271 = vcmp.lt.s32.totalorder %v1143, 15
        %vm1272 = vcmp.lt.s32.totalorder %v1144, 15
        %vm1273 = vcmp.lt.s32.totalorder %v1145, 15
        %vm1274 = vcmp.lt.s32.totalorder %v1146, 15
        %vm1275 = vcmp.lt.s32.totalorder %v1147, 15
        %vm1276 = vcmp.lt.s32.totalorder %v1148, 15
        %vm1277 = vcmp.lt.s32.totalorder %v1149, 15
        %vm1278 = vcmp.lt.s32.totalorder %v1150, 15
        %v1279 = vpack.c.bf16 %v703, %v702
        %v1280 = vpack.c.bf16 %v705, %v704
        %v1281 = vpack.c.bf16 %v707, %v706
        %v1282 = vpack.c.bf16 %v709, %v708
        %v1283 = vpack.c.bf16 %v711, %v710
        %v1284 = vpack.c.bf16 %v713, %v712
        %v1285 = vpack.c.bf16 %v715, %v714
        %v1286 = vpack.c.bf16 %v717, %v716
        %v1287 = vpack.c.bf16 %v719, %v718
        %v1288 = vpack.c.bf16 %v721, %v720
        %v1289 = vpack.c.bf16 %v723, %v722
        %v1290 = vpack.c.bf16 %v725, %v724
        %v1291 = vpack.c.bf16 %v727, %v726
        %v1292 = vpack.c.bf16 %v729, %v728
        %v1293 = vpack.c.bf16 %v731, %v730
        %v1294 = vpack.c.bf16 %v733, %v732
        %s1295 = scalar_lea.vmem [#allocation7], 256
        %v1296 = vld [vmem:[%s1295] sm:$0xf]
        %v1297 = vld [vmem:[%s1295 + $0x4] sm:$0xf]
        %v1298 = vld [vmem:[%s1295 + $0x8] sm:$0xf]
        %v1299 = vld [vmem:[%s1295 + $0xc] sm:$0xf]
        %v1300 = vld [vmem:[%s1295 + $0x10] sm:$0xf]
        %v1301 = vld [vmem:[%s1295 + $0x14] sm:$0xf]
        %v1302 = vld [vmem:[%s1295 + $0x18] sm:$0xf]
        %v1303 = vld [vmem:[%s1295 + $0x1c] sm:$0xf]
        %v1304 = vld [vmem:[%s1295 + $0x20] sm:$0xf]
        %v1305 = vld [vmem:[%s1295 + $0x24] sm:$0xf]
        %v1306 = vld [vmem:[%s1295 + $0x28] sm:$0xf]
        %v1307 = vld [vmem:[%s1295 + $0x2c] sm:$0xf]
        %v1308 = vld [vmem:[%s1295 + $0x30] sm:$0xf]
        %v1309 = vld [vmem:[%s1295 + $0x34] sm:$0xf]
        %v1310 = vld [vmem:[%s1295 + $0x38] sm:$0xf]
        %v1311 = vld [vmem:[%s1295 + $0x3c] sm:$0xf]
        %v1312 = vrot.slane %v702, 7
        %v1313 = vrot.slane %v703, 7
        %v1314 = vrot.slane %v704, 7
        %v1315 = vrot.slane %v705, 7
        %v1316 = vrot.slane %v706, 7
        %v1317 = vrot.slane %v707, 7
        %v1318 = vrot.slane %v708, 7
        %v1319 = vrot.slane %v709, 7
        %v1320 = vrot.slane %v710, 7
        %v1321 = vrot.slane %v711, 7
        %v1322 = vrot.slane %v712, 7
        %v1323 = vrot.slane %v713, 7
        %v1324 = vrot.slane %v714, 7
        %v1325 = vrot.slane %v715, 7
        %v1326 = vrot.slane %v716, 7
        %v1327 = vrot.slane %v717, 7
        %v1328 = vrot.slane %v718, 7
        %v1329 = vrot.slane %v719, 7
        %v1330 = vrot.slane %v720, 7
        %v1331 = vrot.slane %v721, 7
        %v1332 = vrot.slane %v722, 7
        %v1333 = vrot.slane %v723, 7
        %v1334 = vrot.slane %v724, 7
        %v1335 = vrot.slane %v725, 7
        %v1336 = vrot.slane %v726, 7
        %v1337 = vrot.slane %v727, 7
        %v1338 = vrot.slane %v728, 7
        %v1339 = vrot.slane %v729, 7
        %v1340 = vrot.slane %v730, 7
        %v1341 = vrot.slane %v731, 7
        %v1342 = vrot.slane %v732, 7
        %v1343 = vrot.slane %v733, 7
        %vm1344 = vcmp.lt.s32.totalorder %v735, 1
        %v1345 = vsel %vm1344, %v1342, %v1343
        %v1346 = vsel %vm1344, %v1341, %v1342
        %v1347 = vsel %vm1344, %v1340, %v1341
        %v1348 = vsel %vm1344, %v1339, %v1340
        %v1349 = vsel %vm1344, %v1338, %v1339
        %v1350 = vsel %vm1344, %v1337, %v1338
        %v1351 = vsel %vm1344, %v1336, %v1337
        %v1352 = vsel %vm1344, %v1335, %v1336
        %v1353 = vsel %vm1344, %v1334, %v1335
        %v1354 = vsel %vm1344, %v1333, %v1334
        %v1355 = vsel %vm1344, %v1332, %v1333
        %v1356 = vsel %vm1344, %v1331, %v1332
        %v1357 = vsel %vm1344, %v1330, %v1331
        %v1358 = vsel %vm1344, %v1329, %v1330
        %v1359 = vsel %vm1344, %v1328, %v1329
        %v1360 = vsel %vm1344, %v1327, %v1328
        %v1361 = vsel %vm1344, %v1326, %v1327
        %v1362 = vsel %vm1344, %v1325, %v1326
        %v1363 = vsel %vm1344, %v1324, %v1325
        %v1364 = vsel %vm1344, %v1323, %v1324
        %v1365 = vsel %vm1344, %v1322, %v1323
        %v1366 = vsel %vm1344, %v1321, %v1322
        %v1367 = vsel %vm1344, %v1320, %v1321
        %v1368 = vsel %vm1344, %v1319, %v1320
        %v1369 = vsel %vm1344, %v1318, %v1319
        %v1370 = vsel %vm1344, %v1317, %v1318
        %v1371 = vsel %vm1344, %v1316, %v1317
        %v1372 = vsel %vm1344, %v1315, %v1316
        %v1373 = vsel %vm1344, %v1314, %v1315
        %v1374 = vsel %vm1344, %v1313, %v1314
        %v1375 = vsel %vm1344, %v1312, %v1313
        %v1376 = vsel %vm1344, %v1343, %v1312
        %vm1377 = vmand %vm1151, %vm1215
        %vm1378 = vmand %vm1152, %vm1216
        %vm1379 = vmand %vm1153, %vm1217
        %vm1380 = vmand %vm1154, %vm1218
        %vm1381 = vmand %vm1155, %vm1219
        %vm1382 = vmand %vm1156, %vm1220
        %vm1383 = vmand %vm1157, %vm1221
        %vm1384 = vmand %vm1158, %vm1222
        %vm1385 = vmand %vm1159, %vm1223
        %vm1386 = vmand %vm1160, %vm1224
        %vm1387 = vmand %vm1161, %vm1225
        %vm1388 = vmand %vm1162, %vm1226
        %vm1389 = vmand %vm1163, %vm1227
        %vm1390 = vmand %vm1164, %vm1228
        %vm1391 = vmand %vm1165, %vm1229
        %vm1392 = vmand %vm1166, %vm1230
        %vm1393 = vmand %vm1167, %vm1231
        %vm1394 = vmand %vm1168, %vm1232
        %vm1395 = vmand %vm1169, %vm1233
        %vm1396 = vmand %vm1170, %vm1234
        %vm1397 = vmand %vm1171, %vm1235
        %vm1398 = vmand %vm1172, %vm1236
        %vm1399 = vmand %vm1173, %vm1237
        %vm1400 = vmand %vm1174, %vm1238
        %vm1401 = vmand %vm1175, %vm1239
        %vm1402 = vmand %vm1176, %vm1240
        %vm1403 = vmand %vm1177, %vm1241
        %vm1404 = vmand %vm1178, %vm1242
        %vm1405 = vmand %vm1179, %vm1243
        %vm1406 = vmand %vm1180, %vm1244
        %vm1407 = vmand %vm1181, %vm1245
        %vm1408 = vmand %vm1182, %vm1246
        %v1409 = vsel %vm1377, 1, 0
        %v1410 = vsel %vm1378, 1, 0
        %v1411 = vsel %vm1379, 1, 0
        %v1412 = vsel %vm1380, 1, 0
        %v1413 = vsel %vm1381, 1, 0
        %v1414 = vsel %vm1382, 1, 0
        %v1415 = vsel %vm1383, 1, 0
        %v1416 = vsel %vm1384, 1, 0
        %v1417 = vsel %vm1385, 1, 0
        %v1418 = vsel %vm1386, 1, 0
        %v1419 = vsel %vm1387, 1, 0
        %v1420 = vsel %vm1388, 1, 0
        %v1421 = vsel %vm1389, 1, 0
        %v1422 = vsel %vm1390, 1, 0
        %v1423 = vsel %vm1391, 1, 0
        %v1424 = vsel %vm1392, 1, 0
        %v1425 = vsel %vm1393, 1, 0
        %v1426 = vsel %vm1394, 1, 0
        %v1427 = vsel %vm1395, 1, 0
        %v1428 = vsel %vm1396, 1, 0
        %v1429 = vsel %vm1397, 1, 0
        %v1430 = vsel %vm1398, 1, 0
        %v1431 = vsel %vm1399, 1, 0
        %v1432 = vsel %vm1400, 1, 0
        %v1433 = vsel %vm1401, 1, 0
        %v1434 = vsel %vm1402, 1, 0
        %v1435 = vsel %vm1403, 1, 0
        %v1436 = vsel %vm1404, 1, 0
        %v1437 = vsel %vm1405, 1, 0
        %v1438 = vsel %vm1406, 1, 0
        %v1439 = vsel %vm1407, 1, 0
        %v1440 = vsel %vm1408, 1, 0
        %vm1441 = vcmp.eq.s32.totalorder %v1409, 1
        %vm1442 = vcmp.eq.s32.totalorder %v1410, 1
        %vm1443 = vcmp.eq.s32.totalorder %v1411, 1
        %vm1444 = vcmp.eq.s32.totalorder %v1412, 1
        %vm1445 = vcmp.eq.s32.totalorder %v1413, 1
        %vm1446 = vcmp.eq.s32.totalorder %v1414, 1
        %vm1447 = vcmp.eq.s32.totalorder %v1415, 1
        %vm1448 = vcmp.eq.s32.totalorder %v1416, 1
        %vm1449 = vcmp.eq.s32.totalorder %v1417, 1
        %vm1450 = vcmp.eq.s32.totalorder %v1418, 1
        %vm1451 = vcmp.eq.s32.totalorder %v1419, 1
        %vm1452 = vcmp.eq.s32.totalorder %v1420, 1
        %vm1453 = vcmp.eq.s32.totalorder %v1421, 1
        %vm1454 = vcmp.eq.s32.totalorder %v1422, 1
        %vm1455 = vcmp.eq.s32.totalorder %v1423, 1
        %vm1456 = vcmp.eq.s32.totalorder %v1424, 1
        %vm1457 = vcmp.eq.s32.totalorder %v1425, 1
        %vm1458 = vcmp.eq.s32.totalorder %v1426, 1
        %vm1459 = vcmp.eq.s32.totalorder %v1427, 1
        %vm1460 = vcmp.eq.s32.totalorder %v1428, 1
        %vm1461 = vcmp.eq.s32.totalorder %v1429, 1
        %vm1462 = vcmp.eq.s32.totalorder %v1430, 1
        %vm1463 = vcmp.eq.s32.totalorder %v1431, 1
        %vm1464 = vcmp.eq.s32.totalorder %v1432, 1
        %vm1465 = vcmp.eq.s32.totalorder %v1433, 1
        %vm1466 = vcmp.eq.s32.totalorder %v1434, 1
        %vm1467 = vcmp.eq.s32.totalorder %v1435, 1
        %vm1468 = vcmp.eq.s32.totalorder %v1436, 1
        %vm1469 = vcmp.eq.s32.totalorder %v1437, 1
        %vm1470 = vcmp.eq.s32.totalorder %v1438, 1
        %vm1471 = vcmp.eq.s32.totalorder %v1439, 1
        %vm1472 = vcmp.eq.s32.totalorder %v1440, 1
        %v1473 = vsel %vm1441, %v1346, 0.0
        %v1474 = vsel %vm1442, %v1345, 0.0
        %v1475 = vsel %vm1443, %v1376, 0.0
        %v1476 = vsel %vm1444, %v1375, 0.0
        %v1477 = vsel %vm1445, %v1374, 0.0
        %v1478 = vsel %vm1446, %v1373, 0.0
        %v1479 = vsel %vm1447, %v1372, 0.0
        %v1480 = vsel %vm1448, %v1371, 0.0
        %v1481 = vsel %vm1449, %v1370, 0.0
        %v1482 = vsel %vm1450, %v1369, 0.0
        %v1483 = vsel %vm1451, %v1368, 0.0
        %v1484 = vsel %vm1452, %v1367, 0.0
        %v1485 = vsel %vm1453, %v1366, 0.0
        %v1486 = vsel %vm1454, %v1365, 0.0
        %v1487 = vsel %vm1455, %v1364, 0.0
        %v1488 = vsel %vm1456, %v1363, 0.0
        %v1489 = vsel %vm1457, %v1362, 0.0
        %v1490 = vsel %vm1458, %v1361, 0.0
        %v1491 = vsel %vm1459, %v1360, 0.0
        %v1492 = vsel %vm1460, %v1359, 0.0
        %v1493 = vsel %vm1461, %v1358, 0.0
        %v1494 = vsel %vm1462, %v1357, 0.0
        %v1495 = vsel %vm1463, %v1356, 0.0
        %v1496 = vsel %vm1464, %v1355, 0.0
        %v1497 = vsel %vm1465, %v1354, 0.0
        %v1498 = vsel %vm1466, %v1353, 0.0
        %v1499 = vsel %vm1467, %v1352, 0.0
        %v1500 = vsel %vm1468, %v1351, 0.0
        %v1501 = vsel %vm1469, %v1350, 0.0
        %v1502 = vsel %vm1470, %v1349, 0.0
        %v1503 = vsel %vm1471, %v1348, 0.0
        %v1504 = vsel %vm1472, %v1347, 0.0
        %v1505 = vpack.c.bf16 %v1474, %v1473
        %v1506 = vpack.c.bf16 %v1476, %v1475
        %v1507 = vpack.c.bf16 %v1478, %v1477
        %v1508 = vpack.c.bf16 %v1480, %v1479
        %v1509 = vpack.c.bf16 %v1482, %v1481
        %v1510 = vpack.c.bf16 %v1484, %v1483
        %v1511 = vpack.c.bf16 %v1486, %v1485
        %v1512 = vpack.c.bf16 %v1488, %v1487
        %v1513 = vpack.c.bf16 %v1490, %v1489
        %v1514 = vpack.c.bf16 %v1492, %v1491
        %v1515 = vpack.c.bf16 %v1494, %v1493
        %v1516 = vpack.c.bf16 %v1496, %v1495
        %v1517 = vpack.c.bf16 %v1498, %v1497
        %v1518 = vpack.c.bf16 %v1500, %v1499
        %v1519 = vpack.c.bf16 %v1502, %v1501
        %v1520 = vpack.c.bf16 %v1504, %v1503
        %v1521 = vld [vmem:[#allocation7] sm:$0xf]
        %v1522 = vld [vmem:[#allocation7 + $0x4] sm:$0xf]
        %v1523 = vld [vmem:[#allocation7 + $0x8] sm:$0xf]
        %v1524 = vld [vmem:[#allocation7 + $0xc] sm:$0xf]
        %v1525 = vld [vmem:[#allocation7 + $0x10] sm:$0xf]
        %v1526 = vld [vmem:[#allocation7 + $0x14] sm:$0xf]
        %v1527 = vld [vmem:[#allocation7 + $0x18] sm:$0xf]
        %v1528 = vld [vmem:[#allocation7 + $0x1c] sm:$0xf]
        %v1529 = vld [vmem:[#allocation7 + $0x20] sm:$0xf]
        %v1530 = vld [vmem:[#allocation7 + $0x24] sm:$0xf]
        %v1531 = vld [vmem:[#allocation7 + $0x28] sm:$0xf]
        %v1532 = vld [vmem:[#allocation7 + $0x2c] sm:$0xf]
        %v1533 = vld [vmem:[#allocation7 + $0x30] sm:$0xf]
        %v1534 = vld [vmem:[#allocation7 + $0x34] sm:$0xf]
        %v1535 = vld [vmem:[#allocation7 + $0x38] sm:$0xf]
        %v1536 = vld [vmem:[#allocation7 + $0x3c] sm:$0xf]
        %v1553 = vunpack.c.l.b16 %v1521
        %v1554 = vunpack.c.l.b16 %v1522
        %v1555 = vunpack.c.l.b16 %v1523
        %v1556 = vunpack.c.l.b16 %v1524
        %v1557 = vunpack.c.l.b16 %v1525
        %v1558 = vunpack.c.l.b16 %v1526
        %v1559 = vunpack.c.l.b16 %v1527
        %v1560 = vunpack.c.l.b16 %v1528
        %v1561 = vunpack.c.l.b16 %v1529
        %v1562 = vunpack.c.l.b16 %v1530
        %v1563 = vunpack.c.l.b16 %v1531
        %v1564 = vunpack.c.l.b16 %v1532
        %v1565 = vunpack.c.l.b16 %v1533
        %v1566 = vunpack.c.l.b16 %v1534
        %v1567 = vunpack.c.l.b16 %v1535
        %v1568 = vunpack.c.l.b16 %v1536
        %v1569 = vpack.c.b16 %v1554, %v1553
        %v1570 = vpack.c.b16 %v1556, %v1555
        %v1571 = vpack.c.b16 %v1558, %v1557
        %v1572 = vpack.c.b16 %v1560, %v1559
        %v1573 = vpack.c.b16 %v1562, %v1561
        %v1574 = vpack.c.b16 %v1564, %v1563
        %v1575 = vpack.c.b16 %v1566, %v1565
        %v1576 = vpack.c.b16 %v1568, %v1567
        %1585 = vmatprep.subr.bf16.mxu0 0
        %1586 = vmatpush1.bf16.msra.mxu0 %v1576
        %1587 = vmatprep.subr.bf16.mxu0 0
        %1588 = vmatpush1.bf16.msra.mxu0 %v1575
        %1589 = vmatprep.subr.bf16.mxu0 0
        %1590 = vmatpush1.bf16.msra.mxu0 %v1574
        %1591 = vmatprep.subr.bf16.mxu0 0
        %1592 = vmatpush1.bf16.msra.mxu0 %v1573
        %1593 = vmatprep.subr.bf16.mxu0 0
        %1594 = vmatpush1.bf16.msra.mxu0 %v1572
        %1595 = vmatprep.subr.bf16.mxu0 0
        %1596 = vmatpush1.bf16.msra.mxu0 %v1571
        %1597 = vmatprep.subr.bf16.mxu0 0
        %1598 = vmatpush1.bf16.msra.mxu0 %v1570
        %1599 = vmatprep.subr.bf16.mxu0 0
        %1600 = vmatpush1.bf16.msra.mxu0 %v1569
        %1601 = vmatprep.subr.bf16.mxu0 0
        %1602 = vmatpush2.bf16.msra.mxu0 0
        %1603 = vmatprep.subr.bf16.mxu0 0
        %1604 = vmatpush2.bf16.msra.mxu0 0
        %1605 = vmatprep.subr.bf16.mxu0 0
        %1606 = vmatpush2.bf16.msra.mxu0 0
        %1607 = vmatprep.subr.bf16.mxu0 0
        %1608 = vmatpush2.bf16.msra.mxu0 0
        %1609 = vmatprep.subr.bf16.mxu0 0
        %1610 = vmatpush2.bf16.msra.mxu0 0
        %1611 = vmatprep.subr.bf16.mxu0 0
        %1612 = vmatpush2.bf16.msra.mxu0 0
        %1613 = vmatprep.subr.bf16.mxu0 0
        %1614 = vmatpush2.bf16.msra.mxu0 0
        %1615 = vmatprep.subr.bf16.mxu0 0
        %1616 = vmatpush2.bf16.msra.mxu0 0
        %1617 = vmatprep.mubr.bf16.mxu0 0
        %1618 = vmatmul.mubr.bf16.gmra.mxu0 %v1505
        %v1619 = vpop.f32.mrf.mxu0
        %v1620 = vadd.f32 0.0, %v1619
        %v1621 = vpop.f32.mrf.mxu0
        %v1622 = vpop.f32.mrf.mxu0
        %v1623 = vadd.f32 0.0, %v1622
        %v1624 = vpop.f32.mrf.mxu0
        %1625 = vmatprep.mubr.bf16.mxu0 0
        %1626 = vmatmul.mubr.bf16.gmra.mxu0 %v1506
        %v1627 = vpop.f32.mrf.mxu0
        %v1628 = vadd.f32 0.0, %v1627
        %v1629 = vpop.f32.mrf.mxu0
        %v1630 = vpop.f32.mrf.mxu0
        %v1631 = vadd.f32 0.0, %v1630
        %v1632 = vpop.f32.mrf.mxu0
        %1633 = vmatprep.mubr.bf16.mxu0 0
        %1634 = vmatmul.mubr.bf16.gmra.mxu0 %v1507
        %v1635 = vpop.f32.mrf.mxu0
        %v1636 = vadd.f32 0.0, %v1635
        %v1637 = vpop.f32.mrf.mxu0
        %v1638 = vpop.f32.mrf.mxu0
        %v1639 = vadd.f32 0.0, %v1638
        %v1640 = vpop.f32.mrf.mxu0
        %1641 = vmatprep.mubr.bf16.mxu0 0
        %1642 = vmatmul.mubr.bf16.gmra.mxu0 %v1508
        %v1643 = vpop.f32.mrf.mxu0
        %v1644 = vadd.f32 0.0, %v1643
        %v1645 = vpop.f32.mrf.mxu0
        %v1646 = vpop.f32.mrf.mxu0
        %v1647 = vadd.f32 0.0, %v1646
        %v1648 = vpop.f32.mrf.mxu0
        %1649 = vmatprep.mubr.bf16.mxu0 0
        %1650 = vmatmul.mubr.bf16.gmra.mxu0 %v1509
        %v1651 = vpop.f32.mrf.mxu0
        %v1652 = vadd.f32 0.0, %v1651
        %v1653 = vpop.f32.mrf.mxu0
        %v1654 = vpop.f32.mrf.mxu0
        %v1655 = vadd.f32 0.0, %v1654
        %v1656 = vpop.f32.mrf.mxu0
        %1657 = vmatprep.mubr.bf16.mxu0 0
        %1658 = vmatmul.mubr.bf16.gmra.mxu0 %v1510
        %v1659 = vpop.f32.mrf.mxu0
        %v1660 = vadd.f32 0.0, %v1659
        %v1661 = vpop.f32.mrf.mxu0
        %v1662 = vpop.f32.mrf.mxu0
        %v1663 = vadd.f32 0.0, %v1662
        %v1664 = vpop.f32.mrf.mxu0
        %1665 = vmatprep.mubr.bf16.mxu0 0
        %1666 = vmatmul.mubr.bf16.gmra.mxu0 %v1511
        %v1667 = vpop.f32.mrf.mxu0
        %v1668 = vadd.f32 0.0, %v1667
        %v1669 = vpop.f32.mrf.mxu0
        %v1670 = vpop.f32.mrf.mxu0
        %v1671 = vadd.f32 0.0, %v1670
        %v1672 = vpop.f32.mrf.mxu0
        %1673 = vmatprep.mubr.bf16.mxu0 0
        %1674 = vmatmul.mubr.bf16.gmra.mxu0 %v1512
        %v1675 = vpop.f32.mrf.mxu0
        %v1676 = vadd.f32 0.0, %v1675
        %v1677 = vpop.f32.mrf.mxu0
        %v1678 = vpop.f32.mrf.mxu0
        %v1679 = vadd.f32 0.0, %v1678
        %v1680 = vpop.f32.mrf.mxu0
        %1681 = vmatprep.mubr.bf16.mxu0 0
        %1682 = vmatmul.mubr.bf16.gmra.mxu0 %v1513
        %v1683 = vpop.f32.mrf.mxu0
        %v1684 = vadd.f32 0.0, %v1683
        %v1685 = vpop.f32.mrf.mxu0
        %v1686 = vpop.f32.mrf.mxu0
        %v1687 = vadd.f32 0.0, %v1686
        %v1688 = vpop.f32.mrf.mxu0
        %1689 = vmatprep.mubr.bf16.mxu0 0
        %1690 = vmatmul.mubr.bf16.gmra.mxu0 %v1514
        %v1691 = vpop.f32.mrf.mxu0
        %v1692 = vadd.f32 0.0, %v1691
        %v1693 = vpop.f32.mrf.mxu0
        %v1694 = vpop.f32.mrf.mxu0
        %v1695 = vadd.f32 0.0, %v1694
        %v1696 = vpop.f32.mrf.mxu0
        %1697 = vmatprep.mubr.bf16.mxu0 0
        %1698 = vmatmul.mubr.bf16.gmra.mxu0 %v1515
        %v1699 = vpop.f32.mrf.mxu0
        %v1700 = vadd.f32 0.0, %v1699
        %v1701 = vpop.f32.mrf.mxu0
        %v1702 = vpop.f32.mrf.mxu0
        %v1703 = vadd.f32 0.0, %v1702
        %v1704 = vpop.f32.mrf.mxu0
        %1705 = vmatprep.mubr.bf16.mxu0 0
        %1706 = vmatmul.mubr.bf16.gmra.mxu0 %v1516
        %v1707 = vpop.f32.mrf.mxu0
        %v1708 = vadd.f32 0.0, %v1707
        %v1709 = vpop.f32.mrf.mxu0
        %v1710 = vpop.f32.mrf.mxu0
        %v1711 = vadd.f32 0.0, %v1710
        %v1712 = vpop.f32.mrf.mxu0
        %1713 = vmatprep.mubr.bf16.mxu0 0
        %1714 = vmatmul.mubr.bf16.gmra.mxu0 %v1517
        %v1715 = vpop.f32.mrf.mxu0
        %v1716 = vadd.f32 0.0, %v1715
        %v1717 = vpop.f32.mrf.mxu0
        %v1718 = vpop.f32.mrf.mxu0
        %v1719 = vadd.f32 0.0, %v1718
        %v1720 = vpop.f32.mrf.mxu0
        %1721 = vmatprep.mubr.bf16.mxu0 0
        %1722 = vmatmul.mubr.bf16.gmra.mxu0 %v1518
        %v1723 = vpop.f32.mrf.mxu0
        %v1724 = vadd.f32 0.0, %v1723
        %v1725 = vpop.f32.mrf.mxu0
        %v1726 = vpop.f32.mrf.mxu0
        %v1727 = vadd.f32 0.0, %v1726
        %v1728 = vpop.f32.mrf.mxu0
        %1729 = vmatprep.mubr.bf16.mxu0 0
        %1730 = vmatmul.mubr.bf16.gmra.mxu0 %v1519
        %v1731 = vpop.f32.mrf.mxu0
        %v1732 = vadd.f32 0.0, %v1731
        %v1733 = vpop.f32.mrf.mxu0
        %v1734 = vpop.f32.mrf.mxu0
        %v1735 = vadd.f32 0.0, %v1734
        %v1736 = vpop.f32.mrf.mxu0
        %1737 = vmatprep.mubr.bf16.mxu0 0
        %1738 = vmatmul.mubr.bf16.gmra.mxu0 %v1520
        %v1739 = vpop.f32.mrf.mxu0
        %v1740 = vadd.f32 0.0, %v1739
        %v1741 = vpop.f32.mrf.mxu0
        %v1742 = vpop.f32.mrf.mxu0
        %v1743 = vadd.f32 0.0, %v1742
        %v1744 = vpop.f32.mrf.mxu0
        %1745 = vdwg.mxu0
        %v1762 = vunpack.c.l.b16 %v1296
        %v1763 = vunpack.c.l.b16 %v1297
        %v1764 = vunpack.c.l.b16 %v1298
        %v1765 = vunpack.c.l.b16 %v1299
        %v1766 = vunpack.c.l.b16 %v1300
        %v1767 = vunpack.c.l.b16 %v1301
        %v1768 = vunpack.c.l.b16 %v1302
        %v1769 = vunpack.c.l.b16 %v1303
        %v1770 = vunpack.c.l.b16 %v1304
        %v1771 = vunpack.c.l.b16 %v1305
        %v1772 = vunpack.c.l.b16 %v1306
        %v1773 = vunpack.c.l.b16 %v1307
        %v1774 = vunpack.c.l.b16 %v1308
        %v1775 = vunpack.c.l.b16 %v1309
        %v1776 = vunpack.c.l.b16 %v1310
        %v1777 = vunpack.c.l.b16 %v1311
        %v1778 = vpack.c.b16 %v1763, %v1762
        %v1779 = vpack.c.b16 %v1765, %v1764
        %v1780 = vpack.c.b16 %v1767, %v1766
        %v1781 = vpack.c.b16 %v1769, %v1768
        %v1782 = vpack.c.b16 %v1771, %v1770
        %v1783 = vpack.c.b16 %v1773, %v1772
        %v1784 = vpack.c.b16 %v1775, %v1774
        %v1785 = vpack.c.b16 %v1777, %v1776
        %1794 = vmatprep.subr.bf16.mxu0 0
        %1795 = vmatpush1.bf16.msra.mxu0 %v1785
        %1796 = vmatprep.subr.bf16.mxu0 0
        %1797 = vmatpush1.bf16.msra.mxu0 %v1784
        %1798 = vmatprep.subr.bf16.mxu0 0
        %1799 = vmatpush1.bf16.msra.mxu0 %v1783
        %1800 = vmatprep.subr.bf16.mxu0 0
        %1801 = vmatpush1.bf16.msra.mxu0 %v1782
        %1802 = vmatprep.subr.bf16.mxu0 0
        %1803 = vmatpush1.bf16.msra.mxu0 %v1781
        %1804 = vmatprep.subr.bf16.mxu0 0
        %1805 = vmatpush1.bf16.msra.mxu0 %v1780
        %1806 = vmatprep.subr.bf16.mxu0 0
        %1807 = vmatpush1.bf16.msra.mxu0 %v1779
        %1808 = vmatprep.subr.bf16.mxu0 0
        %1809 = vmatpush1.bf16.msra.mxu0 %v1778
        %1810 = vmatprep.subr.bf16.mxu0 0
        %1811 = vmatpush2.bf16.msra.mxu0 0
        %1812 = vmatprep.subr.bf16.mxu0 0
        %1813 = vmatpush2.bf16.msra.mxu0 0
        %1814 = vmatprep.subr.bf16.mxu0 0
        %1815 = vmatpush2.bf16.msra.mxu0 0
        %1816 = vmatprep.subr.bf16.mxu0 0
        %1817 = vmatpush2.bf16.msra.mxu0 0
        %1818 = vmatprep.subr.bf16.mxu0 0
        %1819 = vmatpush2.bf16.msra.mxu0 0
        %1820 = vmatprep.subr.bf16.mxu0 0
        %1821 = vmatpush2.bf16.msra.mxu0 0
        %1822 = vmatprep.subr.bf16.mxu0 0
        %1823 = vmatpush2.bf16.msra.mxu0 0
        %1824 = vmatprep.subr.bf16.mxu0 0
        %1825 = vmatpush2.bf16.msra.mxu0 0
        %1826 = vmatprep.mubr.bf16.mxu0 0
        %1827 = vmatmul.mubr.bf16.gmra.mxu0 %v1279
        %v1828 = vpop.f32.mrf.mxu0
        %v1829 = vadd.f32 %v1620, %v1828
        %v1830 = vpop.f32.mrf.mxu0
        %v1831 = vpop.f32.mrf.mxu0
        %v1832 = vadd.f32 %v1623, %v1831
        %v1833 = vpop.f32.mrf.mxu0
        %1834 = vmatprep.mubr.bf16.mxu0 0
        %1835 = vmatmul.mubr.bf16.gmra.mxu0 %v1280
        %v1836 = vpop.f32.mrf.mxu0
        %v1837 = vadd.f32 %v1628, %v1836
        %v1838 = vpop.f32.mrf.mxu0
        %v1839 = vpop.f32.mrf.mxu0
        %v1840 = vadd.f32 %v1631, %v1839
        %v1841 = vpop.f32.mrf.mxu0
        %1842 = vmatprep.mubr.bf16.mxu0 0
        %1843 = vmatmul.mubr.bf16.gmra.mxu0 %v1281
        %v1844 = vpop.f32.mrf.mxu0
        %v1845 = vadd.f32 %v1636, %v1844
        %v1846 = vpop.f32.mrf.mxu0
        %v1847 = vpop.f32.mrf.mxu0
        %v1848 = vadd.f32 %v1639, %v1847
        %v1849 = vpop.f32.mrf.mxu0
        %1850 = vmatprep.mubr.bf16.mxu0 0
        %1851 = vmatmul.mubr.bf16.gmra.mxu0 %v1282
        %v1852 = vpop.f32.mrf.mxu0
        %v1853 = vadd.f32 %v1644, %v1852
        %v1854 = vpop.f32.mrf.mxu0
        %v1855 = vpop.f32.mrf.mxu0
        %v1856 = vadd.f32 %v1647, %v1855
        %v1857 = vpop.f32.mrf.mxu0
        %1858 = vmatprep.mubr.bf16.mxu0 0
        %1859 = vmatmul.mubr.bf16.gmra.mxu0 %v1283
        %v1860 = vpop.f32.mrf.mxu0
        %v1861 = vadd.f32 %v1652, %v1860
        %v1862 = vpop.f32.mrf.mxu0
        %v1863 = vpop.f32.mrf.mxu0
        %v1864 = vadd.f32 %v1655, %v1863
        %v1865 = vpop.f32.mrf.mxu0
        %1866 = vmatprep.mubr.bf16.mxu0 0
        %1867 = vmatmul.mubr.bf16.gmra.mxu0 %v1284
        %v1868 = vpop.f32.mrf.mxu0
        %v1869 = vadd.f32 %v1660, %v1868
        %v1870 = vpop.f32.mrf.mxu0
        %v1871 = vpop.f32.mrf.mxu0
        %v1872 = vadd.f32 %v1663, %v1871
        %v1873 = vpop.f32.mrf.mxu0
        %1874 = vmatprep.mubr.bf16.mxu0 0
        %1875 = vmatmul.mubr.bf16.gmra.mxu0 %v1285
        %v1876 = vpop.f32.mrf.mxu0
        %v1877 = vadd.f32 %v1668, %v1876
        %v1878 = vpop.f32.mrf.mxu0
        %v1879 = vpop.f32.mrf.mxu0
        %v1880 = vadd.f32 %v1671, %v1879
        %v1881 = vpop.f32.mrf.mxu0
        %1882 = vmatprep.mubr.bf16.mxu0 0
        %1883 = vmatmul.mubr.bf16.gmra.mxu0 %v1286
        %v1884 = vpop.f32.mrf.mxu0
        %v1885 = vadd.f32 %v1676, %v1884
        %v1886 = vpop.f32.mrf.mxu0
        %v1887 = vpop.f32.mrf.mxu0
        %v1888 = vadd.f32 %v1679, %v1887
        %v1889 = vpop.f32.mrf.mxu0
        %1890 = vmatprep.mubr.bf16.mxu0 0
        %1891 = vmatmul.mubr.bf16.gmra.mxu0 %v1287
        %v1892 = vpop.f32.mrf.mxu0
        %v1893 = vadd.f32 %v1684, %v1892
        %v1894 = vpop.f32.mrf.mxu0
        %v1895 = vpop.f32.mrf.mxu0
        %v1896 = vadd.f32 %v1687, %v1895
        %v1897 = vpop.f32.mrf.mxu0
        %1898 = vmatprep.mubr.bf16.mxu0 0
        %1899 = vmatmul.mubr.bf16.gmra.mxu0 %v1288
        %v1900 = vpop.f32.mrf.mxu0
        %v1901 = vadd.f32 %v1692, %v1900
        %v1902 = vpop.f32.mrf.mxu0
        %v1903 = vpop.f32.mrf.mxu0
        %v1904 = vadd.f32 %v1695, %v1903
        %v1905 = vpop.f32.mrf.mxu0
        %1906 = vmatprep.mubr.bf16.mxu0 0
        %1907 = vmatmul.mubr.bf16.gmra.mxu0 %v1289
        %v1908 = vpop.f32.mrf.mxu0
        %v1909 = vadd.f32 %v1700, %v1908
        %v1910 = vpop.f32.mrf.mxu0
        %v1911 = vpop.f32.mrf.mxu0
        %v1912 = vadd.f32 %v1703, %v1911
        %v1913 = vpop.f32.mrf.mxu0
        %1914 = vmatprep.mubr.bf16.mxu0 0
        %1915 = vmatmul.mubr.bf16.gmra.mxu0 %v1290
        %v1916 = vpop.f32.mrf.mxu0
        %v1917 = vadd.f32 %v1708, %v1916
        %v1918 = vpop.f32.mrf.mxu0
        %v1919 = vpop.f32.mrf.mxu0
        %v1920 = vadd.f32 %v1711, %v1919
        %v1921 = vpop.f32.mrf.mxu0
        %1922 = vmatprep.mubr.bf16.mxu0 0
        %1923 = vmatmul.mubr.bf16.gmra.mxu0 %v1291
        %v1924 = vpop.f32.mrf.mxu0
        %v1925 = vadd.f32 %v1716, %v1924
        %v1926 = vpop.f32.mrf.mxu0
        %v1927 = vpop.f32.mrf.mxu0
        %v1928 = vadd.f32 %v1719, %v1927
        %v1929 = vpop.f32.mrf.mxu0
        %1930 = vmatprep.mubr.bf16.mxu0 0
        %1931 = vmatmul.mubr.bf16.gmra.mxu0 %v1292
        %v1932 = vpop.f32.mrf.mxu0
        %v1933 = vadd.f32 %v1724, %v1932
        %v1934 = vpop.f32.mrf.mxu0
        %v1935 = vpop.f32.mrf.mxu0
        %v1936 = vadd.f32 %v1727, %v1935
        %v1937 = vpop.f32.mrf.mxu0
        %1938 = vmatprep.mubr.bf16.mxu0 0
        %1939 = vmatmul.mubr.bf16.gmra.mxu0 %v1293
        %v1940 = vpop.f32.mrf.mxu0
        %v1941 = vadd.f32 %v1732, %v1940
        %v1942 = vpop.f32.mrf.mxu0
        %v1943 = vpop.f32.mrf.mxu0
        %v1944 = vadd.f32 %v1735, %v1943
        %v1945 = vpop.f32.mrf.mxu0
        %1946 = vmatprep.mubr.bf16.mxu0 0
        %1947 = vmatmul.mubr.bf16.gmra.mxu0 %v1294
        %v1948 = vpop.f32.mrf.mxu0
        %v1949 = vadd.f32 %v1740, %v1948
        %v1950 = vpop.f32.mrf.mxu0
        %v1951 = vpop.f32.mrf.mxu0
        %v1952 = vadd.f32 %v1743, %v1951
        %v1953 = vpop.f32.mrf.mxu0
        %1954 = vdwg.mxu0
        %v1955 = vsel %vm1151, 1, 0
        %v1956 = vsel %vm1152, 1, 0
        %v1957 = vsel %vm1153, 1, 0
        %v1958 = vsel %vm1154, 1, 0
        %v1959 = vsel %vm1155, 1, 0
        %v1960 = vsel %vm1156, 1, 0
        %v1961 = vsel %vm1157, 1, 0
        %v1962 = vsel %vm1158, 1, 0
        %v1963 = vsel %vm1159, 1, 0
        %v1964 = vsel %vm1160, 1, 0
        %v1965 = vsel %vm1161, 1, 0
        %v1966 = vsel %vm1162, 1, 0
        %v1967 = vsel %vm1163, 1, 0
        %v1968 = vsel %vm1164, 1, 0
        %v1969 = vsel %vm1165, 1, 0
        %v1970 = vsel %vm1166, 1, 0
        %v1971 = vsel %vm1167, 1, 0
        %v1972 = vsel %vm1168, 1, 0
        %v1973 = vsel %vm1169, 1, 0
        %v1974 = vsel %vm1170, 1, 0
        %v1975 = vsel %vm1171, 1, 0
        %v1976 = vsel %vm1172, 1, 0
        %v1977 = vsel %vm1173, 1, 0
        %v1978 = vsel %vm1174, 1, 0
        %v1979 = vsel %vm1175, 1, 0
        %v1980 = vsel %vm1176, 1, 0
        %v1981 = vsel %vm1177, 1, 0
        %v1982 = vsel %vm1178, 1, 0
        %v1983 = vsel %vm1179, 1, 0
        %v1984 = vsel %vm1180, 1, 0
        %v1985 = vsel %vm1181, 1, 0
        %v1986 = vsel %vm1182, 1, 0
        %vm1987 = vcmp.eq.s32.totalorder %v1955, 1
        %vm1988 = vcmp.eq.s32.totalorder %v1956, 1
        %vm1989 = vcmp.eq.s32.totalorder %v1957, 1
        %vm1990 = vcmp.eq.s32.totalorder %v1958, 1
        %vm1991 = vcmp.eq.s32.totalorder %v1959, 1
        %vm1992 = vcmp.eq.s32.totalorder %v1960, 1
        %vm1993 = vcmp.eq.s32.totalorder %v1961, 1
        %vm1994 = vcmp.eq.s32.totalorder %v1962, 1
        %vm1995 = vcmp.eq.s32.totalorder %v1963, 1
        %vm1996 = vcmp.eq.s32.totalorder %v1964, 1
        %vm1997 = vcmp.eq.s32.totalorder %v1965, 1
        %vm1998 = vcmp.eq.s32.totalorder %v1966, 1
        %vm1999 = vcmp.eq.s32.totalorder %v1967, 1
        %vm2000 = vcmp.eq.s32.totalorder %v1968, 1
        %vm2001 = vcmp.eq.s32.totalorder %v1969, 1
        %vm2002 = vcmp.eq.s32.totalorder %v1970, 1
        %vm2003 = vcmp.eq.s32.totalorder %v1971, 1
        %vm2004 = vcmp.eq.s32.totalorder %v1972, 1
        %vm2005 = vcmp.eq.s32.totalorder %v1973, 1
        %vm2006 = vcmp.eq.s32.totalorder %v1974, 1
        %vm2007 = vcmp.eq.s32.totalorder %v1975, 1
        %vm2008 = vcmp.eq.s32.totalorder %v1976, 1
        %vm2009 = vcmp.eq.s32.totalorder %v1977, 1
        %vm2010 = vcmp.eq.s32.totalorder %v1978, 1
        %vm2011 = vcmp.eq.s32.totalorder %v1979, 1
        %vm2012 = vcmp.eq.s32.totalorder %v1980, 1
        %vm2013 = vcmp.eq.s32.totalorder %v1981, 1
        %vm2014 = vcmp.eq.s32.totalorder %v1982, 1
        %vm2015 = vcmp.eq.s32.totalorder %v1983, 1
        %vm2016 = vcmp.eq.s32.totalorder %v1984, 1
        %vm2017 = vcmp.eq.s32.totalorder %v1985, 1
        %vm2018 = vcmp.eq.s32.totalorder %v1986, 1
        %v2019 = vsel %vm1987, %v732, 0.0
        %v2020 = vsel %vm1988, %v733, 0.0
        %v2021 = vsel %vm1989, %v702, 0.0
        %v2022 = vsel %vm1990, %v703, 0.0
        %v2023 = vsel %vm1991, %v704, 0.0
        %v2024 = vsel %vm1992, %v705, 0.0
        %v2025 = vsel %vm1993, %v706, 0.0
        %v2026 = vsel %vm1994, %v707, 0.0
        %v2027 = vsel %vm1995, %v708, 0.0
        %v2028 = vsel %vm1996, %v709, 0.0
        %v2029 = vsel %vm1997, %v710, 0.0
        %v2030 = vsel %vm1998, %v711, 0.0
        %v2031 = vsel %vm1999, %v712, 0.0
        %v2032 = vsel %vm2000, %v713, 0.0
        %v2033 = vsel %vm2001, %v714, 0.0
        %v2034 = vsel %vm2002, %v715, 0.0
        %v2035 = vsel %vm2003, %v716, 0.0
        %v2036 = vsel %vm2004, %v717, 0.0
        %v2037 = vsel %vm2005, %v718, 0.0
        %v2038 = vsel %vm2006, %v719, 0.0
        %v2039 = vsel %vm2007, %v720, 0.0
        %v2040 = vsel %vm2008, %v721, 0.0
        %v2041 = vsel %vm2009, %v722, 0.0
        %v2042 = vsel %vm2010, %v723, 0.0
        %v2043 = vsel %vm2011, %v724, 0.0
        %v2044 = vsel %vm2012, %v725, 0.0
        %v2045 = vsel %vm2013, %v726, 0.0
        %v2046 = vsel %vm2014, %v727, 0.0
        %v2047 = vsel %vm2015, %v728, 0.0
        %v2048 = vsel %vm2016, %v729, 0.0
        %v2049 = vsel %vm2017, %v730, 0.0
        %v2050 = vsel %vm2018, %v731, 0.0
        %v2051 = vpack.c.bf16 %v2020, %v2019
        %v2052 = vpack.c.bf16 %v2022, %v2021
        %v2053 = vpack.c.bf16 %v2024, %v2023
        %v2054 = vpack.c.bf16 %v2026, %v2025
        %v2055 = vpack.c.bf16 %v2028, %v2027
        %v2056 = vpack.c.bf16 %v2030, %v2029
        %v2057 = vpack.c.bf16 %v2032, %v2031
        %v2058 = vpack.c.bf16 %v2034, %v2033
        %v2059 = vpack.c.bf16 %v2036, %v2035
        %v2060 = vpack.c.bf16 %v2038, %v2037
        %v2061 = vpack.c.bf16 %v2040, %v2039
        %v2062 = vpack.c.bf16 %v2042, %v2041
        %v2063 = vpack.c.bf16 %v2044, %v2043
        %v2064 = vpack.c.bf16 %v2046, %v2045
        %v2065 = vpack.c.bf16 %v2048, %v2047
        %v2066 = vpack.c.bf16 %v2050, %v2049
        %s2067 = scalar_lea.vmem [#allocation7], 64
        %v2068 = vld [vmem:[%s2067] sm:$0xf]
        %v2069 = vld [vmem:[%s2067 + $0x4] sm:$0xf]
        %v2070 = vld [vmem:[%s2067 + $0x8] sm:$0xf]
        %v2071 = vld [vmem:[%s2067 + $0xc] sm:$0xf]
        %v2072 = vld [vmem:[%s2067 + $0x10] sm:$0xf]
        %v2073 = vld [vmem:[%s2067 + $0x14] sm:$0xf]
        %v2074 = vld [vmem:[%s2067 + $0x18] sm:$0xf]
        %v2075 = vld [vmem:[%s2067 + $0x1c] sm:$0xf]
        %v2076 = vld [vmem:[%s2067 + $0x20] sm:$0xf]
        %v2077 = vld [vmem:[%s2067 + $0x24] sm:$0xf]
        %v2078 = vld [vmem:[%s2067 + $0x28] sm:$0xf]
        %v2079 = vld [vmem:[%s2067 + $0x2c] sm:$0xf]
        %v2080 = vld [vmem:[%s2067 + $0x30] sm:$0xf]
        %v2081 = vld [vmem:[%s2067 + $0x34] sm:$0xf]
        %v2082 = vld [vmem:[%s2067 + $0x38] sm:$0xf]
        %v2083 = vld [vmem:[%s2067 + $0x3c] sm:$0xf]
        %v2100 = vunpack.c.l.b16 %v2068
        %v2101 = vunpack.c.l.b16 %v2069
        %v2102 = vunpack.c.l.b16 %v2070
        %v2103 = vunpack.c.l.b16 %v2071
        %v2104 = vunpack.c.l.b16 %v2072
        %v2105 = vunpack.c.l.b16 %v2073
        %v2106 = vunpack.c.l.b16 %v2074
        %v2107 = vunpack.c.l.b16 %v2075
        %v2108 = vunpack.c.l.b16 %v2076
        %v2109 = vunpack.c.l.b16 %v2077
        %v2110 = vunpack.c.l.b16 %v2078
        %v2111 = vunpack.c.l.b16 %v2079
        %v2112 = vunpack.c.l.b16 %v2080
        %v2113 = vunpack.c.l.b16 %v2081
        %v2114 = vunpack.c.l.b16 %v2082
        %v2115 = vunpack.c.l.b16 %v2083
        %v2116 = vpack.c.b16 %v2101, %v2100
        %v2117 = vpack.c.b16 %v2103, %v2102
        %v2118 = vpack.c.b16 %v2105, %v2104
        %v2119 = vpack.c.b16 %v2107, %v2106
        %v2120 = vpack.c.b16 %v2109, %v2108
        %v2121 = vpack.c.b16 %v2111, %v2110
        %v2122 = vpack.c.b16 %v2113, %v2112
        %v2123 = vpack.c.b16 %v2115, %v2114
        %2132 = vmatprep.subr.bf16.mxu0 0
        %2133 = vmatpush1.bf16.msra.mxu0 %v2123
        %2134 = vmatprep.subr.bf16.mxu0 0
        %2135 = vmatpush1.bf16.msra.mxu0 %v2122
        %2136 = vmatprep.subr.bf16.mxu0 0
        %2137 = vmatpush1.bf16.msra.mxu0 %v2121
        %2138 = vmatprep.subr.bf16.mxu0 0
        %2139 = vmatpush1.bf16.msra.mxu0 %v2120
        %2140 = vmatprep.subr.bf16.mxu0 0
        %2141 = vmatpush1.bf16.msra.mxu0 %v2119
        %2142 = vmatprep.subr.bf16.mxu0 0
        %2143 = vmatpush1.bf16.msra.mxu0 %v2118
        %2144 = vmatprep.subr.bf16.mxu0 0
        %2145 = vmatpush1.bf16.msra.mxu0 %v2117
        %2146 = vmatprep.subr.bf16.mxu0 0
        %2147 = vmatpush1.bf16.msra.mxu0 %v2116
        %2148 = vmatprep.subr.bf16.mxu0 0
        %2149 = vmatpush2.bf16.msra.mxu0 0
        %2150 = vmatprep.subr.bf16.mxu0 0
        %2151 = vmatpush2.bf16.msra.mxu0 0
        %2152 = vmatprep.subr.bf16.mxu0 0
        %2153 = vmatpush2.bf16.msra.mxu0 0
        %2154 = vmatprep.subr.bf16.mxu0 0
        %2155 = vmatpush2.bf16.msra.mxu0 0
        %2156 = vmatprep.subr.bf16.mxu0 0
        %2157 = vmatpush2.bf16.msra.mxu0 0
        %2158 = vmatprep.subr.bf16.mxu0 0
        %2159 = vmatpush2.bf16.msra.mxu0 0
        %2160 = vmatprep.subr.bf16.mxu0 0
        %2161 = vmatpush2.bf16.msra.mxu0 0
        %2162 = vmatprep.subr.bf16.mxu0 0
        %2163 = vmatpush2.bf16.msra.mxu0 0
        %2164 = vmatprep.mubr.bf16.mxu0 0
        %2165 = vmatmul.mubr.bf16.gmra.mxu0 %v2051
        %v2166 = vpop.f32.mrf.mxu0
        %v2167 = vadd.f32 0.0, %v2166
        %v2168 = vpop.f32.mrf.mxu0
        %v2169 = vpop.f32.mrf.mxu0
        %v2170 = vadd.f32 0.0, %v2169
        %v2171 = vpop.f32.mrf.mxu0
        %2172 = vmatprep.mubr.bf16.mxu0 0
        %2173 = vmatmul.mubr.bf16.gmra.mxu0 %v2052
        %v2174 = vpop.f32.mrf.mxu0
        %v2175 = vadd.f32 0.0, %v2174
        %v2176 = vpop.f32.mrf.mxu0
        %v2177 = vpop.f32.mrf.mxu0
        %v2178 = vadd.f32 0.0, %v2177
        %v2179 = vpop.f32.mrf.mxu0
        %2180 = vmatprep.mubr.bf16.mxu0 0
        %2181 = vmatmul.mubr.bf16.gmra.mxu0 %v2053
        %v2182 = vpop.f32.mrf.mxu0
        %v2183 = vadd.f32 0.0, %v2182
        %v2184 = vpop.f32.mrf.mxu0
        %v2185 = vpop.f32.mrf.mxu0
        %v2186 = vadd.f32 0.0, %v2185
        %v2187 = vpop.f32.mrf.mxu0
        %2188 = vmatprep.mubr.bf16.mxu0 0
        %2189 = vmatmul.mubr.bf16.gmra.mxu0 %v2054
        %v2190 = vpop.f32.mrf.mxu0
        %v2191 = vadd.f32 0.0, %v2190
        %v2192 = vpop.f32.mrf.mxu0
        %v2193 = vpop.f32.mrf.mxu0
        %v2194 = vadd.f32 0.0, %v2193
        %v2195 = vpop.f32.mrf.mxu0
        %2196 = vmatprep.mubr.bf16.mxu0 0
        %2197 = vmatmul.mubr.bf16.gmra.mxu0 %v2055
        %v2198 = vpop.f32.mrf.mxu0
        %v2199 = vadd.f32 0.0, %v2198
        %v2200 = vpop.f32.mrf.mxu0
        %v2201 = vpop.f32.mrf.mxu0
        %v2202 = vadd.f32 0.0, %v2201
        %v2203 = vpop.f32.mrf.mxu0
        %2204 = vmatprep.mubr.bf16.mxu0 0
        %2205 = vmatmul.mubr.bf16.gmra.mxu0 %v2056
        %v2206 = vpop.f32.mrf.mxu0
        %v2207 = vadd.f32 0.0, %v2206
        %v2208 = vpop.f32.mrf.mxu0
        %v2209 = vpop.f32.mrf.mxu0
        %v2210 = vadd.f32 0.0, %v2209
        %v2211 = vpop.f32.mrf.mxu0
        %2212 = vmatprep.mubr.bf16.mxu0 0
        %2213 = vmatmul.mubr.bf16.gmra.mxu0 %v2057
        %v2214 = vpop.f32.mrf.mxu0
        %v2215 = vadd.f32 0.0, %v2214
        %v2216 = vpop.f32.mrf.mxu0
        %v2217 = vpop.f32.mrf.mxu0
        %v2218 = vadd.f32 0.0, %v2217
        %v2219 = vpop.f32.mrf.mxu0
        %2220 = vmatprep.mubr.bf16.mxu0 0
        %2221 = vmatmul.mubr.bf16.gmra.mxu0 %v2058
        %v2222 = vpop.f32.mrf.mxu0
        %v2223 = vadd.f32 0.0, %v2222
        %v2224 = vpop.f32.mrf.mxu0
        %v2225 = vpop.f32.mrf.mxu0
        %v2226 = vadd.f32 0.0, %v2225
        %v2227 = vpop.f32.mrf.mxu0
        %2228 = vmatprep.mubr.bf16.mxu0 0
        %2229 = vmatmul.mubr.bf16.gmra.mxu0 %v2059
        %v2230 = vpop.f32.mrf.mxu0
        %v2231 = vadd.f32 0.0, %v2230
        %v2232 = vpop.f32.mrf.mxu0
        %v2233 = vpop.f32.mrf.mxu0
        %v2234 = vadd.f32 0.0, %v2233
        %v2235 = vpop.f32.mrf.mxu0
        %2236 = vmatprep.mubr.bf16.mxu0 0
        %2237 = vmatmul.mubr.bf16.gmra.mxu0 %v2060
        %v2238 = vpop.f32.mrf.mxu0
        %v2239 = vadd.f32 0.0, %v2238
        %v2240 = vpop.f32.mrf.mxu0
        %v2241 = vpop.f32.mrf.mxu0
        %v2242 = vadd.f32 0.0, %v2241
        %v2243 = vpop.f32.mrf.mxu0
        %2244 = vmatprep.mubr.bf16.mxu0 0
        %2245 = vmatmul.mubr.bf16.gmra.mxu0 %v2061
        %v2246 = vpop.f32.mrf.mxu0
        %v2247 = vadd.f32 0.0, %v2246
        %v2248 = vpop.f32.mrf.mxu0
        %v2249 = vpop.f32.mrf.mxu0
        %v2250 = vadd.f32 0.0, %v2249
        %v2251 = vpop.f32.mrf.mxu0
        %2252 = vmatprep.mubr.bf16.mxu0 0
        %2253 = vmatmul.mubr.bf16.gmra.mxu0 %v2062
        %v2254 = vpop.f32.mrf.mxu0
        %v2255 = vadd.f32 0.0, %v2254
        %v2256 = vpop.f32.mrf.mxu0
        %v2257 = vpop.f32.mrf.mxu0
        %v2258 = vadd.f32 0.0, %v2257
        %v2259 = vpop.f32.mrf.mxu0
        %2260 = vmatprep.mubr.bf16.mxu0 0
        %2261 = vmatmul.mubr.bf16.gmra.mxu0 %v2063
        %v2262 = vpop.f32.mrf.mxu0
        %v2263 = vadd.f32 0.0, %v2262
        %v2264 = vpop.f32.mrf.mxu0
        %v2265 = vpop.f32.mrf.mxu0
        %v2266 = vadd.f32 0.0, %v2265
        %v2267 = vpop.f32.mrf.mxu0
        %2268 = vmatprep.mubr.bf16.mxu0 0
        %2269 = vmatmul.mubr.bf16.gmra.mxu0 %v2064
        %v2270 = vpop.f32.mrf.mxu0
        %v2271 = vadd.f32 0.0, %v2270
        %v2272 = vpop.f32.mrf.mxu0
        %v2273 = vpop.f32.mrf.mxu0
        %v2274 = vadd.f32 0.0, %v2273
        %v2275 = vpop.f32.mrf.mxu0
        %2276 = vmatprep.mubr.bf16.mxu0 0
        %2277 = vmatmul.mubr.bf16.gmra.mxu0 %v2065
        %v2278 = vpop.f32.mrf.mxu0
        %v2279 = vadd.f32 0.0, %v2278
        %v2280 = vpop.f32.mrf.mxu0
        %v2281 = vpop.f32.mrf.mxu0
        %v2282 = vadd.f32 0.0, %v2281
        %v2283 = vpop.f32.mrf.mxu0
        %2284 = vmatprep.mubr.bf16.mxu0 0
        %2285 = vmatmul.mubr.bf16.gmra.mxu0 %v2066
        %v2286 = vpop.f32.mrf.mxu0
        %v2287 = vadd.f32 0.0, %v2286
        %v2288 = vpop.f32.mrf.mxu0
        %v2289 = vpop.f32.mrf.mxu0
        %v2290 = vadd.f32 0.0, %v2289
        %v2291 = vpop.f32.mrf.mxu0
        %2292 = vdwg.mxu0
        %v2293 = vadd.f32 %v1829, %v2167
        %v2294 = vadd.f32 %v1832, %v2170
        %v2295 = vadd.f32 %v1837, %v2175
        %v2296 = vadd.f32 %v1840, %v2178
        %v2297 = vadd.f32 %v1845, %v2183
        %v2298 = vadd.f32 %v1848, %v2186
        %v2299 = vadd.f32 %v1853, %v2191
        %v2300 = vadd.f32 %v1856, %v2194
        %v2301 = vadd.f32 %v1861, %v2199
        %v2302 = vadd.f32 %v1864, %v2202
        %v2303 = vadd.f32 %v1869, %v2207
        %v2304 = vadd.f32 %v1872, %v2210
        %v2305 = vadd.f32 %v1877, %v2215
        %v2306 = vadd.f32 %v1880, %v2218
        %v2307 = vadd.f32 %v1885, %v2223
        %v2308 = vadd.f32 %v1888, %v2226
        %v2309 = vadd.f32 %v1893, %v2231
        %v2310 = vadd.f32 %v1896, %v2234
        %v2311 = vadd.f32 %v1901, %v2239
        %v2312 = vadd.f32 %v1904, %v2242
        %v2313 = vadd.f32 %v1909, %v2247
        %v2314 = vadd.f32 %v1912, %v2250
        %v2315 = vadd.f32 %v1917, %v2255
        %v2316 = vadd.f32 %v1920, %v2258
        %v2317 = vadd.f32 %v1925, %v2263
        %v2318 = vadd.f32 %v1928, %v2266
        %v2319 = vadd.f32 %v1933, %v2271
        %v2320 = vadd.f32 %v1936, %v2274
        %v2321 = vadd.f32 %v1941, %v2279
        %v2322 = vadd.f32 %v1944, %v2282
        %v2323 = vadd.f32 %v1949, %v2287
        %v2324 = vadd.f32 %v1952, %v2290
        %v2325 = vrot.slane %v702, 1
        %v2326 = vrot.slane %v703, 1
        %v2327 = vrot.slane %v704, 1
        %v2328 = vrot.slane %v705, 1
        %v2329 = vrot.slane %v706, 1
        %v2330 = vrot.slane %v707, 1
        %v2331 = vrot.slane %v708, 1
        %v2332 = vrot.slane %v709, 1
        %v2333 = vrot.slane %v710, 1
        %v2334 = vrot.slane %v711, 1
        %v2335 = vrot.slane %v712, 1
        %v2336 = vrot.slane %v713, 1
        %v2337 = vrot.slane %v714, 1
        %v2338 = vrot.slane %v715, 1
        %v2339 = vrot.slane %v716, 1
        %v2340 = vrot.slane %v717, 1
        %v2341 = vrot.slane %v718, 1
        %v2342 = vrot.slane %v719, 1
        %v2343 = vrot.slane %v720, 1
        %v2344 = vrot.slane %v721, 1
        %v2345 = vrot.slane %v722, 1
        %v2346 = vrot.slane %v723, 1
        %v2347 = vrot.slane %v724, 1
        %v2348 = vrot.slane %v725, 1
        %v2349 = vrot.slane %v726, 1
        %v2350 = vrot.slane %v727, 1
        %v2351 = vrot.slane %v728, 1
        %v2352 = vrot.slane %v729, 1
        %v2353 = vrot.slane %v730, 1
        %v2354 = vrot.slane %v731, 1
        %v2355 = vrot.slane %v732, 1
        %v2356 = vrot.slane %v733, 1
        %vm2357 = vcmp.lt.s32.totalorder %v735, 7
        %v2358 = vsel %vm2357, %v2355, %v2356
        %v2359 = vsel %vm2357, %v2354, %v2355
        %v2360 = vsel %vm2357, %v2353, %v2354
        %v2361 = vsel %vm2357, %v2352, %v2353
        %v2362 = vsel %vm2357, %v2351, %v2352
        %v2363 = vsel %vm2357, %v2350, %v2351
        %v2364 = vsel %vm2357, %v2349, %v2350
        %v2365 = vsel %vm2357, %v2348, %v2349
        %v2366 = vsel %vm2357, %v2347, %v2348
        %v2367 = vsel %vm2357, %v2346, %v2347
        %v2368 = vsel %vm2357, %v2345, %v2346
        %v2369 = vsel %vm2357, %v2344, %v2345
        %v2370 = vsel %vm2357, %v2343, %v2344
        %v2371 = vsel %vm2357, %v2342, %v2343
        %v2372 = vsel %vm2357, %v2341, %v2342
        %v2373 = vsel %vm2357, %v2340, %v2341
        %v2374 = vsel %vm2357, %v2339, %v2340
        %v2375 = vsel %vm2357, %v2338, %v2339
        %v2376 = vsel %vm2357, %v2337, %v2338
        %v2377 = vsel %vm2357, %v2336, %v2337
        %v2378 = vsel %vm2357, %v2335, %v2336
        %v2379 = vsel %vm2357, %v2334, %v2335
        %v2380 = vsel %vm2357, %v2333, %v2334
        %v2381 = vsel %vm2357, %v2332, %v2333
        %v2382 = vsel %vm2357, %v2331, %v2332
        %v2383 = vsel %vm2357, %v2330, %v2331
        %v2384 = vsel %vm2357, %v2329, %v2330
        %v2385 = vsel %vm2357, %v2328, %v2329
        %v2386 = vsel %vm2357, %v2327, %v2328
        %v2387 = vsel %vm2357, %v2326, %v2327
        %v2388 = vsel %vm2357, %v2325, %v2326
        %v2389 = vsel %vm2357, %v2356, %v2325
        %vm2390 = vmand %vm1151, %vm1247
        %vm2391 = vmand %vm1152, %vm1248
        %vm2392 = vmand %vm1153, %vm1249
        %vm2393 = vmand %vm1154, %vm1250
        %vm2394 = vmand %vm1155, %vm1251
        %vm2395 = vmand %vm1156, %vm1252
        %vm2396 = vmand %vm1157, %vm1253
        %vm2397 = vmand %vm1158, %vm1254
        %vm2398 = vmand %vm1159, %vm1255
        %vm2399 = vmand %vm1160, %vm1256
        %vm2400 = vmand %vm1161, %vm1257
        %vm2401 = vmand %vm1162, %vm1258
        %vm2402 = vmand %vm1163, %vm1259
        %vm2403 = vmand %vm1164, %vm1260
        %vm2404 = vmand %vm1165, %vm1261
        %vm2405 = vmand %vm1166, %vm1262
        %vm2406 = vmand %vm1167, %vm1263
        %vm2407 = vmand %vm1168, %vm1264
        %vm2408 = vmand %vm1169, %vm1265
        %vm2409 = vmand %vm1170, %vm1266
        %vm2410 = vmand %vm1171, %vm1267
        %vm2411 = vmand %vm1172, %vm1268
        %vm2412 = vmand %vm1173, %vm1269
        %vm2413 = vmand %vm1174, %vm1270
        %vm2414 = vmand %vm1175, %vm1271
        %vm2415 = vmand %vm1176, %vm1272
        %vm2416 = vmand %vm1177, %vm1273
        %vm2417 = vmand %vm1178, %vm1274
        %vm2418 = vmand %vm1179, %vm1275
        %vm2419 = vmand %vm1180, %vm1276
        %vm2420 = vmand %vm1181, %vm1277
        %vm2421 = vmand %vm1182, %vm1278
        %v2422 = vsel %vm2390, 1, 0
        %v2423 = vsel %vm2391, 1, 0
        %v2424 = vsel %vm2392, 1, 0
        %v2425 = vsel %vm2393, 1, 0
        %v2426 = vsel %vm2394, 1, 0
        %v2427 = vsel %vm2395, 1, 0
        %v2428 = vsel %vm2396, 1, 0
        %v2429 = vsel %vm2397, 1, 0
        %v2430 = vsel %vm2398, 1, 0
        %v2431 = vsel %vm2399, 1, 0
        %v2432 = vsel %vm2400, 1, 0
        %v2433 = vsel %vm2401, 1, 0
        %v2434 = vsel %vm2402, 1, 0
        %v2435 = vsel %vm2403, 1, 0
        %v2436 = vsel %vm2404, 1, 0
        %v2437 = vsel %vm2405, 1, 0
        %v2438 = vsel %vm2406, 1, 0
        %v2439 = vsel %vm2407, 1, 0
        %v2440 = vsel %vm2408, 1, 0
        %v2441 = vsel %vm2409, 1, 0
        %v2442 = vsel %vm2410, 1, 0
        %v2443 = vsel %vm2411, 1, 0
        %v2444 = vsel %vm2412, 1, 0
        %v2445 = vsel %vm2413, 1, 0
        %v2446 = vsel %vm2414, 1, 0
        %v2447 = vsel %vm2415, 1, 0
        %v2448 = vsel %vm2416, 1, 0
        %v2449 = vsel %vm2417, 1, 0
        %v2450 = vsel %vm2418, 1, 0
        %v2451 = vsel %vm2419, 1, 0
        %v2452 = vsel %vm2420, 1, 0
        %v2453 = vsel %vm2421, 1, 0
        %vm2454 = vcmp.eq.s32.totalorder %v2422, 1
        %vm2455 = vcmp.eq.s32.totalorder %v2423, 1
        %vm2456 = vcmp.eq.s32.totalorder %v2424, 1
        %vm2457 = vcmp.eq.s32.totalorder %v2425, 1
        %vm2458 = vcmp.eq.s32.totalorder %v2426, 1
        %vm2459 = vcmp.eq.s32.totalorder %v2427, 1
        %vm2460 = vcmp.eq.s32.totalorder %v2428, 1
        %vm2461 = vcmp.eq.s32.totalorder %v2429, 1
        %vm2462 = vcmp.eq.s32.totalorder %v2430, 1
        %vm2463 = vcmp.eq.s32.totalorder %v2431, 1
        %vm2464 = vcmp.eq.s32.totalorder %v2432, 1
        %vm2465 = vcmp.eq.s32.totalorder %v2433, 1
        %vm2466 = vcmp.eq.s32.totalorder %v2434, 1
        %vm2467 = vcmp.eq.s32.totalorder %v2435, 1
        %vm2468 = vcmp.eq.s32.totalorder %v2436, 1
        %vm2469 = vcmp.eq.s32.totalorder %v2437, 1
        %vm2470 = vcmp.eq.s32.totalorder %v2438, 1
        %vm2471 = vcmp.eq.s32.totalorder %v2439, 1
        %vm2472 = vcmp.eq.s32.totalorder %v2440, 1
        %vm2473 = vcmp.eq.s32.totalorder %v2441, 1
        %vm2474 = vcmp.eq.s32.totalorder %v2442, 1
        %vm2475 = vcmp.eq.s32.totalorder %v2443, 1
        %vm2476 = vcmp.eq.s32.totalorder %v2444, 1
        %vm2477 = vcmp.eq.s32.totalorder %v2445, 1
        %vm2478 = vcmp.eq.s32.totalorder %v2446, 1
        %vm2479 = vcmp.eq.s32.totalorder %v2447, 1
        %vm2480 = vcmp.eq.s32.totalorder %v2448, 1
        %vm2481 = vcmp.eq.s32.totalorder %v2449, 1
        %vm2482 = vcmp.eq.s32.totalorder %v2450, 1
        %vm2483 = vcmp.eq.s32.totalorder %v2451, 1
        %vm2484 = vcmp.eq.s32.totalorder %v2452, 1
        %vm2485 = vcmp.eq.s32.totalorder %v2453, 1
        %v2486 = vsel %vm2454, %v2358, 0.0
        %v2487 = vsel %vm2455, %v2389, 0.0
        %v2488 = vsel %vm2456, %v2388, 0.0
        %v2489 = vsel %vm2457, %v2387, 0.0
        %v2490 = vsel %vm2458, %v2386, 0.0
        %v2491 = vsel %vm2459, %v2385, 0.0
        %v2492 = vsel %vm2460, %v2384, 0.0
        %v2493 = vsel %vm2461, %v2383, 0.0
        %v2494 = vsel %vm2462, %v2382, 0.0
        %v2495 = vsel %vm2463, %v2381, 0.0
        %v2496 = vsel %vm2464, %v2380, 0.0
        %v2497 = vsel %vm2465, %v2379, 0.0
        %v2498 = vsel %vm2466, %v2378, 0.0
        %v2499 = vsel %vm2467, %v2377, 0.0
        %v2500 = vsel %vm2468, %v2376, 0.0
        %v2501 = vsel %vm2469, %v2375, 0.0
        %v2502 = vsel %vm2470, %v2374, 0.0
        %v2503 = vsel %vm2471, %v2373, 0.0
        %v2504 = vsel %vm2472, %v2372, 0.0
        %v2505 = vsel %vm2473, %v2371, 0.0
        %v2506 = vsel %vm2474, %v2370, 0.0
        %v2507 = vsel %vm2475, %v2369, 0.0
        %v2508 = vsel %vm2476, %v2368, 0.0
        %v2509 = vsel %vm2477, %v2367, 0.0
        %v2510 = vsel %vm2478, %v2366, 0.0
        %v2511 = vsel %vm2479, %v2365, 0.0
        %v2512 = vsel %vm2480, %v2364, 0.0
        %v2513 = vsel %vm2481, %v2363, 0.0
        %v2514 = vsel %vm2482, %v2362, 0.0
        %v2515 = vsel %vm2483, %v2361, 0.0
        %v2516 = vsel %vm2484, %v2360, 0.0
        %v2517 = vsel %vm2485, %v2359, 0.0
        %v2518 = vpack.c.bf16 %v2487, %v2486
        %v2519 = vpack.c.bf16 %v2489, %v2488
        %v2520 = vpack.c.bf16 %v2491, %v2490
        %v2521 = vpack.c.bf16 %v2493, %v2492
        %v2522 = vpack.c.bf16 %v2495, %v2494
        %v2523 = vpack.c.bf16 %v2497, %v2496
        %v2524 = vpack.c.bf16 %v2499, %v2498
        %v2525 = vpack.c.bf16 %v2501, %v2500
        %v2526 = vpack.c.bf16 %v2503, %v2502
        %v2527 = vpack.c.bf16 %v2505, %v2504
        %v2528 = vpack.c.bf16 %v2507, %v2506
        %v2529 = vpack.c.bf16 %v2509, %v2508
        %v2530 = vpack.c.bf16 %v2511, %v2510
        %v2531 = vpack.c.bf16 %v2513, %v2512
        %v2532 = vpack.c.bf16 %v2515, %v2514
        %v2533 = vpack.c.bf16 %v2517, %v2516
        %s2534 = scalar_lea.vmem [#allocation7], 128
        %v2535 = vld [vmem:[%s2534] sm:$0xf]
        %v2536 = vld [vmem:[%s2534 + $0x4] sm:$0xf]
        %v2537 = vld [vmem:[%s2534 + $0x8] sm:$0xf]
        %v2538 = vld [vmem:[%s2534 + $0xc] sm:$0xf]
        %v2539 = vld [vmem:[%s2534 + $0x10] sm:$0xf]
        %v2540 = vld [vmem:[%s2534 + $0x14] sm:$0xf]
        %v2541 = vld [vmem:[%s2534 + $0x18] sm:$0xf]
        %v2542 = vld [vmem:[%s2534 + $0x1c] sm:$0xf]
        %v2543 = vld [vmem:[%s2534 + $0x20] sm:$0xf]
        %v2544 = vld [vmem:[%s2534 + $0x24] sm:$0xf]
        %v2545 = vld [vmem:[%s2534 + $0x28] sm:$0xf]
        %v2546 = vld [vmem:[%s2534 + $0x2c] sm:$0xf]
        %v2547 = vld [vmem:[%s2534 + $0x30] sm:$0xf]
        %v2548 = vld [vmem:[%s2534 + $0x34] sm:$0xf]
        %v2549 = vld [vmem:[%s2534 + $0x38] sm:$0xf]
        %v2550 = vld [vmem:[%s2534 + $0x3c] sm:$0xf]
        %v2567 = vunpack.c.l.b16 %v2535
        %v2568 = vunpack.c.l.b16 %v2536
        %v2569 = vunpack.c.l.b16 %v2537
        %v2570 = vunpack.c.l.b16 %v2538
        %v2571 = vunpack.c.l.b16 %v2539
        %v2572 = vunpack.c.l.b16 %v2540
        %v2573 = vunpack.c.l.b16 %v2541
        %v2574 = vunpack.c.l.b16 %v2542
        %v2575 = vunpack.c.l.b16 %v2543
        %v2576 = vunpack.c.l.b16 %v2544
        %v2577 = vunpack.c.l.b16 %v2545
        %v2578 = vunpack.c.l.b16 %v2546
        %v2579 = vunpack.c.l.b16 %v2547
        %v2580 = vunpack.c.l.b16 %v2548
        %v2581 = vunpack.c.l.b16 %v2549
        %v2582 = vunpack.c.l.b16 %v2550
        %v2583 = vpack.c.b16 %v2568, %v2567
        %v2584 = vpack.c.b16 %v2570, %v2569
        %v2585 = vpack.c.b16 %v2572, %v2571
        %v2586 = vpack.c.b16 %v2574, %v2573
        %v2587 = vpack.c.b16 %v2576, %v2575
        %v2588 = vpack.c.b16 %v2578, %v2577
        %v2589 = vpack.c.b16 %v2580, %v2579
        %v2590 = vpack.c.b16 %v2582, %v2581
        %2599 = vmatprep.subr.bf16.mxu0 0
        %2600 = vmatpush1.bf16.msra.mxu0 %v2590
        %2601 = vmatprep.subr.bf16.mxu0 0
        %2602 = vmatpush1.bf16.msra.mxu0 %v2589
        %2603 = vmatprep.subr.bf16.mxu0 0
        %2604 = vmatpush1.bf16.msra.mxu0 %v2588
        %2605 = vmatprep.subr.bf16.mxu0 0
        %2606 = vmatpush1.bf16.msra.mxu0 %v2587
        %2607 = vmatprep.subr.bf16.mxu0 0
        %2608 = vmatpush1.bf16.msra.mxu0 %v2586
        %2609 = vmatprep.subr.bf16.mxu0 0
        %2610 = vmatpush1.bf16.msra.mxu0 %v2585
        %2611 = vmatprep.subr.bf16.mxu0 0
        %2612 = vmatpush1.bf16.msra.mxu0 %v2584
        %2613 = vmatprep.subr.bf16.mxu0 0
        %2614 = vmatpush1.bf16.msra.mxu0 %v2583
        %2615 = vmatprep.subr.bf16.mxu0 0
        %2616 = vmatpush2.bf16.msra.mxu0 0
        %2617 = vmatprep.subr.bf16.mxu0 0
        %2618 = vmatpush2.bf16.msra.mxu0 0
        %2619 = vmatprep.subr.bf16.mxu0 0
        %2620 = vmatpush2.bf16.msra.mxu0 0
        %2621 = vmatprep.subr.bf16.mxu0 0
        %2622 = vmatpush2.bf16.msra.mxu0 0
        %2623 = vmatprep.subr.bf16.mxu0 0
        %2624 = vmatpush2.bf16.msra.mxu0 0
        %2625 = vmatprep.subr.bf16.mxu0 0
        %2626 = vmatpush2.bf16.msra.mxu0 0
        %2627 = vmatprep.subr.bf16.mxu0 0
        %2628 = vmatpush2.bf16.msra.mxu0 0
        %2629 = vmatprep.subr.bf16.mxu0 0
        %2630 = vmatpush2.bf16.msra.mxu0 0
        %2631 = vmatprep.mubr.bf16.mxu0 0
        %2632 = vmatmul.mubr.bf16.gmra.mxu0 %v2518
        %v2633 = vpop.f32.mrf.mxu0
        %v2634 = vadd.f32 0.0, %v2633
        %v2635 = vpop.f32.mrf.mxu0
        %v2636 = vpop.f32.mrf.mxu0
        %v2637 = vadd.f32 0.0, %v2636
        %v2638 = vpop.f32.mrf.mxu0
        %2639 = vmatprep.mubr.bf16.mxu0 0
        %2640 = vmatmul.mubr.bf16.gmra.mxu0 %v2519
        %v2641 = vpop.f32.mrf.mxu0
        %v2642 = vadd.f32 0.0, %v2641
        %v2643 = vpop.f32.mrf.mxu0
        %v2644 = vpop.f32.mrf.mxu0
        %v2645 = vadd.f32 0.0, %v2644
        %v2646 = vpop.f32.mrf.mxu0
        %2647 = vmatprep.mubr.bf16.mxu0 0
        %2648 = vmatmul.mubr.bf16.gmra.mxu0 %v2520
        %v2649 = vpop.f32.mrf.mxu0
        %v2650 = vadd.f32 0.0, %v2649
        %v2651 = vpop.f32.mrf.mxu0
        %v2652 = vpop.f32.mrf.mxu0
        %v2653 = vadd.f32 0.0, %v2652
        %v2654 = vpop.f32.mrf.mxu0
        %2655 = vmatprep.mubr.bf16.mxu0 0
        %2656 = vmatmul.mubr.bf16.gmra.mxu0 %v2521
        %v2657 = vpop.f32.mrf.mxu0
        %v2658 = vadd.f32 0.0, %v2657
        %v2659 = vpop.f32.mrf.mxu0
        %v2660 = vpop.f32.mrf.mxu0
        %v2661 = vadd.f32 0.0, %v2660
        %v2662 = vpop.f32.mrf.mxu0
        %2663 = vmatprep.mubr.bf16.mxu0 0
        %2664 = vmatmul.mubr.bf16.gmra.mxu0 %v2522
        %v2665 = vpop.f32.mrf.mxu0
        %v2666 = vadd.f32 0.0, %v2665
        %v2667 = vpop.f32.mrf.mxu0
        %v2668 = vpop.f32.mrf.mxu0
        %v2669 = vadd.f32 0.0, %v2668
        %v2670 = vpop.f32.mrf.mxu0
        %2671 = vmatprep.mubr.bf16.mxu0 0
        %2672 = vmatmul.mubr.bf16.gmra.mxu0 %v2523
        %v2673 = vpop.f32.mrf.mxu0
        %v2674 = vadd.f32 0.0, %v2673
        %v2675 = vpop.f32.mrf.mxu0
        %v2676 = vpop.f32.mrf.mxu0
        %v2677 = vadd.f32 0.0, %v2676
        %v2678 = vpop.f32.mrf.mxu0
        %2679 = vmatprep.mubr.bf16.mxu0 0
        %2680 = vmatmul.mubr.bf16.gmra.mxu0 %v2524
        %v2681 = vpop.f32.mrf.mxu0
        %v2682 = vadd.f32 0.0, %v2681
        %v2683 = vpop.f32.mrf.mxu0
        %v2684 = vpop.f32.mrf.mxu0
        %v2685 = vadd.f32 0.0, %v2684
        %v2686 = vpop.f32.mrf.mxu0
        %2687 = vmatprep.mubr.bf16.mxu0 0
        %2688 = vmatmul.mubr.bf16.gmra.mxu0 %v2525
        %v2689 = vpop.f32.mrf.mxu0
        %v2690 = vadd.f32 0.0, %v2689
        %v2691 = vpop.f32.mrf.mxu0
        %v2692 = vpop.f32.mrf.mxu0
        %v2693 = vadd.f32 0.0, %v2692
        %v2694 = vpop.f32.mrf.mxu0
        %2695 = vmatprep.mubr.bf16.mxu0 0
        %2696 = vmatmul.mubr.bf16.gmra.mxu0 %v2526
        %v2697 = vpop.f32.mrf.mxu0
        %v2698 = vadd.f32 0.0, %v2697
        %v2699 = vpop.f32.mrf.mxu0
        %v2700 = vpop.f32.mrf.mxu0
        %v2701 = vadd.f32 0.0, %v2700
        %v2702 = vpop.f32.mrf.mxu0
        %2703 = vmatprep.mubr.bf16.mxu0 0
        %2704 = vmatmul.mubr.bf16.gmra.mxu0 %v2527
        %v2705 = vpop.f32.mrf.mxu0
        %v2706 = vadd.f32 0.0, %v2705
        %v2707 = vpop.f32.mrf.mxu0
        %v2708 = vpop.f32.mrf.mxu0
        %v2709 = vadd.f32 0.0, %v2708
        %v2710 = vpop.f32.mrf.mxu0
        %2711 = vmatprep.mubr.bf16.mxu0 0
        %2712 = vmatmul.mubr.bf16.gmra.mxu0 %v2528
        %v2713 = vpop.f32.mrf.mxu0
        %v2714 = vadd.f32 0.0, %v2713
        %v2715 = vpop.f32.mrf.mxu0
        %v2716 = vpop.f32.mrf.mxu0
        %v2717 = vadd.f32 0.0, %v2716
        %v2718 = vpop.f32.mrf.mxu0
        %2719 = vmatprep.mubr.bf16.mxu0 0
        %2720 = vmatmul.mubr.bf16.gmra.mxu0 %v2529
        %v2721 = vpop.f32.mrf.mxu0
        %v2722 = vadd.f32 0.0, %v2721
        %v2723 = vpop.f32.mrf.mxu0
        %v2724 = vpop.f32.mrf.mxu0
        %v2725 = vadd.f32 0.0, %v2724
        %v2726 = vpop.f32.mrf.mxu0
        %2727 = vmatprep.mubr.bf16.mxu0 0
        %2728 = vmatmul.mubr.bf16.gmra.mxu0 %v2530
        %v2729 = vpop.f32.mrf.mxu0
        %v2730 = vadd.f32 0.0, %v2729
        %v2731 = vpop.f32.mrf.mxu0
        %v2732 = vpop.f32.mrf.mxu0
        %v2733 = vadd.f32 0.0, %v2732
        %v2734 = vpop.f32.mrf.mxu0
        %2735 = vmatprep.mubr.bf16.mxu0 0
        %2736 = vmatmul.mubr.bf16.gmra.mxu0 %v2531
        %v2737 = vpop.f32.mrf.mxu0
        %v2738 = vadd.f32 0.0, %v2737
        %v2739 = vpop.f32.mrf.mxu0
        %v2740 = vpop.f32.mrf.mxu0
        %v2741 = vadd.f32 0.0, %v2740
        %v2742 = vpop.f32.mrf.mxu0
        %2743 = vmatprep.mubr.bf16.mxu0 0
        %2744 = vmatmul.mubr.bf16.gmra.mxu0 %v2532
        %v2745 = vpop.f32.mrf.mxu0
        %v2746 = vadd.f32 0.0, %v2745
        %v2747 = vpop.f32.mrf.mxu0
        %v2748 = vpop.f32.mrf.mxu0
        %v2749 = vadd.f32 0.0, %v2748
        %v2750 = vpop.f32.mrf.mxu0
        %2751 = vmatprep.mubr.bf16.mxu0 0
        %2752 = vmatmul.mubr.bf16.gmra.mxu0 %v2533
        %v2753 = vpop.f32.mrf.mxu0
        %v2754 = vadd.f32 0.0, %v2753
        %v2755 = vpop.f32.mrf.mxu0
        %v2756 = vpop.f32.mrf.mxu0
        %v2757 = vadd.f32 0.0, %v2756
        %v2758 = vpop.f32.mrf.mxu0
        %2759 = vdwg.mxu0
        %v2760 = vadd.f32 %v2293, %v2634
        %v2761 = vadd.f32 %v2294, %v2637
        %v2762 = vadd.f32 %v2295, %v2642
        %v2763 = vadd.f32 %v2296, %v2645
        %v2764 = vadd.f32 %v2297, %v2650
        %v2765 = vadd.f32 %v2298, %v2653
        %v2766 = vadd.f32 %v2299, %v2658
        %v2767 = vadd.f32 %v2300, %v2661
        %v2768 = vadd.f32 %v2301, %v2666
        %v2769 = vadd.f32 %v2302, %v2669
        %v2770 = vadd.f32 %v2303, %v2674
        %v2771 = vadd.f32 %v2304, %v2677
        %v2772 = vadd.f32 %v2305, %v2682
        %v2773 = vadd.f32 %v2306, %v2685
        %v2774 = vadd.f32 %v2307, %v2690
        %v2775 = vadd.f32 %v2308, %v2693
        %v2776 = vadd.f32 %v2309, %v2698
        %v2777 = vadd.f32 %v2310, %v2701
        %v2778 = vadd.f32 %v2311, %v2706
        %v2779 = vadd.f32 %v2312, %v2709
        %v2780 = vadd.f32 %v2313, %v2714
        %v2781 = vadd.f32 %v2314, %v2717
        %v2782 = vadd.f32 %v2315, %v2722
        %v2783 = vadd.f32 %v2316, %v2725
        %v2784 = vadd.f32 %v2317, %v2730
        %v2785 = vadd.f32 %v2318, %v2733
        %v2786 = vadd.f32 %v2319, %v2738
        %v2787 = vadd.f32 %v2320, %v2741
        %v2788 = vadd.f32 %v2321, %v2746
        %v2789 = vadd.f32 %v2322, %v2749
        %v2790 = vadd.f32 %v2323, %v2754
        %v2791 = vadd.f32 %v2324, %v2757
        %v2792 = vsel %vm1215, 1, 0
        %v2793 = vsel %vm1216, 1, 0
        %v2794 = vsel %vm1217, 1, 0
        %v2795 = vsel %vm1218, 1, 0
        %v2796 = vsel %vm1219, 1, 0
        %v2797 = vsel %vm1220, 1, 0
        %v2798 = vsel %vm1221, 1, 0
        %v2799 = vsel %vm1222, 1, 0
        %v2800 = vsel %vm1223, 1, 0
        %v2801 = vsel %vm1224, 1, 0
        %v2802 = vsel %vm1225, 1, 0
        %v2803 = vsel %vm1226, 1, 0
        %v2804 = vsel %vm1227, 1, 0
        %v2805 = vsel %vm1228, 1, 0
        %v2806 = vsel %vm1229, 1, 0
        %v2807 = vsel %vm1230, 1, 0
        %v2808 = vsel %vm1231, 1, 0
        %v2809 = vsel %vm1232, 1, 0
        %v2810 = vsel %vm1233, 1, 0
        %v2811 = vsel %vm1234, 1, 0
        %v2812 = vsel %vm1235, 1, 0
        %v2813 = vsel %vm1236, 1, 0
        %v2814 = vsel %vm1237, 1, 0
        %v2815 = vsel %vm1238, 1, 0
        %v2816 = vsel %vm1239, 1, 0
        %v2817 = vsel %vm1240, 1, 0
        %v2818 = vsel %vm1241, 1, 0
        %v2819 = vsel %vm1242, 1, 0
        %v2820 = vsel %vm1243, 1, 0
        %v2821 = vsel %vm1244, 1, 0
        %v2822 = vsel %vm1245, 1, 0
        %v2823 = vsel %vm1246, 1, 0
        %vm2824 = vcmp.eq.s32.totalorder %v2792, 1
        %vm2825 = vcmp.eq.s32.totalorder %v2793, 1
        %vm2826 = vcmp.eq.s32.totalorder %v2794, 1
        %vm2827 = vcmp.eq.s32.totalorder %v2795, 1
        %vm2828 = vcmp.eq.s32.totalorder %v2796, 1
        %vm2829 = vcmp.eq.s32.totalorder %v2797, 1
        %vm2830 = vcmp.eq.s32.totalorder %v2798, 1
        %vm2831 = vcmp.eq.s32.totalorder %v2799, 1
        %vm2832 = vcmp.eq.s32.totalorder %v2800, 1
        %vm2833 = vcmp.eq.s32.totalorder %v2801, 1
        %vm2834 = vcmp.eq.s32.totalorder %v2802, 1
        %vm2835 = vcmp.eq.s32.totalorder %v2803, 1
        %vm2836 = vcmp.eq.s32.totalorder %v2804, 1
        %vm2837 = vcmp.eq.s32.totalorder %v2805, 1
        %vm2838 = vcmp.eq.s32.totalorder %v2806, 1
        %vm2839 = vcmp.eq.s32.totalorder %v2807, 1
        %vm2840 = vcmp.eq.s32.totalorder %v2808, 1
        %vm2841 = vcmp.eq.s32.totalorder %v2809, 1
        %vm2842 = vcmp.eq.s32.totalorder %v2810, 1
        %vm2843 = vcmp.eq.s32.totalorder %v2811, 1
        %vm2844 = vcmp.eq.s32.totalorder %v2812, 1
        %vm2845 = vcmp.eq.s32.totalorder %v2813, 1
        %vm2846 = vcmp.eq.s32.totalorder %v2814, 1
        %vm2847 = vcmp.eq.s32.totalorder %v2815, 1
        %vm2848 = vcmp.eq.s32.totalorder %v2816, 1
        %vm2849 = vcmp.eq.s32.totalorder %v2817, 1
        %vm2850 = vcmp.eq.s32.totalorder %v2818, 1
        %vm2851 = vcmp.eq.s32.totalorder %v2819, 1
        %vm2852 = vcmp.eq.s32.totalorder %v2820, 1
        %vm2853 = vcmp.eq.s32.totalorder %v2821, 1
        %vm2854 = vcmp.eq.s32.totalorder %v2822, 1
        %vm2855 = vcmp.eq.s32.totalorder %v2823, 1
        %v2856 = vsel %vm2824, %v1376, 0.0
        %v2857 = vsel %vm2825, %v1375, 0.0
        %v2858 = vsel %vm2826, %v1374, 0.0
        %v2859 = vsel %vm2827, %v1373, 0.0
        %v2860 = vsel %vm2828, %v1372, 0.0
        %v2861 = vsel %vm2829, %v1371, 0.0
        %v2862 = vsel %vm2830, %v1370, 0.0
        %v2863 = vsel %vm2831, %v1369, 0.0
        %v2864 = vsel %vm2832, %v1368, 0.0
        %v2865 = vsel %vm2833, %v1367, 0.0
        %v2866 = vsel %vm2834, %v1366, 0.0
        %v2867 = vsel %vm2835, %v1365, 0.0
        %v2868 = vsel %vm2836, %v1364, 0.0
        %v2869 = vsel %vm2837, %v1363, 0.0
        %v2870 = vsel %vm2838, %v1362, 0.0
        %v2871 = vsel %vm2839, %v1361, 0.0
        %v2872 = vsel %vm2840, %v1360, 0.0
        %v2873 = vsel %vm2841, %v1359, 0.0
        %v2874 = vsel %vm2842, %v1358, 0.0
        %v2875 = vsel %vm2843, %v1357, 0.0
        %v2876 = vsel %vm2844, %v1356, 0.0
        %v2877 = vsel %vm2845, %v1355, 0.0
        %v2878 = vsel %vm2846, %v1354, 0.0
        %v2879 = vsel %vm2847, %v1353, 0.0
        %v2880 = vsel %vm2848, %v1352, 0.0
        %v2881 = vsel %vm2849, %v1351, 0.0
        %v2882 = vsel %vm2850, %v1350, 0.0
        %v2883 = vsel %vm2851, %v1349, 0.0
        %v2884 = vsel %vm2852, %v1348, 0.0
        %v2885 = vsel %vm2853, %v1347, 0.0
        %v2886 = vsel %vm2854, %v1346, 0.0
        %v2887 = vsel %vm2855, %v1345, 0.0
        %v2888 = vpack.c.bf16 %v2857, %v2856
        %v2889 = vpack.c.bf16 %v2859, %v2858
        %v2890 = vpack.c.bf16 %v2861, %v2860
        %v2891 = vpack.c.bf16 %v2863, %v2862
        %v2892 = vpack.c.bf16 %v2865, %v2864
        %v2893 = vpack.c.bf16 %v2867, %v2866
        %v2894 = vpack.c.bf16 %v2869, %v2868
        %v2895 = vpack.c.bf16 %v2871, %v2870
        %v2896 = vpack.c.bf16 %v2873, %v2872
        %v2897 = vpack.c.bf16 %v2875, %v2874
        %v2898 = vpack.c.bf16 %v2877, %v2876
        %v2899 = vpack.c.bf16 %v2879, %v2878
        %v2900 = vpack.c.bf16 %v2881, %v2880
        %v2901 = vpack.c.bf16 %v2883, %v2882
        %v2902 = vpack.c.bf16 %v2885, %v2884
        %v2903 = vpack.c.bf16 %v2887, %v2886
        %s2904 = scalar_lea.vmem [#allocation7], 192
        %v2905 = vld [vmem:[%s2904] sm:$0xf]
        %v2906 = vld [vmem:[%s2904 + $0x4] sm:$0xf]
        %v2907 = vld [vmem:[%s2904 + $0x8] sm:$0xf]
        %v2908 = vld [vmem:[%s2904 + $0xc] sm:$0xf]
        %v2909 = vld [vmem:[%s2904 + $0x10] sm:$0xf]
        %v2910 = vld [vmem:[%s2904 + $0x14] sm:$0xf]
        %v2911 = vld [vmem:[%s2904 + $0x18] sm:$0xf]
        %v2912 = vld [vmem:[%s2904 + $0x1c] sm:$0xf]
        %v2913 = vld [vmem:[%s2904 + $0x20] sm:$0xf]
        %v2914 = vld [vmem:[%s2904 + $0x24] sm:$0xf]
        %v2915 = vld [vmem:[%s2904 + $0x28] sm:$0xf]
        %v2916 = vld [vmem:[%s2904 + $0x2c] sm:$0xf]
        %v2917 = vld [vmem:[%s2904 + $0x30] sm:$0xf]
        %v2918 = vld [vmem:[%s2904 + $0x34] sm:$0xf]
        %v2919 = vld [vmem:[%s2904 + $0x38] sm:$0xf]
        %v2920 = vld [vmem:[%s2904 + $0x3c] sm:$0xf]
        %v2937 = vunpack.c.l.b16 %v2905
        %v2938 = vunpack.c.l.b16 %v2906
        %v2939 = vunpack.c.l.b16 %v2907
        %v2940 = vunpack.c.l.b16 %v2908
        %v2941 = vunpack.c.l.b16 %v2909
        %v2942 = vunpack.c.l.b16 %v2910
        %v2943 = vunpack.c.l.b16 %v2911
        %v2944 = vunpack.c.l.b16 %v2912
        %v2945 = vunpack.c.l.b16 %v2913
        %v2946 = vunpack.c.l.b16 %v2914
        %v2947 = vunpack.c.l.b16 %v2915
        %v2948 = vunpack.c.l.b16 %v2916
        %v2949 = vunpack.c.l.b16 %v2917
        %v2950 = vunpack.c.l.b16 %v2918
        %v2951 = vunpack.c.l.b16 %v2919
        %v2952 = vunpack.c.l.b16 %v2920
        %v2953 = vpack.c.b16 %v2938, %v2937
        %v2954 = vpack.c.b16 %v2940, %v2939
        %v2955 = vpack.c.b16 %v2942, %v2941
        %v2956 = vpack.c.b16 %v2944, %v2943
        %v2957 = vpack.c.b16 %v2946, %v2945
        %v2958 = vpack.c.b16 %v2948, %v2947
        %v2959 = vpack.c.b16 %v2950, %v2949
        %v2960 = vpack.c.b16 %v2952, %v2951
        %2969 = vmatprep.subr.bf16.mxu0 0
        %2970 = vmatpush1.bf16.msra.mxu0 %v2960
        %2971 = vmatprep.subr.bf16.mxu0 0
        %2972 = vmatpush1.bf16.msra.mxu0 %v2959
        %2973 = vmatprep.subr.bf16.mxu0 0
        %2974 = vmatpush1.bf16.msra.mxu0 %v2958
        %2975 = vmatprep.subr.bf16.mxu0 0
        %2976 = vmatpush1.bf16.msra.mxu0 %v2957
        %2977 = vmatprep.subr.bf16.mxu0 0
        %2978 = vmatpush1.bf16.msra.mxu0 %v2956
        %2979 = vmatprep.subr.bf16.mxu0 0
        %2980 = vmatpush1.bf16.msra.mxu0 %v2955
        %2981 = vmatprep.subr.bf16.mxu0 0
        %2982 = vmatpush1.bf16.msra.mxu0 %v2954
        %2983 = vmatprep.subr.bf16.mxu0 0
        %2984 = vmatpush1.bf16.msra.mxu0 %v2953
        %2985 = vmatprep.subr.bf16.mxu0 0
        %2986 = vmatpush2.bf16.msra.mxu0 0
        %2987 = vmatprep.subr.bf16.mxu0 0
        %2988 = vmatpush2.bf16.msra.mxu0 0
        %2989 = vmatprep.subr.bf16.mxu0 0
        %2990 = vmatpush2.bf16.msra.mxu0 0
        %2991 = vmatprep.subr.bf16.mxu0 0
        %2992 = vmatpush2.bf16.msra.mxu0 0
        %2993 = vmatprep.subr.bf16.mxu0 0
        %2994 = vmatpush2.bf16.msra.mxu0 0
        %2995 = vmatprep.subr.bf16.mxu0 0
        %2996 = vmatpush2.bf16.msra.mxu0 0
        %2997 = vmatprep.subr.bf16.mxu0 0
        %2998 = vmatpush2.bf16.msra.mxu0 0
        %2999 = vmatprep.subr.bf16.mxu0 0
        %3000 = vmatpush2.bf16.msra.mxu0 0
        %3001 = vmatprep.mubr.bf16.mxu0 0
        %3002 = vmatmul.mubr.bf16.gmra.mxu0 %v2888
        %v3003 = vpop.f32.mrf.mxu0
        %v3004 = vadd.f32 0.0, %v3003
        %v3005 = vpop.f32.mrf.mxu0
        %v3006 = vpop.f32.mrf.mxu0
        %v3007 = vadd.f32 0.0, %v3006
        %v3008 = vpop.f32.mrf.mxu0
        %3009 = vmatprep.mubr.bf16.mxu0 0
        %3010 = vmatmul.mubr.bf16.gmra.mxu0 %v2889
        %v3011 = vpop.f32.mrf.mxu0
        %v3012 = vadd.f32 0.0, %v3011
        %v3013 = vpop.f32.mrf.mxu0
        %v3014 = vpop.f32.mrf.mxu0
        %v3015 = vadd.f32 0.0, %v3014
        %v3016 = vpop.f32.mrf.mxu0
        %3017 = vmatprep.mubr.bf16.mxu0 0
        %3018 = vmatmul.mubr.bf16.gmra.mxu0 %v2890
        %v3019 = vpop.f32.mrf.mxu0
        %v3020 = vadd.f32 0.0, %v3019
        %v3021 = vpop.f32.mrf.mxu0
        %v3022 = vpop.f32.mrf.mxu0
        %v3023 = vadd.f32 0.0, %v3022
        %v3024 = vpop.f32.mrf.mxu0
        %3025 = vmatprep.mubr.bf16.mxu0 0
        %3026 = vmatmul.mubr.bf16.gmra.mxu0 %v2891
        %v3027 = vpop.f32.mrf.mxu0
        %v3028 = vadd.f32 0.0, %v3027
        %v3029 = vpop.f32.mrf.mxu0
        %v3030 = vpop.f32.mrf.mxu0
        %v3031 = vadd.f32 0.0, %v3030
        %v3032 = vpop.f32.mrf.mxu0
        %3033 = vmatprep.mubr.bf16.mxu0 0
        %3034 = vmatmul.mubr.bf16.gmra.mxu0 %v2892
        %v3035 = vpop.f32.mrf.mxu0
        %v3036 = vadd.f32 0.0, %v3035
        %v3037 = vpop.f32.mrf.mxu0
        %v3038 = vpop.f32.mrf.mxu0
        %v3039 = vadd.f32 0.0, %v3038
        %v3040 = vpop.f32.mrf.mxu0
        %3041 = vmatprep.mubr.bf16.mxu0 0
        %3042 = vmatmul.mubr.bf16.gmra.mxu0 %v2893
        %v3043 = vpop.f32.mrf.mxu0
        %v3044 = vadd.f32 0.0, %v3043
        %v3045 = vpop.f32.mrf.mxu0
        %v3046 = vpop.f32.mrf.mxu0
        %v3047 = vadd.f32 0.0, %v3046
        %v3048 = vpop.f32.mrf.mxu0
        %3049 = vmatprep.mubr.bf16.mxu0 0
        %3050 = vmatmul.mubr.bf16.gmra.mxu0 %v2894
        %v3051 = vpop.f32.mrf.mxu0
        %v3052 = vadd.f32 0.0, %v3051
        %v3053 = vpop.f32.mrf.mxu0
        %v3054 = vpop.f32.mrf.mxu0
        %v3055 = vadd.f32 0.0, %v3054
        %v3056 = vpop.f32.mrf.mxu0
        %3057 = vmatprep.mubr.bf16.mxu0 0
        %3058 = vmatmul.mubr.bf16.gmra.mxu0 %v2895
        %v3059 = vpop.f32.mrf.mxu0
        %v3060 = vadd.f32 0.0, %v3059
        %v3061 = vpop.f32.mrf.mxu0
        %v3062 = vpop.f32.mrf.mxu0
        %v3063 = vadd.f32 0.0, %v3062
        %v3064 = vpop.f32.mrf.mxu0
        %3065 = vmatprep.mubr.bf16.mxu0 0
        %3066 = vmatmul.mubr.bf16.gmra.mxu0 %v2896
        %v3067 = vpop.f32.mrf.mxu0
        %v3068 = vadd.f32 0.0, %v3067
        %v3069 = vpop.f32.mrf.mxu0
        %v3070 = vpop.f32.mrf.mxu0
        %v3071 = vadd.f32 0.0, %v3070
        %v3072 = vpop.f32.mrf.mxu0
        %3073 = vmatprep.mubr.bf16.mxu0 0
        %3074 = vmatmul.mubr.bf16.gmra.mxu0 %v2897
        %v3075 = vpop.f32.mrf.mxu0
        %v3076 = vadd.f32 0.0, %v3075
        %v3077 = vpop.f32.mrf.mxu0
        %v3078 = vpop.f32.mrf.mxu0
        %v3079 = vadd.f32 0.0, %v3078
        %v3080 = vpop.f32.mrf.mxu0
        %3081 = vmatprep.mubr.bf16.mxu0 0
        %3082 = vmatmul.mubr.bf16.gmra.mxu0 %v2898
        %v3083 = vpop.f32.mrf.mxu0
        %v3084 = vadd.f32 0.0, %v3083
        %v3085 = vpop.f32.mrf.mxu0
        %v3086 = vpop.f32.mrf.mxu0
        %v3087 = vadd.f32 0.0, %v3086
        %v3088 = vpop.f32.mrf.mxu0
        %3089 = vmatprep.mubr.bf16.mxu0 0
        %3090 = vmatmul.mubr.bf16.gmra.mxu0 %v2899
        %v3091 = vpop.f32.mrf.mxu0
        %v3092 = vadd.f32 0.0, %v3091
        %v3093 = vpop.f32.mrf.mxu0
        %v3094 = vpop.f32.mrf.mxu0
        %v3095 = vadd.f32 0.0, %v3094
        %v3096 = vpop.f32.mrf.mxu0
        %3097 = vmatprep.mubr.bf16.mxu0 0
        %3098 = vmatmul.mubr.bf16.gmra.mxu0 %v2900
        %v3099 = vpop.f32.mrf.mxu0
        %v3100 = vadd.f32 0.0, %v3099
        %v3101 = vpop.f32.mrf.mxu0
        %v3102 = vpop.f32.mrf.mxu0
        %v3103 = vadd.f32 0.0, %v3102
        %v3104 = vpop.f32.mrf.mxu0
        %3105 = vmatprep.mubr.bf16.mxu0 0
        %3106 = vmatmul.mubr.bf16.gmra.mxu0 %v2901
        %v3107 = vpop.f32.mrf.mxu0
        %v3108 = vadd.f32 0.0, %v3107
        %v3109 = vpop.f32.mrf.mxu0
        %v3110 = vpop.f32.mrf.mxu0
        %v3111 = vadd.f32 0.0, %v3110
        %v3112 = vpop.f32.mrf.mxu0
        %3113 = vmatprep.mubr.bf16.mxu0 0
        %3114 = vmatmul.mubr.bf16.gmra.mxu0 %v2902
        %v3115 = vpop.f32.mrf.mxu0
        %v3116 = vadd.f32 0.0, %v3115
        %v3117 = vpop.f32.mrf.mxu0
        %v3118 = vpop.f32.mrf.mxu0
        %v3119 = vadd.f32 0.0, %v3118
        %v3120 = vpop.f32.mrf.mxu0
        %3121 = vmatprep.mubr.bf16.mxu0 0
        %3122 = vmatmul.mubr.bf16.gmra.mxu0 %v2903
        %v3123 = vpop.f32.mrf.mxu0
        %v3124 = vadd.f32 0.0, %v3123
        %v3125 = vpop.f32.mrf.mxu0
        %v3126 = vpop.f32.mrf.mxu0
        %v3127 = vadd.f32 0.0, %v3126
        %v3128 = vpop.f32.mrf.mxu0
        %3129 = vdwg.mxu0
        %v3130 = vadd.f32 %v2760, %v3004
        %v3131 = vadd.f32 %v2761, %v3007
        %v3132 = vadd.f32 %v2762, %v3012
        %v3133 = vadd.f32 %v2763, %v3015
        %v3134 = vadd.f32 %v2764, %v3020
        %v3135 = vadd.f32 %v2765, %v3023
        %v3136 = vadd.f32 %v2766, %v3028
        %v3137 = vadd.f32 %v2767, %v3031
        %v3138 = vadd.f32 %v2768, %v3036
        %v3139 = vadd.f32 %v2769, %v3039
        %v3140 = vadd.f32 %v2770, %v3044
        %v3141 = vadd.f32 %v2771, %v3047
        %v3142 = vadd.f32 %v2772, %v3052
        %v3143 = vadd.f32 %v2773, %v3055
        %v3144 = vadd.f32 %v2774, %v3060
        %v3145 = vadd.f32 %v2775, %v3063
        %v3146 = vadd.f32 %v2776, %v3068
        %v3147 = vadd.f32 %v2777, %v3071
        %v3148 = vadd.f32 %v2778, %v3076
        %v3149 = vadd.f32 %v2779, %v3079
        %v3150 = vadd.f32 %v2780, %v3084
        %v3151 = vadd.f32 %v2781, %v3087
        %v3152 = vadd.f32 %v2782, %v3092
        %v3153 = vadd.f32 %v2783, %v3095
        %v3154 = vadd.f32 %v2784, %v3100
        %v3155 = vadd.f32 %v2785, %v3103
        %v3156 = vadd.f32 %v2786, %v3108
        %v3157 = vadd.f32 %v2787, %v3111
        %v3158 = vadd.f32 %v2788, %v3116
        %v3159 = vadd.f32 %v2789, %v3119
        %v3160 = vadd.f32 %v2790, %v3124
        %v3161 = vadd.f32 %v2791, %v3127
        %v3162 = vsel %vm1247, 1, 0
        %v3163 = vsel %vm1248, 1, 0
        %v3164 = vsel %vm1249, 1, 0
        %v3165 = vsel %vm1250, 1, 0
        %v3166 = vsel %vm1251, 1, 0
        %v3167 = vsel %vm1252, 1, 0
        %v3168 = vsel %vm1253, 1, 0
        %v3169 = vsel %vm1254, 1, 0
        %v3170 = vsel %vm1255, 1, 0
        %v3171 = vsel %vm1256, 1, 0
        %v3172 = vsel %vm1257, 1, 0
        %v3173 = vsel %vm1258, 1, 0
        %v3174 = vsel %vm1259, 1, 0
        %v3175 = vsel %vm1260, 1, 0
        %v3176 = vsel %vm1261, 1, 0
        %v3177 = vsel %vm1262, 1, 0
        %v3178 = vsel %vm1263, 1, 0
        %v3179 = vsel %vm1264, 1, 0
        %v3180 = vsel %vm1265, 1, 0
        %v3181 = vsel %vm1266, 1, 0
        %v3182 = vsel %vm1267, 1, 0
        %v3183 = vsel %vm1268, 1, 0
        %v3184 = vsel %vm1269, 1, 0
        %v3185 = vsel %vm1270, 1, 0
        %v3186 = vsel %vm1271, 1, 0
        %v3187 = vsel %vm1272, 1, 0
        %v3188 = vsel %vm1273, 1, 0
        %v3189 = vsel %vm1274, 1, 0
        %v3190 = vsel %vm1275, 1, 0
        %v3191 = vsel %vm1276, 1, 0
        %v3192 = vsel %vm1277, 1, 0
        %v3193 = vsel %vm1278, 1, 0
        %vm3194 = vcmp.eq.s32.totalorder %v3162, 1
        %vm3195 = vcmp.eq.s32.totalorder %v3163, 1
        %vm3196 = vcmp.eq.s32.totalorder %v3164, 1
        %vm3197 = vcmp.eq.s32.totalorder %v3165, 1
        %vm3198 = vcmp.eq.s32.totalorder %v3166, 1
        %vm3199 = vcmp.eq.s32.totalorder %v3167, 1
        %vm3200 = vcmp.eq.s32.totalorder %v3168, 1
        %vm3201 = vcmp.eq.s32.totalorder %v3169, 1
        %vm3202 = vcmp.eq.s32.totalorder %v3170, 1
        %vm3203 = vcmp.eq.s32.totalorder %v3171, 1
        %vm3204 = vcmp.eq.s32.totalorder %v3172, 1
        %vm3205 = vcmp.eq.s32.totalorder %v3173, 1
        %vm3206 = vcmp.eq.s32.totalorder %v3174, 1
        %vm3207 = vcmp.eq.s32.totalorder %v3175, 1
        %vm3208 = vcmp.eq.s32.totalorder %v3176, 1
        %vm3209 = vcmp.eq.s32.totalorder %v3177, 1
        %vm3210 = vcmp.eq.s32.totalorder %v3178, 1
        %vm3211 = vcmp.eq.s32.totalorder %v3179, 1
        %vm3212 = vcmp.eq.s32.totalorder %v3180, 1
        %vm3213 = vcmp.eq.s32.totalorder %v3181, 1
        %vm3214 = vcmp.eq.s32.totalorder %v3182, 1
        %vm3215 = vcmp.eq.s32.totalorder %v3183, 1
        %vm3216 = vcmp.eq.s32.totalorder %v3184, 1
        %vm3217 = vcmp.eq.s32.totalorder %v3185, 1
        %vm3218 = vcmp.eq.s32.totalorder %v3186, 1
        %vm3219 = vcmp.eq.s32.totalorder %v3187, 1
        %vm3220 = vcmp.eq.s32.totalorder %v3188, 1
        %vm3221 = vcmp.eq.s32.totalorder %v3189, 1
        %vm3222 = vcmp.eq.s32.totalorder %v3190, 1
        %vm3223 = vcmp.eq.s32.totalorder %v3191, 1
        %vm3224 = vcmp.eq.s32.totalorder %v3192, 1
        %vm3225 = vcmp.eq.s32.totalorder %v3193, 1
        %v3226 = vsel %vm3194, %v2388, 0.0
        %v3227 = vsel %vm3195, %v2387, 0.0
        %v3228 = vsel %vm3196, %v2386, 0.0
        %v3229 = vsel %vm3197, %v2385, 0.0
        %v3230 = vsel %vm3198, %v2384, 0.0
        %v3231 = vsel %vm3199, %v2383, 0.0
        %v3232 = vsel %vm3200, %v2382, 0.0
        %v3233 = vsel %vm3201, %v2381, 0.0
        %v3234 = vsel %vm3202, %v2380, 0.0
        %v3235 = vsel %vm3203, %v2379, 0.0
        %v3236 = vsel %vm3204, %v2378, 0.0
        %v3237 = vsel %vm3205, %v2377, 0.0
        %v3238 = vsel %vm3206, %v2376, 0.0
        %v3239 = vsel %vm3207, %v2375, 0.0
        %v3240 = vsel %vm3208, %v2374, 0.0
        %v3241 = vsel %vm3209, %v2373, 0.0
        %v3242 = vsel %vm3210, %v2372, 0.0
        %v3243 = vsel %vm3211, %v2371, 0.0
        %v3244 = vsel %vm3212, %v2370, 0.0
        %v3245 = vsel %vm3213, %v2369, 0.0
        %v3246 = vsel %vm3214, %v2368, 0.0
        %v3247 = vsel %vm3215, %v2367, 0.0
        %v3248 = vsel %vm3216, %v2366, 0.0
        %v3249 = vsel %vm3217, %v2365, 0.0
        %v3250 = vsel %vm3218, %v2364, 0.0
        %v3251 = vsel %vm3219, %v2363, 0.0
        %v3252 = vsel %vm3220, %v2362, 0.0
        %v3253 = vsel %vm3221, %v2361, 0.0
        %v3254 = vsel %vm3222, %v2360, 0.0
        %v3255 = vsel %vm3223, %v2359, 0.0
        %v3256 = vsel %vm3224, %v2358, 0.0
        %v3257 = vsel %vm3225, %v2389, 0.0
        %v3258 = vpack.c.bf16 %v3227, %v3226
        %v3259 = vpack.c.bf16 %v3229, %v3228
        %v3260 = vpack.c.bf16 %v3231, %v3230
        %v3261 = vpack.c.bf16 %v3233, %v3232
        %v3262 = vpack.c.bf16 %v3235, %v3234
        %v3263 = vpack.c.bf16 %v3237, %v3236
        %v3264 = vpack.c.bf16 %v3239, %v3238
        %v3265 = vpack.c.bf16 %v3241, %v3240
        %v3266 = vpack.c.bf16 %v3243, %v3242
        %v3267 = vpack.c.bf16 %v3245, %v3244
        %v3268 = vpack.c.bf16 %v3247, %v3246
        %v3269 = vpack.c.bf16 %v3249, %v3248
        %v3270 = vpack.c.bf16 %v3251, %v3250
        %v3271 = vpack.c.bf16 %v3253, %v3252
        %v3272 = vpack.c.bf16 %v3255, %v3254
        %v3273 = vpack.c.bf16 %v3257, %v3256
        %s3274 = scalar_lea.vmem [#allocation7], 320
        %v3275 = vld [vmem:[%s3274] sm:$0xf]
        %v3276 = vld [vmem:[%s3274 + $0x4] sm:$0xf]
        %v3277 = vld [vmem:[%s3274 + $0x8] sm:$0xf]
        %v3278 = vld [vmem:[%s3274 + $0xc] sm:$0xf]
        %v3279 = vld [vmem:[%s3274 + $0x10] sm:$0xf]
        %v3280 = vld [vmem:[%s3274 + $0x14] sm:$0xf]
        %v3281 = vld [vmem:[%s3274 + $0x18] sm:$0xf]
        %v3282 = vld [vmem:[%s3274 + $0x1c] sm:$0xf]
        %v3283 = vld [vmem:[%s3274 + $0x20] sm:$0xf]
        %v3284 = vld [vmem:[%s3274 + $0x24] sm:$0xf]
        %v3285 = vld [vmem:[%s3274 + $0x28] sm:$0xf]
        %v3286 = vld [vmem:[%s3274 + $0x2c] sm:$0xf]
        %v3287 = vld [vmem:[%s3274 + $0x30] sm:$0xf]
        %v3288 = vld [vmem:[%s3274 + $0x34] sm:$0xf]
        %v3289 = vld [vmem:[%s3274 + $0x38] sm:$0xf]
        %v3290 = vld [vmem:[%s3274 + $0x3c] sm:$0xf]
        %v3307 = vunpack.c.l.b16 %v3275
        %v3308 = vunpack.c.l.b16 %v3276
        %v3309 = vunpack.c.l.b16 %v3277
        %v3310 = vunpack.c.l.b16 %v3278
        %v3311 = vunpack.c.l.b16 %v3279
        %v3312 = vunpack.c.l.b16 %v3280
        %v3313 = vunpack.c.l.b16 %v3281
        %v3314 = vunpack.c.l.b16 %v3282
        %v3315 = vunpack.c.l.b16 %v3283
        %v3316 = vunpack.c.l.b16 %v3284
        %v3317 = vunpack.c.l.b16 %v3285
        %v3318 = vunpack.c.l.b16 %v3286
        %v3319 = vunpack.c.l.b16 %v3287
        %v3320 = vunpack.c.l.b16 %v3288
        %v3321 = vunpack.c.l.b16 %v3289
        %v3322 = vunpack.c.l.b16 %v3290
        %v3323 = vpack.c.b16 %v3308, %v3307
        %v3324 = vpack.c.b16 %v3310, %v3309
        %v3325 = vpack.c.b16 %v3312, %v3311
        %v3326 = vpack.c.b16 %v3314, %v3313
        %v3327 = vpack.c.b16 %v3316, %v3315
        %v3328 = vpack.c.b16 %v3318, %v3317
        %v3329 = vpack.c.b16 %v3320, %v3319
        %v3330 = vpack.c.b16 %v3322, %v3321
        %3339 = vmatprep.subr.bf16.mxu0 0
        %3340 = vmatpush1.bf16.msra.mxu0 %v3330
        %3341 = vmatprep.subr.bf16.mxu0 0
        %3342 = vmatpush1.bf16.msra.mxu0 %v3329
        %3343 = vmatprep.subr.bf16.mxu0 0
        %3344 = vmatpush1.bf16.msra.mxu0 %v3328
        %3345 = vmatprep.subr.bf16.mxu0 0
        %3346 = vmatpush1.bf16.msra.mxu0 %v3327
        %3347 = vmatprep.subr.bf16.mxu0 0
        %3348 = vmatpush1.bf16.msra.mxu0 %v3326
        %3349 = vmatprep.subr.bf16.mxu0 0
        %3350 = vmatpush1.bf16.msra.mxu0 %v3325
        %3351 = vmatprep.subr.bf16.mxu0 0
        %3352 = vmatpush1.bf16.msra.mxu0 %v3324
        %3353 = vmatprep.subr.bf16.mxu0 0
        %3354 = vmatpush1.bf16.msra.mxu0 %v3323
        %3355 = vmatprep.subr.bf16.mxu0 0
        %3356 = vmatpush2.bf16.msra.mxu0 0
        %3357 = vmatprep.subr.bf16.mxu0 0
        %3358 = vmatpush2.bf16.msra.mxu0 0
        %3359 = vmatprep.subr.bf16.mxu0 0
        %3360 = vmatpush2.bf16.msra.mxu0 0
        %3361 = vmatprep.subr.bf16.mxu0 0
        %3362 = vmatpush2.bf16.msra.mxu0 0
        %3363 = vmatprep.subr.bf16.mxu0 0
        %3364 = vmatpush2.bf16.msra.mxu0 0
        %3365 = vmatprep.subr.bf16.mxu0 0
        %3366 = vmatpush2.bf16.msra.mxu0 0
        %3367 = vmatprep.subr.bf16.mxu0 0
        %3368 = vmatpush2.bf16.msra.mxu0 0
        %3369 = vmatprep.subr.bf16.mxu0 0
        %3370 = vmatpush2.bf16.msra.mxu0 0
        %3371 = vmatprep.mubr.bf16.mxu0 0
        %3372 = vmatmul.mubr.bf16.gmra.mxu0 %v3258
        %v3373 = vpop.f32.mrf.mxu0
        %v3374 = vadd.f32 0.0, %v3373
        %v3375 = vpop.f32.mrf.mxu0
        %v3376 = vpop.f32.mrf.mxu0
        %v3377 = vadd.f32 0.0, %v3376
        %v3378 = vpop.f32.mrf.mxu0
        %3379 = vmatprep.mubr.bf16.mxu0 0
        %3380 = vmatmul.mubr.bf16.gmra.mxu0 %v3259
        %v3381 = vpop.f32.mrf.mxu0
        %v3382 = vadd.f32 0.0, %v3381
        %v3383 = vpop.f32.mrf.mxu0
        %v3384 = vpop.f32.mrf.mxu0
        %v3385 = vadd.f32 0.0, %v3384
        %v3386 = vpop.f32.mrf.mxu0
        %3387 = vmatprep.mubr.bf16.mxu0 0
        %3388 = vmatmul.mubr.bf16.gmra.mxu0 %v3260
        %v3389 = vpop.f32.mrf.mxu0
        %v3390 = vadd.f32 0.0, %v3389
        %v3391 = vpop.f32.mrf.mxu0
        %v3392 = vpop.f32.mrf.mxu0
        %v3393 = vadd.f32 0.0, %v3392
        %v3394 = vpop.f32.mrf.mxu0
        %3395 = vmatprep.mubr.bf16.mxu0 0
        %3396 = vmatmul.mubr.bf16.gmra.mxu0 %v3261
        %v3397 = vpop.f32.mrf.mxu0
        %v3398 = vadd.f32 0.0, %v3397
        %v3399 = vpop.f32.mrf.mxu0
        %v3400 = vpop.f32.mrf.mxu0
        %v3401 = vadd.f32 0.0, %v3400
        %v3402 = vpop.f32.mrf.mxu0
        %3403 = vmatprep.mubr.bf16.mxu0 0
        %3404 = vmatmul.mubr.bf16.gmra.mxu0 %v3262
        %v3405 = vpop.f32.mrf.mxu0
        %v3406 = vadd.f32 0.0, %v3405
        %v3407 = vpop.f32.mrf.mxu0
        %v3408 = vpop.f32.mrf.mxu0
        %v3409 = vadd.f32 0.0, %v3408
        %v3410 = vpop.f32.mrf.mxu0
        %3411 = vmatprep.mubr.bf16.mxu0 0
        %3412 = vmatmul.mubr.bf16.gmra.mxu0 %v3263
        %v3413 = vpop.f32.mrf.mxu0
        %v3414 = vadd.f32 0.0, %v3413
        %v3415 = vpop.f32.mrf.mxu0
        %v3416 = vpop.f32.mrf.mxu0
        %v3417 = vadd.f32 0.0, %v3416
        %v3418 = vpop.f32.mrf.mxu0
        %3419 = vmatprep.mubr.bf16.mxu0 0
        %3420 = vmatmul.mubr.bf16.gmra.mxu0 %v3264
        %v3421 = vpop.f32.mrf.mxu0
        %v3422 = vadd.f32 0.0, %v3421
        %v3423 = vpop.f32.mrf.mxu0
        %v3424 = vpop.f32.mrf.mxu0
        %v3425 = vadd.f32 0.0, %v3424
        %v3426 = vpop.f32.mrf.mxu0
        %3427 = vmatprep.mubr.bf16.mxu0 0
        %3428 = vmatmul.mubr.bf16.gmra.mxu0 %v3265
        %v3429 = vpop.f32.mrf.mxu0
        %v3430 = vadd.f32 0.0, %v3429
        %v3431 = vpop.f32.mrf.mxu0
        %v3432 = vpop.f32.mrf.mxu0
        %v3433 = vadd.f32 0.0, %v3432
        %v3434 = vpop.f32.mrf.mxu0
        %3435 = vmatprep.mubr.bf16.mxu0 0
        %3436 = vmatmul.mubr.bf16.gmra.mxu0 %v3266
        %v3437 = vpop.f32.mrf.mxu0
        %v3438 = vadd.f32 0.0, %v3437
        %v3439 = vpop.f32.mrf.mxu0
        %v3440 = vpop.f32.mrf.mxu0
        %v3441 = vadd.f32 0.0, %v3440
        %v3442 = vpop.f32.mrf.mxu0
        %3443 = vmatprep.mubr.bf16.mxu0 0
        %3444 = vmatmul.mubr.bf16.gmra.mxu0 %v3267
        %v3445 = vpop.f32.mrf.mxu0
        %v3446 = vadd.f32 0.0, %v3445
        %v3447 = vpop.f32.mrf.mxu0
        %v3448 = vpop.f32.mrf.mxu0
        %v3449 = vadd.f32 0.0, %v3448
        %v3450 = vpop.f32.mrf.mxu0
        %3451 = vmatprep.mubr.bf16.mxu0 0
        %3452 = vmatmul.mubr.bf16.gmra.mxu0 %v3268
        %v3453 = vpop.f32.mrf.mxu0
        %v3454 = vadd.f32 0.0, %v3453
        %v3455 = vpop.f32.mrf.mxu0
        %v3456 = vpop.f32.mrf.mxu0
        %v3457 = vadd.f32 0.0, %v3456
        %v3458 = vpop.f32.mrf.mxu0
        %3459 = vmatprep.mubr.bf16.mxu0 0
        %3460 = vmatmul.mubr.bf16.gmra.mxu0 %v3269
        %v3461 = vpop.f32.mrf.mxu0
        %v3462 = vadd.f32 0.0, %v3461
        %v3463 = vpop.f32.mrf.mxu0
        %v3464 = vpop.f32.mrf.mxu0
        %v3465 = vadd.f32 0.0, %v3464
        %v3466 = vpop.f32.mrf.mxu0
        %3467 = vmatprep.mubr.bf16.mxu0 0
        %3468 = vmatmul.mubr.bf16.gmra.mxu0 %v3270
        %v3469 = vpop.f32.mrf.mxu0
        %v3470 = vadd.f32 0.0, %v3469
        %v3471 = vpop.f32.mrf.mxu0
        %v3472 = vpop.f32.mrf.mxu0
        %v3473 = vadd.f32 0.0, %v3472
        %v3474 = vpop.f32.mrf.mxu0
        %3475 = vmatprep.mubr.bf16.mxu0 0
        %3476 = vmatmul.mubr.bf16.gmra.mxu0 %v3271
        %v3477 = vpop.f32.mrf.mxu0
        %v3478 = vadd.f32 0.0, %v3477
        %v3479 = vpop.f32.mrf.mxu0
        %v3480 = vpop.f32.mrf.mxu0
        %v3481 = vadd.f32 0.0, %v3480
        %v3482 = vpop.f32.mrf.mxu0
        %3483 = vmatprep.mubr.bf16.mxu0 0
        %3484 = vmatmul.mubr.bf16.gmra.mxu0 %v3272
        %v3485 = vpop.f32.mrf.mxu0
        %v3486 = vadd.f32 0.0, %v3485
        %v3487 = vpop.f32.mrf.mxu0
        %v3488 = vpop.f32.mrf.mxu0
        %v3489 = vadd.f32 0.0, %v3488
        %v3490 = vpop.f32.mrf.mxu0
        %3491 = vmatprep.mubr.bf16.mxu0 0
        %3492 = vmatmul.mubr.bf16.gmra.mxu0 %v3273
        %v3493 = vpop.f32.mrf.mxu0
        %v3494 = vadd.f32 0.0, %v3493
        %v3495 = vpop.f32.mrf.mxu0
        %v3496 = vpop.f32.mrf.mxu0
        %v3497 = vadd.f32 0.0, %v3496
        %v3498 = vpop.f32.mrf.mxu0
        %3499 = vdwg.mxu0
        %v3500 = vadd.f32 %v3130, %v3374
        %v3501 = vadd.f32 %v3131, %v3377
        %v3502 = vadd.f32 %v3132, %v3382
        %v3503 = vadd.f32 %v3133, %v3385
        %v3504 = vadd.f32 %v3134, %v3390
        %v3505 = vadd.f32 %v3135, %v3393
        %v3506 = vadd.f32 %v3136, %v3398
        %v3507 = vadd.f32 %v3137, %v3401
        %v3508 = vadd.f32 %v3138, %v3406
        %v3509 = vadd.f32 %v3139, %v3409
        %v3510 = vadd.f32 %v3140, %v3414
        %v3511 = vadd.f32 %v3141, %v3417
        %v3512 = vadd.f32 %v3142, %v3422
        %v3513 = vadd.f32 %v3143, %v3425
        %v3514 = vadd.f32 %v3144, %v3430
        %v3515 = vadd.f32 %v3145, %v3433
        %v3516 = vadd.f32 %v3146, %v3438
        %v3517 = vadd.f32 %v3147, %v3441
        %v3518 = vadd.f32 %v3148, %v3446
        %v3519 = vadd.f32 %v3149, %v3449
        %v3520 = vadd.f32 %v3150, %v3454
        %v3521 = vadd.f32 %v3151, %v3457
        %v3522 = vadd.f32 %v3152, %v3462
        %v3523 = vadd.f32 %v3153, %v3465
        %v3524 = vadd.f32 %v3154, %v3470
        %v3525 = vadd.f32 %v3155, %v3473
        %v3526 = vadd.f32 %v3156, %v3478
        %v3527 = vadd.f32 %v3157, %v3481
        %v3528 = vadd.f32 %v3158, %v3486
        %v3529 = vadd.f32 %v3159, %v3489
        %v3530 = vadd.f32 %v3160, %v3494
        %v3531 = vadd.f32 %v3161, %v3497
        %vm3532 = vmand %vm1183, %vm1215
        %vm3533 = vmand %vm1184, %vm1216
        %vm3534 = vmand %vm1185, %vm1217
        %vm3535 = vmand %vm1186, %vm1218
        %vm3536 = vmand %vm1187, %vm1219
        %vm3537 = vmand %vm1188, %vm1220
        %vm3538 = vmand %vm1189, %vm1221
        %vm3539 = vmand %vm1190, %vm1222
        %vm3540 = vmand %vm1191, %vm1223
        %vm3541 = vmand %vm1192, %vm1224
        %vm3542 = vmand %vm1193, %vm1225
        %vm3543 = vmand %vm1194, %vm1226
        %vm3544 = vmand %vm1195, %vm1227
        %vm3545 = vmand %vm1196, %vm1228
        %vm3546 = vmand %vm1197, %vm1229
        %vm3547 = vmand %vm1198, %vm1230
        %vm3548 = vmand %vm1199, %vm1231
        %vm3549 = vmand %vm1200, %vm1232
        %vm3550 = vmand %vm1201, %vm1233
        %vm3551 = vmand %vm1202, %vm1234
        %vm3552 = vmand %vm1203, %vm1235
        %vm3553 = vmand %vm1204, %vm1236
        %vm3554 = vmand %vm1205, %vm1237
        %vm3555 = vmand %vm1206, %vm1238
        %vm3556 = vmand %vm1207, %vm1239
        %vm3557 = vmand %vm1208, %vm1240
        %vm3558 = vmand %vm1209, %vm1241
        %vm3559 = vmand %vm1210, %vm1242
        %vm3560 = vmand %vm1211, %vm1243
        %vm3561 = vmand %vm1212, %vm1244
        %vm3562 = vmand %vm1213, %vm1245
        %vm3563 = vmand %vm1214, %vm1246
        %v3564 = vsel %vm3532, 1, 0
        %v3565 = vsel %vm3533, 1, 0
        %v3566 = vsel %vm3534, 1, 0
        %v3567 = vsel %vm3535, 1, 0
        %v3568 = vsel %vm3536, 1, 0
        %v3569 = vsel %vm3537, 1, 0
        %v3570 = vsel %vm3538, 1, 0
        %v3571 = vsel %vm3539, 1, 0
        %v3572 = vsel %vm3540, 1, 0
        %v3573 = vsel %vm3541, 1, 0
        %v3574 = vsel %vm3542, 1, 0
        %v3575 = vsel %vm3543, 1, 0
        %v3576 = vsel %vm3544, 1, 0
        %v3577 = vsel %vm3545, 1, 0
        %v3578 = vsel %vm3546, 1, 0
        %v3579 = vsel %vm3547, 1, 0
        %v3580 = vsel %vm3548, 1, 0
        %v3581 = vsel %vm3549, 1, 0
        %v3582 = vsel %vm3550, 1, 0
        %v3583 = vsel %vm3551, 1, 0
        %v3584 = vsel %vm3552, 1, 0
        %v3585 = vsel %vm3553, 1, 0
        %v3586 = vsel %vm3554, 1, 0
        %v3587 = vsel %vm3555, 1, 0
        %v3588 = vsel %vm3556, 1, 0
        %v3589 = vsel %vm3557, 1, 0
        %v3590 = vsel %vm3558, 1, 0
        %v3591 = vsel %vm3559, 1, 0
        %v3592 = vsel %vm3560, 1, 0
        %v3593 = vsel %vm3561, 1, 0
        %v3594 = vsel %vm3562, 1, 0
        %v3595 = vsel %vm3563, 1, 0
        %vm3596 = vcmp.eq.s32.totalorder %v3564, 1
        %vm3597 = vcmp.eq.s32.totalorder %v3565, 1
        %vm3598 = vcmp.eq.s32.totalorder %v3566, 1
        %vm3599 = vcmp.eq.s32.totalorder %v3567, 1
        %vm3600 = vcmp.eq.s32.totalorder %v3568, 1
        %vm3601 = vcmp.eq.s32.totalorder %v3569, 1
        %vm3602 = vcmp.eq.s32.totalorder %v3570, 1
        %vm3603 = vcmp.eq.s32.totalorder %v3571, 1
        %vm3604 = vcmp.eq.s32.totalorder %v3572, 1
        %vm3605 = vcmp.eq.s32.totalorder %v3573, 1
        %vm3606 = vcmp.eq.s32.totalorder %v3574, 1
        %vm3607 = vcmp.eq.s32.totalorder %v3575, 1
        %vm3608 = vcmp.eq.s32.totalorder %v3576, 1
        %vm3609 = vcmp.eq.s32.totalorder %v3577, 1
        %vm3610 = vcmp.eq.s32.totalorder %v3578, 1
        %vm3611 = vcmp.eq.s32.totalorder %v3579, 1
        %vm3612 = vcmp.eq.s32.totalorder %v3580, 1
        %vm3613 = vcmp.eq.s32.totalorder %v3581, 1
        %vm3614 = vcmp.eq.s32.totalorder %v3582, 1
        %vm3615 = vcmp.eq.s32.totalorder %v3583, 1
        %vm3616 = vcmp.eq.s32.totalorder %v3584, 1
        %vm3617 = vcmp.eq.s32.totalorder %v3585, 1
        %vm3618 = vcmp.eq.s32.totalorder %v3586, 1
        %vm3619 = vcmp.eq.s32.totalorder %v3587, 1
        %vm3620 = vcmp.eq.s32.totalorder %v3588, 1
        %vm3621 = vcmp.eq.s32.totalorder %v3589, 1
        %vm3622 = vcmp.eq.s32.totalorder %v3590, 1
        %vm3623 = vcmp.eq.s32.totalorder %v3591, 1
        %vm3624 = vcmp.eq.s32.totalorder %v3592, 1
        %vm3625 = vcmp.eq.s32.totalorder %v3593, 1
        %vm3626 = vcmp.eq.s32.totalorder %v3594, 1
        %vm3627 = vcmp.eq.s32.totalorder %v3595, 1
        %v3628 = vsel %vm3596, %v1374, 0.0
        %v3629 = vsel %vm3597, %v1373, 0.0
        %v3630 = vsel %vm3598, %v1372, 0.0
        %v3631 = vsel %vm3599, %v1371, 0.0
        %v3632 = vsel %vm3600, %v1370, 0.0
        %v3633 = vsel %vm3601, %v1369, 0.0
        %v3634 = vsel %vm3602, %v1368, 0.0
        %v3635 = vsel %vm3603, %v1367, 0.0
        %v3636 = vsel %vm3604, %v1366, 0.0
        %v3637 = vsel %vm3605, %v1365, 0.0
        %v3638 = vsel %vm3606, %v1364, 0.0
        %v3639 = vsel %vm3607, %v1363, 0.0
        %v3640 = vsel %vm3608, %v1362, 0.0
        %v3641 = vsel %vm3609, %v1361, 0.0
        %v3642 = vsel %vm3610, %v1360, 0.0
        %v3643 = vsel %vm3611, %v1359, 0.0
        %v3644 = vsel %vm3612, %v1358, 0.0
        %v3645 = vsel %vm3613, %v1357, 0.0
        %v3646 = vsel %vm3614, %v1356, 0.0
        %v3647 = vsel %vm3615, %v1355, 0.0
        %v3648 = vsel %vm3616, %v1354, 0.0
        %v3649 = vsel %vm3617, %v1353, 0.0
        %v3650 = vsel %vm3618, %v1352, 0.0
        %v3651 = vsel %vm3619, %v1351, 0.0
        %v3652 = vsel %vm3620, %v1350, 0.0
        %v3653 = vsel %vm3621, %v1349, 0.0
        %v3654 = vsel %vm3622, %v1348, 0.0
        %v3655 = vsel %vm3623, %v1347, 0.0
        %v3656 = vsel %vm3624, %v1346, 0.0
        %v3657 = vsel %vm3625, %v1345, 0.0
        %v3658 = vsel %vm3626, %v1376, 0.0
        %v3659 = vsel %vm3627, %v1375, 0.0
        %v3660 = vpack.c.bf16 %v3629, %v3628
        %v3661 = vpack.c.bf16 %v3631, %v3630
        %v3662 = vpack.c.bf16 %v3633, %v3632
        %v3663 = vpack.c.bf16 %v3635, %v3634
        %v3664 = vpack.c.bf16 %v3637, %v3636
        %v3665 = vpack.c.bf16 %v3639, %v3638
        %v3666 = vpack.c.bf16 %v3641, %v3640
        %v3667 = vpack.c.bf16 %v3643, %v3642
        %v3668 = vpack.c.bf16 %v3645, %v3644
        %v3669 = vpack.c.bf16 %v3647, %v3646
        %v3670 = vpack.c.bf16 %v3649, %v3648
        %v3671 = vpack.c.bf16 %v3651, %v3650
        %v3672 = vpack.c.bf16 %v3653, %v3652
        %v3673 = vpack.c.bf16 %v3655, %v3654
        %v3674 = vpack.c.bf16 %v3657, %v3656
        %v3675 = vpack.c.bf16 %v3659, %v3658
        %s3676 = scalar_lea.vmem [#allocation7], 384
        %v3677 = vld [vmem:[%s3676] sm:$0xf]
        %v3678 = vld [vmem:[%s3676 + $0x4] sm:$0xf]
        %v3679 = vld [vmem:[%s3676 + $0x8] sm:$0xf]
        %v3680 = vld [vmem:[%s3676 + $0xc] sm:$0xf]
        %v3681 = vld [vmem:[%s3676 + $0x10] sm:$0xf]
        %v3682 = vld [vmem:[%s3676 + $0x14] sm:$0xf]
        %v3683 = vld [vmem:[%s3676 + $0x18] sm:$0xf]
        %v3684 = vld [vmem:[%s3676 + $0x1c] sm:$0xf]
        %v3685 = vld [vmem:[%s3676 + $0x20] sm:$0xf]
        %v3686 = vld [vmem:[%s3676 + $0x24] sm:$0xf]
        %v3687 = vld [vmem:[%s3676 + $0x28] sm:$0xf]
        %v3688 = vld [vmem:[%s3676 + $0x2c] sm:$0xf]
        %v3689 = vld [vmem:[%s3676 + $0x30] sm:$0xf]
        %v3690 = vld [vmem:[%s3676 + $0x34] sm:$0xf]
        %v3691 = vld [vmem:[%s3676 + $0x38] sm:$0xf]
        %v3692 = vld [vmem:[%s3676 + $0x3c] sm:$0xf]
        %v3709 = vunpack.c.l.b16 %v3677
        %v3710 = vunpack.c.l.b16 %v3678
        %v3711 = vunpack.c.l.b16 %v3679
        %v3712 = vunpack.c.l.b16 %v3680
        %v3713 = vunpack.c.l.b16 %v3681
        %v3714 = vunpack.c.l.b16 %v3682
        %v3715 = vunpack.c.l.b16 %v3683
        %v3716 = vunpack.c.l.b16 %v3684
        %v3717 = vunpack.c.l.b16 %v3685
        %v3718 = vunpack.c.l.b16 %v3686
        %v3719 = vunpack.c.l.b16 %v3687
        %v3720 = vunpack.c.l.b16 %v3688
        %v3721 = vunpack.c.l.b16 %v3689
        %v3722 = vunpack.c.l.b16 %v3690
        %v3723 = vunpack.c.l.b16 %v3691
        %v3724 = vunpack.c.l.b16 %v3692
        %v3725 = vpack.c.b16 %v3710, %v3709
        %v3726 = vpack.c.b16 %v3712, %v3711
        %v3727 = vpack.c.b16 %v3714, %v3713
        %v3728 = vpack.c.b16 %v3716, %v3715
        %v3729 = vpack.c.b16 %v3718, %v3717
        %v3730 = vpack.c.b16 %v3720, %v3719
        %v3731 = vpack.c.b16 %v3722, %v3721
        %v3732 = vpack.c.b16 %v3724, %v3723
        %3741 = vmatprep.subr.bf16.mxu0 0
        %3742 = vmatpush1.bf16.msra.mxu0 %v3732
        %3743 = vmatprep.subr.bf16.mxu0 0
        %3744 = vmatpush1.bf16.msra.mxu0 %v3731
        %3745 = vmatprep.subr.bf16.mxu0 0
        %3746 = vmatpush1.bf16.msra.mxu0 %v3730
        %3747 = vmatprep.subr.bf16.mxu0 0
        %3748 = vmatpush1.bf16.msra.mxu0 %v3729
        %3749 = vmatprep.subr.bf16.mxu0 0
        %3750 = vmatpush1.bf16.msra.mxu0 %v3728
        %3751 = vmatprep.subr.bf16.mxu0 0
        %3752 = vmatpush1.bf16.msra.mxu0 %v3727
        %3753 = vmatprep.subr.bf16.mxu0 0
        %3754 = vmatpush1.bf16.msra.mxu0 %v3726
        %3755 = vmatprep.subr.bf16.mxu0 0
        %3756 = vmatpush1.bf16.msra.mxu0 %v3725
        %3757 = vmatprep.subr.bf16.mxu0 0
        %3758 = vmatpush2.bf16.msra.mxu0 0
        %3759 = vmatprep.subr.bf16.mxu0 0
        %3760 = vmatpush2.bf16.msra.mxu0 0
        %3761 = vmatprep.subr.bf16.mxu0 0
        %3762 = vmatpush2.bf16.msra.mxu0 0
        %3763 = vmatprep.subr.bf16.mxu0 0
        %3764 = vmatpush2.bf16.msra.mxu0 0
        %3765 = vmatprep.subr.bf16.mxu0 0
        %3766 = vmatpush2.bf16.msra.mxu0 0
        %3767 = vmatprep.subr.bf16.mxu0 0
        %3768 = vmatpush2.bf16.msra.mxu0 0
        %3769 = vmatprep.subr.bf16.mxu0 0
        %3770 = vmatpush2.bf16.msra.mxu0 0
        %3771 = vmatprep.subr.bf16.mxu0 0
        %3772 = vmatpush2.bf16.msra.mxu0 0
        %3773 = vmatprep.mubr.bf16.mxu0 0
        %3774 = vmatmul.mubr.bf16.gmra.mxu0 %v3660
        %v3775 = vpop.f32.mrf.mxu0
        %v3776 = vadd.f32 0.0, %v3775
        %v3777 = vpop.f32.mrf.mxu0
        %v3778 = vpop.f32.mrf.mxu0
        %v3779 = vadd.f32 0.0, %v3778
        %v3780 = vpop.f32.mrf.mxu0
        %3781 = vmatprep.mubr.bf16.mxu0 0
        %3782 = vmatmul.mubr.bf16.gmra.mxu0 %v3661
        %v3783 = vpop.f32.mrf.mxu0
        %v3784 = vadd.f32 0.0, %v3783
        %v3785 = vpop.f32.mrf.mxu0
        %v3786 = vpop.f32.mrf.mxu0
        %v3787 = vadd.f32 0.0, %v3786
        %v3788 = vpop.f32.mrf.mxu0
        %3789 = vmatprep.mubr.bf16.mxu0 0
        %3790 = vmatmul.mubr.bf16.gmra.mxu0 %v3662
        %v3791 = vpop.f32.mrf.mxu0
        %v3792 = vadd.f32 0.0, %v3791
        %v3793 = vpop.f32.mrf.mxu0
        %v3794 = vpop.f32.mrf.mxu0
        %v3795 = vadd.f32 0.0, %v3794
        %v3796 = vpop.f32.mrf.mxu0
        %3797 = vmatprep.mubr.bf16.mxu0 0
        %3798 = vmatmul.mubr.bf16.gmra.mxu0 %v3663
        %v3799 = vpop.f32.mrf.mxu0
        %v3800 = vadd.f32 0.0, %v3799
        %v3801 = vpop.f32.mrf.mxu0
        %v3802 = vpop.f32.mrf.mxu0
        %v3803 = vadd.f32 0.0, %v3802
        %v3804 = vpop.f32.mrf.mxu0
        %3805 = vmatprep.mubr.bf16.mxu0 0
        %3806 = vmatmul.mubr.bf16.gmra.mxu0 %v3664
        %v3807 = vpop.f32.mrf.mxu0
        %v3808 = vadd.f32 0.0, %v3807
        %v3809 = vpop.f32.mrf.mxu0
        %v3810 = vpop.f32.mrf.mxu0
        %v3811 = vadd.f32 0.0, %v3810
        %v3812 = vpop.f32.mrf.mxu0
        %3813 = vmatprep.mubr.bf16.mxu0 0
        %3814 = vmatmul.mubr.bf16.gmra.mxu0 %v3665
        %v3815 = vpop.f32.mrf.mxu0
        %v3816 = vadd.f32 0.0, %v3815
        %v3817 = vpop.f32.mrf.mxu0
        %v3818 = vpop.f32.mrf.mxu0
        %v3819 = vadd.f32 0.0, %v3818
        %v3820 = vpop.f32.mrf.mxu0
        %3821 = vmatprep.mubr.bf16.mxu0 0
        %3822 = vmatmul.mubr.bf16.gmra.mxu0 %v3666
        %v3823 = vpop.f32.mrf.mxu0
        %v3824 = vadd.f32 0.0, %v3823
        %v3825 = vpop.f32.mrf.mxu0
        %v3826 = vpop.f32.mrf.mxu0
        %v3827 = vadd.f32 0.0, %v3826
        %v3828 = vpop.f32.mrf.mxu0
        %3829 = vmatprep.mubr.bf16.mxu0 0
        %3830 = vmatmul.mubr.bf16.gmra.mxu0 %v3667
        %v3831 = vpop.f32.mrf.mxu0
        %v3832 = vadd.f32 0.0, %v3831
        %v3833 = vpop.f32.mrf.mxu0
        %v3834 = vpop.f32.mrf.mxu0
        %v3835 = vadd.f32 0.0, %v3834
        %v3836 = vpop.f32.mrf.mxu0
        %3837 = vmatprep.mubr.bf16.mxu0 0
        %3838 = vmatmul.mubr.bf16.gmra.mxu0 %v3668
        %v3839 = vpop.f32.mrf.mxu0
        %v3840 = vadd.f32 0.0, %v3839
        %v3841 = vpop.f32.mrf.mxu0
        %v3842 = vpop.f32.mrf.mxu0
        %v3843 = vadd.f32 0.0, %v3842
        %v3844 = vpop.f32.mrf.mxu0
        %3845 = vmatprep.mubr.bf16.mxu0 0
        %3846 = vmatmul.mubr.bf16.gmra.mxu0 %v3669
        %v3847 = vpop.f32.mrf.mxu0
        %v3848 = vadd.f32 0.0, %v3847
        %v3849 = vpop.f32.mrf.mxu0
        %v3850 = vpop.f32.mrf.mxu0
        %v3851 = vadd.f32 0.0, %v3850
        %v3852 = vpop.f32.mrf.mxu0
        %3853 = vmatprep.mubr.bf16.mxu0 0
        %3854 = vmatmul.mubr.bf16.gmra.mxu0 %v3670
        %v3855 = vpop.f32.mrf.mxu0
        %v3856 = vadd.f32 0.0, %v3855
        %v3857 = vpop.f32.mrf.mxu0
        %v3858 = vpop.f32.mrf.mxu0
        %v3859 = vadd.f32 0.0, %v3858
        %v3860 = vpop.f32.mrf.mxu0
        %3861 = vmatprep.mubr.bf16.mxu0 0
        %3862 = vmatmul.mubr.bf16.gmra.mxu0 %v3671
        %v3863 = vpop.f32.mrf.mxu0
        %v3864 = vadd.f32 0.0, %v3863
        %v3865 = vpop.f32.mrf.mxu0
        %v3866 = vpop.f32.mrf.mxu0
        %v3867 = vadd.f32 0.0, %v3866
        %v3868 = vpop.f32.mrf.mxu0
        %3869 = vmatprep.mubr.bf16.mxu0 0
        %3870 = vmatmul.mubr.bf16.gmra.mxu0 %v3672
        %v3871 = vpop.f32.mrf.mxu0
        %v3872 = vadd.f32 0.0, %v3871
        %v3873 = vpop.f32.mrf.mxu0
        %v3874 = vpop.f32.mrf.mxu0
        %v3875 = vadd.f32 0.0, %v3874
        %v3876 = vpop.f32.mrf.mxu0
        %3877 = vmatprep.mubr.bf16.mxu0 0
        %3878 = vmatmul.mubr.bf16.gmra.mxu0 %v3673
        %v3879 = vpop.f32.mrf.mxu0
        %v3880 = vadd.f32 0.0, %v3879
        %v3881 = vpop.f32.mrf.mxu0
        %v3882 = vpop.f32.mrf.mxu0
        %v3883 = vadd.f32 0.0, %v3882
        %v3884 = vpop.f32.mrf.mxu0
        %3885 = vmatprep.mubr.bf16.mxu0 0
        %3886 = vmatmul.mubr.bf16.gmra.mxu0 %v3674
        %v3887 = vpop.f32.mrf.mxu0
        %v3888 = vadd.f32 0.0, %v3887
        %v3889 = vpop.f32.mrf.mxu0
        %v3890 = vpop.f32.mrf.mxu0
        %v3891 = vadd.f32 0.0, %v3890
        %v3892 = vpop.f32.mrf.mxu0
        %3893 = vmatprep.mubr.bf16.mxu0 0
        %3894 = vmatmul.mubr.bf16.gmra.mxu0 %v3675
        %v3895 = vpop.f32.mrf.mxu0
        %v3896 = vadd.f32 0.0, %v3895
        %v3897 = vpop.f32.mrf.mxu0
        %v3898 = vpop.f32.mrf.mxu0
        %v3899 = vadd.f32 0.0, %v3898
        %v3900 = vpop.f32.mrf.mxu0
        %3901 = vdwg.mxu0
        %v3902 = vadd.f32 %v3500, %v3776
        %v3903 = vadd.f32 %v3501, %v3779
        %v3904 = vadd.f32 %v3502, %v3784
        %v3905 = vadd.f32 %v3503, %v3787
        %v3906 = vadd.f32 %v3504, %v3792
        %v3907 = vadd.f32 %v3505, %v3795
        %v3908 = vadd.f32 %v3506, %v3800
        %v3909 = vadd.f32 %v3507, %v3803
        %v3910 = vadd.f32 %v3508, %v3808
        %v3911 = vadd.f32 %v3509, %v3811
        %v3912 = vadd.f32 %v3510, %v3816
        %v3913 = vadd.f32 %v3511, %v3819
        %v3914 = vadd.f32 %v3512, %v3824
        %v3915 = vadd.f32 %v3513, %v3827
        %v3916 = vadd.f32 %v3514, %v3832
        %v3917 = vadd.f32 %v3515, %v3835
        %v3918 = vadd.f32 %v3516, %v3840
        %v3919 = vadd.f32 %v3517, %v3843
        %v3920 = vadd.f32 %v3518, %v3848
        %v3921 = vadd.f32 %v3519, %v3851
        %v3922 = vadd.f32 %v3520, %v3856
        %v3923 = vadd.f32 %v3521, %v3859
        %v3924 = vadd.f32 %v3522, %v3864
        %v3925 = vadd.f32 %v3523, %v3867
        %v3926 = vadd.f32 %v3524, %v3872
        %v3927 = vadd.f32 %v3525, %v3875
        %v3928 = vadd.f32 %v3526, %v3880
        %v3929 = vadd.f32 %v3527, %v3883
        %v3930 = vadd.f32 %v3528, %v3888
        %v3931 = vadd.f32 %v3529, %v3891
        %v3932 = vadd.f32 %v3530, %v3896
        %v3933 = vadd.f32 %v3531, %v3899
        %v3934 = vsel %vm1183, 1, 0
        %v3935 = vsel %vm1184, 1, 0
        %v3936 = vsel %vm1185, 1, 0
        %v3937 = vsel %vm1186, 1, 0
        %v3938 = vsel %vm1187, 1, 0
        %v3939 = vsel %vm1188, 1, 0
        %v3940 = vsel %vm1189, 1, 0
        %v3941 = vsel %vm1190, 1, 0
        %v3942 = vsel %vm1191, 1, 0
        %v3943 = vsel %vm1192, 1, 0
        %v3944 = vsel %vm1193, 1, 0
        %v3945 = vsel %vm1194, 1, 0
        %v3946 = vsel %vm1195, 1, 0
        %v3947 = vsel %vm1196, 1, 0
        %v3948 = vsel %vm1197, 1, 0
        %v3949 = vsel %vm1198, 1, 0
        %v3950 = vsel %vm1199, 1, 0
        %v3951 = vsel %vm1200, 1, 0
        %v3952 = vsel %vm1201, 1, 0
        %v3953 = vsel %vm1202, 1, 0
        %v3954 = vsel %vm1203, 1, 0
        %v3955 = vsel %vm1204, 1, 0
        %v3956 = vsel %vm1205, 1, 0
        %v3957 = vsel %vm1206, 1, 0
        %v3958 = vsel %vm1207, 1, 0
        %v3959 = vsel %vm1208, 1, 0
        %v3960 = vsel %vm1209, 1, 0
        %v3961 = vsel %vm1210, 1, 0
        %v3962 = vsel %vm1211, 1, 0
        %v3963 = vsel %vm1212, 1, 0
        %v3964 = vsel %vm1213, 1, 0
        %v3965 = vsel %vm1214, 1, 0
        %vm3966 = vcmp.eq.s32.totalorder %v3934, 1
        %vm3967 = vcmp.eq.s32.totalorder %v3935, 1
        %vm3968 = vcmp.eq.s32.totalorder %v3936, 1
        %vm3969 = vcmp.eq.s32.totalorder %v3937, 1
        %vm3970 = vcmp.eq.s32.totalorder %v3938, 1
        %vm3971 = vcmp.eq.s32.totalorder %v3939, 1
        %vm3972 = vcmp.eq.s32.totalorder %v3940, 1
        %vm3973 = vcmp.eq.s32.totalorder %v3941, 1
        %vm3974 = vcmp.eq.s32.totalorder %v3942, 1
        %vm3975 = vcmp.eq.s32.totalorder %v3943, 1
        %vm3976 = vcmp.eq.s32.totalorder %v3944, 1
        %vm3977 = vcmp.eq.s32.totalorder %v3945, 1
        %vm3978 = vcmp.eq.s32.totalorder %v3946, 1
        %vm3979 = vcmp.eq.s32.totalorder %v3947, 1
        %vm3980 = vcmp.eq.s32.totalorder %v3948, 1
        %vm3981 = vcmp.eq.s32.totalorder %v3949, 1
        %vm3982 = vcmp.eq.s32.totalorder %v3950, 1
        %vm3983 = vcmp.eq.s32.totalorder %v3951, 1
        %vm3984 = vcmp.eq.s32.totalorder %v3952, 1
        %vm3985 = vcmp.eq.s32.totalorder %v3953, 1
        %vm3986 = vcmp.eq.s32.totalorder %v3954, 1
        %vm3987 = vcmp.eq.s32.totalorder %v3955, 1
        %vm3988 = vcmp.eq.s32.totalorder %v3956, 1
        %vm3989 = vcmp.eq.s32.totalorder %v3957, 1
        %vm3990 = vcmp.eq.s32.totalorder %v3958, 1
        %vm3991 = vcmp.eq.s32.totalorder %v3959, 1
        %vm3992 = vcmp.eq.s32.totalorder %v3960, 1
        %vm3993 = vcmp.eq.s32.totalorder %v3961, 1
        %vm3994 = vcmp.eq.s32.totalorder %v3962, 1
        %vm3995 = vcmp.eq.s32.totalorder %v3963, 1
        %vm3996 = vcmp.eq.s32.totalorder %v3964, 1
        %vm3997 = vcmp.eq.s32.totalorder %v3965, 1
        %v3998 = vsel %vm3966, %v704, 0.0
        %v3999 = vsel %vm3967, %v705, 0.0
        %v4000 = vsel %vm3968, %v706, 0.0
        %v4001 = vsel %vm3969, %v707, 0.0
        %v4002 = vsel %vm3970, %v708, 0.0
        %v4003 = vsel %vm3971, %v709, 0.0
        %v4004 = vsel %vm3972, %v710, 0.0
        %v4005 = vsel %vm3973, %v711, 0.0
        %v4006 = vsel %vm3974, %v712, 0.0
        %v4007 = vsel %vm3975, %v713, 0.0
        %v4008 = vsel %vm3976, %v714, 0.0
        %v4009 = vsel %vm3977, %v715, 0.0
        %v4010 = vsel %vm3978, %v716, 0.0
        %v4011 = vsel %vm3979, %v717, 0.0
        %v4012 = vsel %vm3980, %v718, 0.0
        %v4013 = vsel %vm3981, %v719, 0.0
        %v4014 = vsel %vm3982, %v720, 0.0
        %v4015 = vsel %vm3983, %v721, 0.0
        %v4016 = vsel %vm3984, %v722, 0.0
        %v4017 = vsel %vm3985, %v723, 0.0
        %v4018 = vsel %vm3986, %v724, 0.0
        %v4019 = vsel %vm3987, %v725, 0.0
        %v4020 = vsel %vm3988, %v726, 0.0
        %v4021 = vsel %vm3989, %v727, 0.0
        %v4022 = vsel %vm3990, %v728, 0.0
        %v4023 = vsel %vm3991, %v729, 0.0
        %v4024 = vsel %vm3992, %v730, 0.0
        %v4025 = vsel %vm3993, %v731, 0.0
        %v4026 = vsel %vm3994, %v732, 0.0
        %v4027 = vsel %vm3995, %v733, 0.0
        %v4028 = vsel %vm3996, %v702, 0.0
        %v4029 = vsel %vm3997, %v703, 0.0
        %v4030 = vpack.c.bf16 %v3999, %v3998
        %v4031 = vpack.c.bf16 %v4001, %v4000
        %v4032 = vpack.c.bf16 %v4003, %v4002
        %v4033 = vpack.c.bf16 %v4005, %v4004
        %v4034 = vpack.c.bf16 %v4007, %v4006
        %v4035 = vpack.c.bf16 %v4009, %v4008
        %v4036 = vpack.c.bf16 %v4011, %v4010
        %v4037 = vpack.c.bf16 %v4013, %v4012
        %v4038 = vpack.c.bf16 %v4015, %v4014
        %v4039 = vpack.c.bf16 %v4017, %v4016
        %v4040 = vpack.c.bf16 %v4019, %v4018
        %v4041 = vpack.c.bf16 %v4021, %v4020
        %v4042 = vpack.c.bf16 %v4023, %v4022
        %v4043 = vpack.c.bf16 %v4025, %v4024
        %v4044 = vpack.c.bf16 %v4027, %v4026
        %v4045 = vpack.c.bf16 %v4029, %v4028
        %s4046 = scalar_lea.vmem [#allocation7], 448
        %v4047 = vld [vmem:[%s4046] sm:$0xf]
        %v4048 = vld [vmem:[%s4046 + $0x4] sm:$0xf]
        %v4049 = vld [vmem:[%s4046 + $0x8] sm:$0xf]
        %v4050 = vld [vmem:[%s4046 + $0xc] sm:$0xf]
        %v4051 = vld [vmem:[%s4046 + $0x10] sm:$0xf]
        %v4052 = vld [vmem:[%s4046 + $0x14] sm:$0xf]
        %v4053 = vld [vmem:[%s4046 + $0x18] sm:$0xf]
        %v4054 = vld [vmem:[%s4046 + $0x1c] sm:$0xf]
        %v4055 = vld [vmem:[%s4046 + $0x20] sm:$0xf]
        %v4056 = vld [vmem:[%s4046 + $0x24] sm:$0xf]
        %v4057 = vld [vmem:[%s4046 + $0x28] sm:$0xf]
        %v4058 = vld [vmem:[%s4046 + $0x2c] sm:$0xf]
        %v4059 = vld [vmem:[%s4046 + $0x30] sm:$0xf]
        %v4060 = vld [vmem:[%s4046 + $0x34] sm:$0xf]
        %v4061 = vld [vmem:[%s4046 + $0x38] sm:$0xf]
        %v4062 = vld [vmem:[%s4046 + $0x3c] sm:$0xf]
        %v4079 = vunpack.c.l.b16 %v4047
        %v4080 = vunpack.c.l.b16 %v4048
        %v4081 = vunpack.c.l.b16 %v4049
        %v4082 = vunpack.c.l.b16 %v4050
        %v4083 = vunpack.c.l.b16 %v4051
        %v4084 = vunpack.c.l.b16 %v4052
        %v4085 = vunpack.c.l.b16 %v4053
        %v4086 = vunpack.c.l.b16 %v4054
        %v4087 = vunpack.c.l.b16 %v4055
        %v4088 = vunpack.c.l.b16 %v4056
        %v4089 = vunpack.c.l.b16 %v4057
        %v4090 = vunpack.c.l.b16 %v4058
        %v4091 = vunpack.c.l.b16 %v4059
        %v4092 = vunpack.c.l.b16 %v4060
        %v4093 = vunpack.c.l.b16 %v4061
        %v4094 = vunpack.c.l.b16 %v4062
        %v4095 = vpack.c.b16 %v4080, %v4079
        %v4096 = vpack.c.b16 %v4082, %v4081
        %v4097 = vpack.c.b16 %v4084, %v4083
        %v4098 = vpack.c.b16 %v4086, %v4085
        %v4099 = vpack.c.b16 %v4088, %v4087
        %v4100 = vpack.c.b16 %v4090, %v4089
        %v4101 = vpack.c.b16 %v4092, %v4091
        %v4102 = vpack.c.b16 %v4094, %v4093
        %4111 = vmatprep.subr.bf16.mxu0 0
        %4112 = vmatpush1.bf16.msra.mxu0 %v4102
        %4113 = vmatprep.subr.bf16.mxu0 0
        %4114 = vmatpush1.bf16.msra.mxu0 %v4101
        %4115 = vmatprep.subr.bf16.mxu0 0
        %4116 = vmatpush1.bf16.msra.mxu0 %v4100
        %4117 = vmatprep.subr.bf16.mxu0 0
        %4118 = vmatpush1.bf16.msra.mxu0 %v4099
        %4119 = vmatprep.subr.bf16.mxu0 0
        %4120 = vmatpush1.bf16.msra.mxu0 %v4098
        %4121 = vmatprep.subr.bf16.mxu0 0
        %4122 = vmatpush1.bf16.msra.mxu0 %v4097
        %4123 = vmatprep.subr.bf16.mxu0 0
        %4124 = vmatpush1.bf16.msra.mxu0 %v4096
        %4125 = vmatprep.subr.bf16.mxu0 0
        %4126 = vmatpush1.bf16.msra.mxu0 %v4095
        %4127 = vmatprep.subr.bf16.mxu0 0
        %4128 = vmatpush2.bf16.msra.mxu0 0
        %4129 = vmatprep.subr.bf16.mxu0 0
        %4130 = vmatpush2.bf16.msra.mxu0 0
        %4131 = vmatprep.subr.bf16.mxu0 0
        %4132 = vmatpush2.bf16.msra.mxu0 0
        %4133 = vmatprep.subr.bf16.mxu0 0
        %4134 = vmatpush2.bf16.msra.mxu0 0
        %4135 = vmatprep.subr.bf16.mxu0 0
        %4136 = vmatpush2.bf16.msra.mxu0 0
        %4137 = vmatprep.subr.bf16.mxu0 0
        %4138 = vmatpush2.bf16.msra.mxu0 0
        %4139 = vmatprep.subr.bf16.mxu0 0
        %4140 = vmatpush2.bf16.msra.mxu0 0
        %4141 = vmatprep.subr.bf16.mxu0 0
        %4142 = vmatpush2.bf16.msra.mxu0 0
        %4143 = vmatprep.mubr.bf16.mxu0 0
        %4144 = vmatmul.mubr.bf16.gmra.mxu0 %v4030
        %v4145 = vpop.f32.mrf.mxu0
        %v4146 = vadd.f32 0.0, %v4145
        %v4147 = vpop.f32.mrf.mxu0
        %v4148 = vpop.f32.mrf.mxu0
        %v4149 = vadd.f32 0.0, %v4148
        %v4150 = vpop.f32.mrf.mxu0
        %4151 = vmatprep.mubr.bf16.mxu0 0
        %4152 = vmatmul.mubr.bf16.gmra.mxu0 %v4031
        %v4153 = vpop.f32.mrf.mxu0
        %v4154 = vadd.f32 0.0, %v4153
        %v4155 = vpop.f32.mrf.mxu0
        %v4156 = vpop.f32.mrf.mxu0
        %v4157 = vadd.f32 0.0, %v4156
        %v4158 = vpop.f32.mrf.mxu0
        %4159 = vmatprep.mubr.bf16.mxu0 0
        %4160 = vmatmul.mubr.bf16.gmra.mxu0 %v4032
        %v4161 = vpop.f32.mrf.mxu0
        %v4162 = vadd.f32 0.0, %v4161
        %v4163 = vpop.f32.mrf.mxu0
        %v4164 = vpop.f32.mrf.mxu0
        %v4165 = vadd.f32 0.0, %v4164
        %v4166 = vpop.f32.mrf.mxu0
        %4167 = vmatprep.mubr.bf16.mxu0 0
        %4168 = vmatmul.mubr.bf16.gmra.mxu0 %v4033
        %v4169 = vpop.f32.mrf.mxu0
        %v4170 = vadd.f32 0.0, %v4169
        %v4171 = vpop.f32.mrf.mxu0
        %v4172 = vpop.f32.mrf.mxu0
        %v4173 = vadd.f32 0.0, %v4172
        %v4174 = vpop.f32.mrf.mxu0
        %4175 = vmatprep.mubr.bf16.mxu0 0
        %4176 = vmatmul.mubr.bf16.gmra.mxu0 %v4034
        %v4177 = vpop.f32.mrf.mxu0
        %v4178 = vadd.f32 0.0, %v4177
        %v4179 = vpop.f32.mrf.mxu0
        %v4180 = vpop.f32.mrf.mxu0
        %v4181 = vadd.f32 0.0, %v4180
        %v4182 = vpop.f32.mrf.mxu0
        %4183 = vmatprep.mubr.bf16.mxu0 0
        %4184 = vmatmul.mubr.bf16.gmra.mxu0 %v4035
        %v4185 = vpop.f32.mrf.mxu0
        %v4186 = vadd.f32 0.0, %v4185
        %v4187 = vpop.f32.mrf.mxu0
        %v4188 = vpop.f32.mrf.mxu0
        %v4189 = vadd.f32 0.0, %v4188
        %v4190 = vpop.f32.mrf.mxu0
        %4191 = vmatprep.mubr.bf16.mxu0 0
        %4192 = vmatmul.mubr.bf16.gmra.mxu0 %v4036
        %v4193 = vpop.f32.mrf.mxu0
        %v4194 = vadd.f32 0.0, %v4193
        %v4195 = vpop.f32.mrf.mxu0
        %v4196 = vpop.f32.mrf.mxu0
        %v4197 = vadd.f32 0.0, %v4196
        %v4198 = vpop.f32.mrf.mxu0
        %4199 = vmatprep.mubr.bf16.mxu0 0
        %4200 = vmatmul.mubr.bf16.gmra.mxu0 %v4037
        %v4201 = vpop.f32.mrf.mxu0
        %v4202 = vadd.f32 0.0, %v4201
        %v4203 = vpop.f32.mrf.mxu0
        %v4204 = vpop.f32.mrf.mxu0
        %v4205 = vadd.f32 0.0, %v4204
        %v4206 = vpop.f32.mrf.mxu0
        %4207 = vmatprep.mubr.bf16.mxu0 0
        %4208 = vmatmul.mubr.bf16.gmra.mxu0 %v4038
        %v4209 = vpop.f32.mrf.mxu0
        %v4210 = vadd.f32 0.0, %v4209
        %v4211 = vpop.f32.mrf.mxu0
        %v4212 = vpop.f32.mrf.mxu0
        %v4213 = vadd.f32 0.0, %v4212
        %v4214 = vpop.f32.mrf.mxu0
        %4215 = vmatprep.mubr.bf16.mxu0 0
        %4216 = vmatmul.mubr.bf16.gmra.mxu0 %v4039
        %v4217 = vpop.f32.mrf.mxu0
        %v4218 = vadd.f32 0.0, %v4217
        %v4219 = vpop.f32.mrf.mxu0
        %v4220 = vpop.f32.mrf.mxu0
        %v4221 = vadd.f32 0.0, %v4220
        %v4222 = vpop.f32.mrf.mxu0
        %4223 = vmatprep.mubr.bf16.mxu0 0
        %4224 = vmatmul.mubr.bf16.gmra.mxu0 %v4040
        %v4225 = vpop.f32.mrf.mxu0
        %v4226 = vadd.f32 0.0, %v4225
        %v4227 = vpop.f32.mrf.mxu0
        %v4228 = vpop.f32.mrf.mxu0
        %v4229 = vadd.f32 0.0, %v4228
        %v4230 = vpop.f32.mrf.mxu0
        %4231 = vmatprep.mubr.bf16.mxu0 0
        %4232 = vmatmul.mubr.bf16.gmra.mxu0 %v4041
        %v4233 = vpop.f32.mrf.mxu0
        %v4234 = vadd.f32 0.0, %v4233
        %v4235 = vpop.f32.mrf.mxu0
        %v4236 = vpop.f32.mrf.mxu0
        %v4237 = vadd.f32 0.0, %v4236
        %v4238 = vpop.f32.mrf.mxu0
        %4239 = vmatprep.mubr.bf16.mxu0 0
        %4240 = vmatmul.mubr.bf16.gmra.mxu0 %v4042
        %v4241 = vpop.f32.mrf.mxu0
        %v4242 = vadd.f32 0.0, %v4241
        %v4243 = vpop.f32.mrf.mxu0
        %v4244 = vpop.f32.mrf.mxu0
        %v4245 = vadd.f32 0.0, %v4244
        %v4246 = vpop.f32.mrf.mxu0
        %4247 = vmatprep.mubr.bf16.mxu0 0
        %4248 = vmatmul.mubr.bf16.gmra.mxu0 %v4043
        %v4249 = vpop.f32.mrf.mxu0
        %v4250 = vadd.f32 0.0, %v4249
        %v4251 = vpop.f32.mrf.mxu0
        %v4252 = vpop.f32.mrf.mxu0
        %v4253 = vadd.f32 0.0, %v4252
        %v4254 = vpop.f32.mrf.mxu0
        %4255 = vmatprep.mubr.bf16.mxu0 0
        %4256 = vmatmul.mubr.bf16.gmra.mxu0 %v4044
        %v4257 = vpop.f32.mrf.mxu0
        %v4258 = vadd.f32 0.0, %v4257
        %v4259 = vpop.f32.mrf.mxu0
        %v4260 = vpop.f32.mrf.mxu0
        %v4261 = vadd.f32 0.0, %v4260
        %v4262 = vpop.f32.mrf.mxu0
        %4263 = vmatprep.mubr.bf16.mxu0 0
        %4264 = vmatmul.mubr.bf16.gmra.mxu0 %v4045
        %v4265 = vpop.f32.mrf.mxu0
        %v4266 = vadd.f32 0.0, %v4265
        %v4267 = vpop.f32.mrf.mxu0
        %v4268 = vpop.f32.mrf.mxu0
        %v4269 = vadd.f32 0.0, %v4268
        %v4270 = vpop.f32.mrf.mxu0
        %4271 = vdwg.mxu0
        %v4272 = vadd.f32 %v3902, %v4146
        %v4273 = vadd.f32 %v3903, %v4149
        %v4274 = vadd.f32 %v3904, %v4154
        %v4275 = vadd.f32 %v3905, %v4157
        %v4276 = vadd.f32 %v3906, %v4162
        %v4277 = vadd.f32 %v3907, %v4165
        %v4278 = vadd.f32 %v3908, %v4170
        %v4279 = vadd.f32 %v3909, %v4173
        %v4280 = vadd.f32 %v3910, %v4178
        %v4281 = vadd.f32 %v3911, %v4181
        %v4282 = vadd.f32 %v3912, %v4186
        %v4283 = vadd.f32 %v3913, %v4189
        %v4284 = vadd.f32 %v3914, %v4194
        %v4285 = vadd.f32 %v3915, %v4197
        %v4286 = vadd.f32 %v3916, %v4202
        %v4287 = vadd.f32 %v3917, %v4205
        %v4288 = vadd.f32 %v3918, %v4210
        %v4289 = vadd.f32 %v3919, %v4213
        %v4290 = vadd.f32 %v3920, %v4218
        %v4291 = vadd.f32 %v3921, %v4221
        %v4292 = vadd.f32 %v3922, %v4226
        %v4293 = vadd.f32 %v3923, %v4229
        %v4294 = vadd.f32 %v3924, %v4234
        %v4295 = vadd.f32 %v3925, %v4237
        %v4296 = vadd.f32 %v3926, %v4242
        %v4297 = vadd.f32 %v3927, %v4245
        %v4298 = vadd.f32 %v3928, %v4250
        %v4299 = vadd.f32 %v3929, %v4253
        %v4300 = vadd.f32 %v3930, %v4258
        %v4301 = vadd.f32 %v3931, %v4261
        %v4302 = vadd.f32 %v3932, %v4266
        %v4303 = vadd.f32 %v3933, %v4269
        %vm4304 = vmand %vm1183, %vm1247
        %vm4305 = vmand %vm1184, %vm1248
        %vm4306 = vmand %vm1185, %vm1249
        %vm4307 = vmand %vm1186, %vm1250
        %vm4308 = vmand %vm1187, %vm1251
        %vm4309 = vmand %vm1188, %vm1252
        %vm4310 = vmand %vm1189, %vm1253
        %vm4311 = vmand %vm1190, %vm1254
        %vm4312 = vmand %vm1191, %vm1255
        %vm4313 = vmand %vm1192, %vm1256
        %vm4314 = vmand %vm1193, %vm1257
        %vm4315 = vmand %vm1194, %vm1258
        %vm4316 = vmand %vm1195, %vm1259
        %vm4317 = vmand %vm1196, %vm1260
        %vm4318 = vmand %vm1197, %vm1261
        %vm4319 = vmand %vm1198, %vm1262
        %vm4320 = vmand %vm1199, %vm1263
        %vm4321 = vmand %vm1200, %vm1264
        %vm4322 = vmand %vm1201, %vm1265
        %vm4323 = vmand %vm1202, %vm1266
        %vm4324 = vmand %vm1203, %vm1267
        %vm4325 = vmand %vm1204, %vm1268
        %vm4326 = vmand %vm1205, %vm1269
        %vm4327 = vmand %vm1206, %vm1270
        %vm4328 = vmand %vm1207, %vm1271
        %vm4329 = vmand %vm1208, %vm1272
        %vm4330 = vmand %vm1209, %vm1273
        %vm4331 = vmand %vm1210, %vm1274
        %vm4332 = vmand %vm1211, %vm1275
        %vm4333 = vmand %vm1212, %vm1276
        %vm4334 = vmand %vm1213, %vm1277
        %vm4335 = vmand %vm1214, %vm1278
        %v4336 = vsel %vm4304, 1, 0
        %v4337 = vsel %vm4305, 1, 0
        %v4338 = vsel %vm4306, 1, 0
        %v4339 = vsel %vm4307, 1, 0
        %v4340 = vsel %vm4308, 1, 0
        %v4341 = vsel %vm4309, 1, 0
        %v4342 = vsel %vm4310, 1, 0
        %v4343 = vsel %vm4311, 1, 0
        %v4344 = vsel %vm4312, 1, 0
        %v4345 = vsel %vm4313, 1, 0
        %v4346 = vsel %vm4314, 1, 0
        %v4347 = vsel %vm4315, 1, 0
        %v4348 = vsel %vm4316, 1, 0
        %v4349 = vsel %vm4317, 1, 0
        %v4350 = vsel %vm4318, 1, 0
        %v4351 = vsel %vm4319, 1, 0
        %v4352 = vsel %vm4320, 1, 0
        %v4353 = vsel %vm4321, 1, 0
        %v4354 = vsel %vm4322, 1, 0
        %v4355 = vsel %vm4323, 1, 0
        %v4356 = vsel %vm4324, 1, 0
        %v4357 = vsel %vm4325, 1, 0
        %v4358 = vsel %vm4326, 1, 0
        %v4359 = vsel %vm4327, 1, 0
        %v4360 = vsel %vm4328, 1, 0
        %v4361 = vsel %vm4329, 1, 0
        %v4362 = vsel %vm4330, 1, 0
        %v4363 = vsel %vm4331, 1, 0
        %v4364 = vsel %vm4332, 1, 0
        %v4365 = vsel %vm4333, 1, 0
        %v4366 = vsel %vm4334, 1, 0
        %v4367 = vsel %vm4335, 1, 0
        %vm4368 = vcmp.eq.s32.totalorder %v4336, 1
        %vm4369 = vcmp.eq.s32.totalorder %v4337, 1
        %vm4370 = vcmp.eq.s32.totalorder %v4338, 1
        %vm4371 = vcmp.eq.s32.totalorder %v4339, 1
        %vm4372 = vcmp.eq.s32.totalorder %v4340, 1
        %vm4373 = vcmp.eq.s32.totalorder %v4341, 1
        %vm4374 = vcmp.eq.s32.totalorder %v4342, 1
        %vm4375 = vcmp.eq.s32.totalorder %v4343, 1
        %vm4376 = vcmp.eq.s32.totalorder %v4344, 1
        %vm4377 = vcmp.eq.s32.totalorder %v4345, 1
        %vm4378 = vcmp.eq.s32.totalorder %v4346, 1
        %vm4379 = vcmp.eq.s32.totalorder %v4347, 1
        %vm4380 = vcmp.eq.s32.totalorder %v4348, 1
        %vm4381 = vcmp.eq.s32.totalorder %v4349, 1
        %vm4382 = vcmp.eq.s32.totalorder %v4350, 1
        %vm4383 = vcmp.eq.s32.totalorder %v4351, 1
        %vm4384 = vcmp.eq.s32.totalorder %v4352, 1
        %vm4385 = vcmp.eq.s32.totalorder %v4353, 1
        %vm4386 = vcmp.eq.s32.totalorder %v4354, 1
        %vm4387 = vcmp.eq.s32.totalorder %v4355, 1
        %vm4388 = vcmp.eq.s32.totalorder %v4356, 1
        %vm4389 = vcmp.eq.s32.totalorder %v4357, 1
        %vm4390 = vcmp.eq.s32.totalorder %v4358, 1
        %vm4391 = vcmp.eq.s32.totalorder %v4359, 1
        %vm4392 = vcmp.eq.s32.totalorder %v4360, 1
        %vm4393 = vcmp.eq.s32.totalorder %v4361, 1
        %vm4394 = vcmp.eq.s32.totalorder %v4362, 1
        %vm4395 = vcmp.eq.s32.totalorder %v4363, 1
        %vm4396 = vcmp.eq.s32.totalorder %v4364, 1
        %vm4397 = vcmp.eq.s32.totalorder %v4365, 1
        %vm4398 = vcmp.eq.s32.totalorder %v4366, 1
        %vm4399 = vcmp.eq.s32.totalorder %v4367, 1
        %v4400 = vsel %vm4368, %v2386, 0.0
        %v4401 = vsel %vm4369, %v2385, 0.0
        %v4402 = vsel %vm4370, %v2384, 0.0
        %v4403 = vsel %vm4371, %v2383, 0.0
        %v4404 = vsel %vm4372, %v2382, 0.0
        %v4405 = vsel %vm4373, %v2381, 0.0
        %v4406 = vsel %vm4374, %v2380, 0.0
        %v4407 = vsel %vm4375, %v2379, 0.0
        %v4408 = vsel %vm4376, %v2378, 0.0
        %v4409 = vsel %vm4377, %v2377, 0.0
        %v4410 = vsel %vm4378, %v2376, 0.0
        %v4411 = vsel %vm4379, %v2375, 0.0
        %v4412 = vsel %vm4380, %v2374, 0.0
        %v4413 = vsel %vm4381, %v2373, 0.0
        %v4414 = vsel %vm4382, %v2372, 0.0
        %v4415 = vsel %vm4383, %v2371, 0.0
        %v4416 = vsel %vm4384, %v2370, 0.0
        %v4417 = vsel %vm4385, %v2369, 0.0
        %v4418 = vsel %vm4386, %v2368, 0.0
        %v4419 = vsel %vm4387, %v2367, 0.0
        %v4420 = vsel %vm4388, %v2366, 0.0
        %v4421 = vsel %vm4389, %v2365, 0.0
        %v4422 = vsel %vm4390, %v2364, 0.0
        %v4423 = vsel %vm4391, %v2363, 0.0
        %v4424 = vsel %vm4392, %v2362, 0.0
        %v4425 = vsel %vm4393, %v2361, 0.0
        %v4426 = vsel %vm4394, %v2360, 0.0
        %v4427 = vsel %vm4395, %v2359, 0.0
        %v4428 = vsel %vm4396, %v2358, 0.0
        %v4429 = vsel %vm4397, %v2389, 0.0
        %v4430 = vsel %vm4398, %v2388, 0.0
        %v4431 = vsel %vm4399, %v2387, 0.0
        %v4432 = vpack.c.bf16 %v4401, %v4400
        %v4433 = vpack.c.bf16 %v4403, %v4402
        %v4434 = vpack.c.bf16 %v4405, %v4404
        %v4435 = vpack.c.bf16 %v4407, %v4406
        %v4436 = vpack.c.bf16 %v4409, %v4408
        %v4437 = vpack.c.bf16 %v4411, %v4410
        %v4438 = vpack.c.bf16 %v4413, %v4412
        %v4439 = vpack.c.bf16 %v4415, %v4414
        %v4440 = vpack.c.bf16 %v4417, %v4416
        %v4441 = vpack.c.bf16 %v4419, %v4418
        %v4442 = vpack.c.bf16 %v4421, %v4420
        %v4443 = vpack.c.bf16 %v4423, %v4422
        %v4444 = vpack.c.bf16 %v4425, %v4424
        %v4445 = vpack.c.bf16 %v4427, %v4426
        %v4446 = vpack.c.bf16 %v4429, %v4428
        %v4447 = vpack.c.bf16 %v4431, %v4430
        %s4448 = scalar_lea.vmem [#allocation7], 512
        %v4449 = vld [vmem:[%s4448] sm:$0xf]
        %v4450 = vld [vmem:[%s4448 + $0x4] sm:$0xf]
        %v4451 = vld [vmem:[%s4448 + $0x8] sm:$0xf]
        %v4452 = vld [vmem:[%s4448 + $0xc] sm:$0xf]
        %v4453 = vld [vmem:[%s4448 + $0x10] sm:$0xf]
        %v4454 = vld [vmem:[%s4448 + $0x14] sm:$0xf]
        %v4455 = vld [vmem:[%s4448 + $0x18] sm:$0xf]
        %v4456 = vld [vmem:[%s4448 + $0x1c] sm:$0xf]
        %v4457 = vld [vmem:[%s4448 + $0x20] sm:$0xf]
        %v4458 = vld [vmem:[%s4448 + $0x24] sm:$0xf]
        %v4459 = vld [vmem:[%s4448 + $0x28] sm:$0xf]
        %v4460 = vld [vmem:[%s4448 + $0x2c] sm:$0xf]
        %v4461 = vld [vmem:[%s4448 + $0x30] sm:$0xf]
        %v4462 = vld [vmem:[%s4448 + $0x34] sm:$0xf]
        %v4463 = vld [vmem:[%s4448 + $0x38] sm:$0xf]
        %v4464 = vld [vmem:[%s4448 + $0x3c] sm:$0xf]
        %v4481 = vunpack.c.l.b16 %v4449
        %v4482 = vunpack.c.l.b16 %v4450
        %v4483 = vunpack.c.l.b16 %v4451
        %v4484 = vunpack.c.l.b16 %v4452
        %v4485 = vunpack.c.l.b16 %v4453
        %v4486 = vunpack.c.l.b16 %v4454
        %v4487 = vunpack.c.l.b16 %v4455
        %v4488 = vunpack.c.l.b16 %v4456
        %v4489 = vunpack.c.l.b16 %v4457
        %v4490 = vunpack.c.l.b16 %v4458
        %v4491 = vunpack.c.l.b16 %v4459
        %v4492 = vunpack.c.l.b16 %v4460
        %v4493 = vunpack.c.l.b16 %v4461
        %v4494 = vunpack.c.l.b16 %v4462
        %v4495 = vunpack.c.l.b16 %v4463
        %v4496 = vunpack.c.l.b16 %v4464
        %v4497 = vpack.c.b16 %v4482, %v4481
        %v4498 = vpack.c.b16 %v4484, %v4483
        %v4499 = vpack.c.b16 %v4486, %v4485
        %v4500 = vpack.c.b16 %v4488, %v4487
        %v4501 = vpack.c.b16 %v4490, %v4489
        %v4502 = vpack.c.b16 %v4492, %v4491
        %v4503 = vpack.c.b16 %v4494, %v4493
        %v4504 = vpack.c.b16 %v4496, %v4495
        %4513 = vmatprep.subr.bf16.mxu0 0
        %4514 = vmatpush1.bf16.msra.mxu0 %v4504
        %4515 = vmatprep.subr.bf16.mxu0 0
        %4516 = vmatpush1.bf16.msra.mxu0 %v4503
        %4517 = vmatprep.subr.bf16.mxu0 0
        %4518 = vmatpush1.bf16.msra.mxu0 %v4502
        %4519 = vmatprep.subr.bf16.mxu0 0
        %4520 = vmatpush1.bf16.msra.mxu0 %v4501
        %4521 = vmatprep.subr.bf16.mxu0 0
        %4522 = vmatpush1.bf16.msra.mxu0 %v4500
        %4523 = vmatprep.subr.bf16.mxu0 0
        %4524 = vmatpush1.bf16.msra.mxu0 %v4499
        %4525 = vmatprep.subr.bf16.mxu0 0
        %4526 = vmatpush1.bf16.msra.mxu0 %v4498
        %4527 = vmatprep.subr.bf16.mxu0 0
        %4528 = vmatpush1.bf16.msra.mxu0 %v4497
        %4529 = vmatprep.subr.bf16.mxu0 0
        %4530 = vmatpush2.bf16.msra.mxu0 0
        %4531 = vmatprep.subr.bf16.mxu0 0
        %4532 = vmatpush2.bf16.msra.mxu0 0
        %4533 = vmatprep.subr.bf16.mxu0 0
        %4534 = vmatpush2.bf16.msra.mxu0 0
        %4535 = vmatprep.subr.bf16.mxu0 0
        %4536 = vmatpush2.bf16.msra.mxu0 0
        %4537 = vmatprep.subr.bf16.mxu0 0
        %4538 = vmatpush2.bf16.msra.mxu0 0
        %4539 = vmatprep.subr.bf16.mxu0 0
        %4540 = vmatpush2.bf16.msra.mxu0 0
        %4541 = vmatprep.subr.bf16.mxu0 0
        %4542 = vmatpush2.bf16.msra.mxu0 0
        %4543 = vmatprep.subr.bf16.mxu0 0
        %4544 = vmatpush2.bf16.msra.mxu0 0
        %4545 = vmatprep.mubr.bf16.mxu0 0
        %4546 = vmatmul.mubr.bf16.gmra.mxu0 %v4432
        %v4547 = vpop.f32.mrf.mxu0
        %v4548 = vadd.f32 0.0, %v4547
        %v4549 = vpop.f32.mrf.mxu0
        %v4550 = vpop.f32.mrf.mxu0
        %v4551 = vadd.f32 0.0, %v4550
        %v4552 = vpop.f32.mrf.mxu0
        %4553 = vmatprep.mubr.bf16.mxu0 0
        %4554 = vmatmul.mubr.bf16.gmra.mxu0 %v4433
        %v4555 = vpop.f32.mrf.mxu0
        %v4556 = vadd.f32 0.0, %v4555
        %v4557 = vpop.f32.mrf.mxu0
        %v4558 = vpop.f32.mrf.mxu0
        %v4559 = vadd.f32 0.0, %v4558
        %v4560 = vpop.f32.mrf.mxu0
        %4561 = vmatprep.mubr.bf16.mxu0 0
        %4562 = vmatmul.mubr.bf16.gmra.mxu0 %v4434
        %v4563 = vpop.f32.mrf.mxu0
        %v4564 = vadd.f32 0.0, %v4563
        %v4565 = vpop.f32.mrf.mxu0
        %v4566 = vpop.f32.mrf.mxu0
        %v4567 = vadd.f32 0.0, %v4566
        %v4568 = vpop.f32.mrf.mxu0
        %4569 = vmatprep.mubr.bf16.mxu0 0
        %4570 = vmatmul.mubr.bf16.gmra.mxu0 %v4435
        %v4571 = vpop.f32.mrf.mxu0
        %v4572 = vadd.f32 0.0, %v4571
        %v4573 = vpop.f32.mrf.mxu0
        %v4574 = vpop.f32.mrf.mxu0
        %v4575 = vadd.f32 0.0, %v4574
        %v4576 = vpop.f32.mrf.mxu0
        %4577 = vmatprep.mubr.bf16.mxu0 0
        %4578 = vmatmul.mubr.bf16.gmra.mxu0 %v4436
        %v4579 = vpop.f32.mrf.mxu0
        %v4580 = vadd.f32 0.0, %v4579
        %v4581 = vpop.f32.mrf.mxu0
        %v4582 = vpop.f32.mrf.mxu0
        %v4583 = vadd.f32 0.0, %v4582
        %v4584 = vpop.f32.mrf.mxu0
        %4585 = vmatprep.mubr.bf16.mxu0 0
        %4586 = vmatmul.mubr.bf16.gmra.mxu0 %v4437
        %v4587 = vpop.f32.mrf.mxu0
        %v4588 = vadd.f32 0.0, %v4587
        %v4589 = vpop.f32.mrf.mxu0
        %v4590 = vpop.f32.mrf.mxu0
        %v4591 = vadd.f32 0.0, %v4590
        %v4592 = vpop.f32.mrf.mxu0
        %4593 = vmatprep.mubr.bf16.mxu0 0
        %4594 = vmatmul.mubr.bf16.gmra.mxu0 %v4438
        %v4595 = vpop.f32.mrf.mxu0
        %v4596 = vadd.f32 0.0, %v4595
        %v4597 = vpop.f32.mrf.mxu0
        %v4598 = vpop.f32.mrf.mxu0
        %v4599 = vadd.f32 0.0, %v4598
        %v4600 = vpop.f32.mrf.mxu0
        %4601 = vmatprep.mubr.bf16.mxu0 0
        %4602 = vmatmul.mubr.bf16.gmra.mxu0 %v4439
        %v4603 = vpop.f32.mrf.mxu0
        %v4604 = vadd.f32 0.0, %v4603
        %v4605 = vpop.f32.mrf.mxu0
        %v4606 = vpop.f32.mrf.mxu0
        %v4607 = vadd.f32 0.0, %v4606
        %v4608 = vpop.f32.mrf.mxu0
        %4609 = vmatprep.mubr.bf16.mxu0 0
        %4610 = vmatmul.mubr.bf16.gmra.mxu0 %v4440
        %v4611 = vpop.f32.mrf.mxu0
        %v4612 = vadd.f32 0.0, %v4611
        %v4613 = vpop.f32.mrf.mxu0
        %v4614 = vpop.f32.mrf.mxu0
        %v4615 = vadd.f32 0.0, %v4614
        %v4616 = vpop.f32.mrf.mxu0
        %4617 = vmatprep.mubr.bf16.mxu0 0
        %4618 = vmatmul.mubr.bf16.gmra.mxu0 %v4441
        %v4619 = vpop.f32.mrf.mxu0
        %v4620 = vadd.f32 0.0, %v4619
        %v4621 = vpop.f32.mrf.mxu0
        %v4622 = vpop.f32.mrf.mxu0
        %v4623 = vadd.f32 0.0, %v4622
        %v4624 = vpop.f32.mrf.mxu0
        %4625 = vmatprep.mubr.bf16.mxu0 0
        %4626 = vmatmul.mubr.bf16.gmra.mxu0 %v4442
        %v4627 = vpop.f32.mrf.mxu0
        %v4628 = vadd.f32 0.0, %v4627
        %v4629 = vpop.f32.mrf.mxu0
        %v4630 = vpop.f32.mrf.mxu0
        %v4631 = vadd.f32 0.0, %v4630
        %v4632 = vpop.f32.mrf.mxu0
        %4633 = vmatprep.mubr.bf16.mxu0 0
        %4634 = vmatmul.mubr.bf16.gmra.mxu0 %v4443
        %v4635 = vpop.f32.mrf.mxu0
        %v4636 = vadd.f32 0.0, %v4635
        %v4637 = vpop.f32.mrf.mxu0
        %v4638 = vpop.f32.mrf.mxu0
        %v4639 = vadd.f32 0.0, %v4638
        %v4640 = vpop.f32.mrf.mxu0
        %4641 = vmatprep.mubr.bf16.mxu0 0
        %4642 = vmatmul.mubr.bf16.gmra.mxu0 %v4444
        %v4643 = vpop.f32.mrf.mxu0
        %v4644 = vadd.f32 0.0, %v4643
        %v4645 = vpop.f32.mrf.mxu0
        %v4646 = vpop.f32.mrf.mxu0
        %v4647 = vadd.f32 0.0, %v4646
        %v4648 = vpop.f32.mrf.mxu0
        %4649 = vmatprep.mubr.bf16.mxu0 0
        %4650 = vmatmul.mubr.bf16.gmra.mxu0 %v4445
        %v4651 = vpop.f32.mrf.mxu0
        %v4652 = vadd.f32 0.0, %v4651
        %v4653 = vpop.f32.mrf.mxu0
        %v4654 = vpop.f32.mrf.mxu0
        %v4655 = vadd.f32 0.0, %v4654
        %v4656 = vpop.f32.mrf.mxu0
        %4657 = vmatprep.mubr.bf16.mxu0 0
        %4658 = vmatmul.mubr.bf16.gmra.mxu0 %v4446
        %v4659 = vpop.f32.mrf.mxu0
        %v4660 = vadd.f32 0.0, %v4659
        %v4661 = vpop.f32.mrf.mxu0
        %v4662 = vpop.f32.mrf.mxu0
        %v4663 = vadd.f32 0.0, %v4662
        %v4664 = vpop.f32.mrf.mxu0
        %4665 = vmatprep.mubr.bf16.mxu0 0
        %4666 = vmatmul.mubr.bf16.gmra.mxu0 %v4447
        %v4667 = vpop.f32.mrf.mxu0
        %v4668 = vadd.f32 0.0, %v4667
        %v4669 = vpop.f32.mrf.mxu0
        %v4670 = vpop.f32.mrf.mxu0
        %v4671 = vadd.f32 0.0, %v4670
        %v4672 = vpop.f32.mrf.mxu0
        %4673 = vdwg.mxu0
        %v4674 = vadd.f32 %v4272, %v4548
        %v4675 = vadd.f32 %v4273, %v4551
        %v4676 = vadd.f32 %v4274, %v4556
        %v4677 = vadd.f32 %v4275, %v4559
        %v4678 = vadd.f32 %v4276, %v4564
        %v4679 = vadd.f32 %v4277, %v4567
        %v4680 = vadd.f32 %v4278, %v4572
        %v4681 = vadd.f32 %v4279, %v4575
        %v4682 = vadd.f32 %v4280, %v4580
        %v4683 = vadd.f32 %v4281, %v4583
        %v4684 = vadd.f32 %v4282, %v4588
        %v4685 = vadd.f32 %v4283, %v4591
        %v4686 = vadd.f32 %v4284, %v4596
        %v4687 = vadd.f32 %v4285, %v4599
        %v4688 = vadd.f32 %v4286, %v4604
        %v4689 = vadd.f32 %v4287, %v4607
        %v4690 = vadd.f32 %v4288, %v4612
        %v4691 = vadd.f32 %v4289, %v4615
        %v4692 = vadd.f32 %v4290, %v4620
        %v4693 = vadd.f32 %v4291, %v4623
        %v4694 = vadd.f32 %v4292, %v4628
        %v4695 = vadd.f32 %v4293, %v4631
        %v4696 = vadd.f32 %v4294, %v4636
        %v4697 = vadd.f32 %v4295, %v4639
        %v4698 = vadd.f32 %v4296, %v4644
        %v4699 = vadd.f32 %v4297, %v4647
        %v4700 = vadd.f32 %v4298, %v4652
        %v4701 = vadd.f32 %v4299, %v4655
        %v4702 = vadd.f32 %v4300, %v4660
        %v4703 = vadd.f32 %v4301, %v4663
        %v4704 = vadd.f32 %v4302, %v4668
        %v4705 = vadd.f32 %v4303, %v4671
        %v4706 = vld [vmem:[%s4] sm:$0x1]
        %v4708 = vlaneseq
        %v4709 = vshrl.u32 %v4708, 7
        %v4710 = vsub.s32 0, %v4709
        %v4711 = vrot.slane %v4706, %v4710
        %v4713 = vadd.f32 %v4674, %v4711
        %v4714 = vadd.f32 %v4675, %v4711
        %v4715 = vadd.f32 %v4676, %v4711
        %v4716 = vadd.f32 %v4677, %v4711
        %v4717 = vadd.f32 %v4678, %v4711
        %v4718 = vadd.f32 %v4679, %v4711
        %v4719 = vadd.f32 %v4680, %v4711
        %v4720 = vadd.f32 %v4681, %v4711
        %v4721 = vadd.f32 %v4682, %v4711
        %v4722 = vadd.f32 %v4683, %v4711
        %v4723 = vadd.f32 %v4684, %v4711
        %v4724 = vadd.f32 %v4685, %v4711
        %v4725 = vadd.f32 %v4686, %v4711
        %v4726 = vadd.f32 %v4687, %v4711
        %v4727 = vadd.f32 %v4688, %v4711
        %v4728 = vadd.f32 %v4689, %v4711
        %v4729 = vadd.f32 %v4690, %v4711
        %v4730 = vadd.f32 %v4691, %v4711
        %v4731 = vadd.f32 %v4692, %v4711
        %v4732 = vadd.f32 %v4693, %v4711
        %v4733 = vadd.f32 %v4694, %v4711
        %v4734 = vadd.f32 %v4695, %v4711
        %v4735 = vadd.f32 %v4696, %v4711
        %v4736 = vadd.f32 %v4697, %v4711
        %v4737 = vadd.f32 %v4698, %v4711
        %v4738 = vadd.f32 %v4699, %v4711
        %v4739 = vadd.f32 %v4700, %v4711
        %v4740 = vadd.f32 %v4701, %v4711
        %v4741 = vadd.f32 %v4702, %v4711
        %v4742 = vadd.f32 %v4703, %v4711
        %v4743 = vadd.f32 %v4704, %v4711
        %v4744 = vadd.f32 %v4705, %v4711
        %v4745 = vmax.f32 %v4713, 0.0
        %v4746 = vmax.f32 %v4714, 0.0
        %v4747 = vmax.f32 %v4715, 0.0
        %v4748 = vmax.f32 %v4716, 0.0
        %v4749 = vmax.f32 %v4717, 0.0
        %v4750 = vmax.f32 %v4718, 0.0
        %v4751 = vmax.f32 %v4719, 0.0
        %v4752 = vmax.f32 %v4720, 0.0
        %v4753 = vmax.f32 %v4721, 0.0
        %v4754 = vmax.f32 %v4722, 0.0
        %v4755 = vmax.f32 %v4723, 0.0
        %v4756 = vmax.f32 %v4724, 0.0
        %v4757 = vmax.f32 %v4725, 0.0
        %v4758 = vmax.f32 %v4726, 0.0
        %v4759 = vmax.f32 %v4727, 0.0
        %v4760 = vmax.f32 %v4728, 0.0
        %v4761 = vmax.f32 %v4729, 0.0
        %v4762 = vmax.f32 %v4730, 0.0
        %v4763 = vmax.f32 %v4731, 0.0
        %v4764 = vmax.f32 %v4732, 0.0
        %v4765 = vmax.f32 %v4733, 0.0
        %v4766 = vmax.f32 %v4734, 0.0
        %v4767 = vmax.f32 %v4735, 0.0
        %v4768 = vmax.f32 %v4736, 0.0
        %v4769 = vmax.f32 %v4737, 0.0
        %v4770 = vmax.f32 %v4738, 0.0
        %v4771 = vmax.f32 %v4739, 0.0
        %v4772 = vmax.f32 %v4740, 0.0
        %v4773 = vmax.f32 %v4741, 0.0
        %v4774 = vmax.f32 %v4742, 0.0
        %v4775 = vmax.f32 %v4743, 0.0
        %v4776 = vmax.f32 %v4744, 0.0
        %v4777 = vpack.c.bf16 %v4746, %v4745
        %v4778 = vpack.c.bf16 %v4748, %v4747
        %v4779 = vpack.c.bf16 %v4750, %v4749
        %v4780 = vpack.c.bf16 %v4752, %v4751
        %v4781 = vpack.c.bf16 %v4754, %v4753
        %v4782 = vpack.c.bf16 %v4756, %v4755
        %v4783 = vpack.c.bf16 %v4758, %v4757
        %v4784 = vpack.c.bf16 %v4760, %v4759
        %v4785 = vpack.c.bf16 %v4762, %v4761
        %v4786 = vpack.c.bf16 %v4764, %v4763
        %v4787 = vpack.c.bf16 %v4766, %v4765
        %v4788 = vpack.c.bf16 %v4768, %v4767
        %v4789 = vpack.c.bf16 %v4770, %v4769
        %v4790 = vpack.c.bf16 %v4772, %v4771
        %v4791 = vpack.c.bf16 %v4774, %v4773
        %v4792 = vpack.c.bf16 %v4776, %v4775
        %v4793 = vld [vmem:[#allocation8] sm:$0xf]
        %v4794 = vld [vmem:[#allocation8 + $0x4] sm:$0xf]
        %v4795 = vld [vmem:[#allocation8 + $0x8] sm:$0xf]
        %v4796 = vld [vmem:[#allocation8 + $0xc] sm:$0xf]
        %v4797 = vld [vmem:[#allocation8 + $0x10] sm:$0xf]
        %v4798 = vld [vmem:[#allocation8 + $0x14] sm:$0xf]
        %v4799 = vld [vmem:[#allocation8 + $0x18] sm:$0xf]
        %v4800 = vld [vmem:[#allocation8 + $0x1c] sm:$0xf]
        %v4801 = vld [vmem:[#allocation8 + $0x20] sm:$0xf]
        %v4802 = vld [vmem:[#allocation8 + $0x24] sm:$0xf]
        %v4803 = vld [vmem:[#allocation8 + $0x28] sm:$0xf]
        %v4804 = vld [vmem:[#allocation8 + $0x2c] sm:$0xf]
        %v4805 = vld [vmem:[#allocation8 + $0x30] sm:$0xf]
        %v4806 = vld [vmem:[#allocation8 + $0x34] sm:$0xf]
        %v4807 = vld [vmem:[#allocation8 + $0x38] sm:$0xf]
        %v4808 = vld [vmem:[#allocation8 + $0x3c] sm:$0xf]
        %v4809 = vld [vmem:[%s6] sm:$0x1]
        %v4811 = vlaneseq
        %v4812 = vshrl.u32 %v4811, 7
        %v4813 = vsub.s32 0, %v4812
        %v4814 = vrot.slane %v4809, %v4813
        %v4832 = vunpack.c.l.b16 %v4793
        %v4833 = vunpack.c.l.b16 %v4794
        %v4834 = vunpack.c.l.b16 %v4795
        %v4835 = vunpack.c.l.b16 %v4796
        %v4836 = vunpack.c.l.b16 %v4797
        %v4837 = vunpack.c.l.b16 %v4798
        %v4838 = vunpack.c.l.b16 %v4799
        %v4839 = vunpack.c.l.b16 %v4800
        %v4840 = vunpack.c.l.b16 %v4801
        %v4841 = vunpack.c.l.b16 %v4802
        %v4842 = vunpack.c.l.b16 %v4803
        %v4843 = vunpack.c.l.b16 %v4804
        %v4844 = vunpack.c.l.b16 %v4805
        %v4845 = vunpack.c.l.b16 %v4806
        %v4846 = vunpack.c.l.b16 %v4807
        %v4847 = vunpack.c.l.b16 %v4808
        %v4848 = vpack.c.b16 %v4833, %v4832
        %v4849 = vpack.c.b16 %v4835, %v4834
        %v4850 = vpack.c.b16 %v4837, %v4836
        %v4851 = vpack.c.b16 %v4839, %v4838
        %v4852 = vpack.c.b16 %v4841, %v4840
        %v4853 = vpack.c.b16 %v4843, %v4842
        %v4854 = vpack.c.b16 %v4845, %v4844
        %v4855 = vpack.c.b16 %v4847, %v4846
        %4864 = vmatprep.subr.bf16.mxu0 0
        %4865 = vmatpush1.bf16.msra.mxu0 %v4855
        %4866 = vmatprep.subr.bf16.mxu0 0
        %4867 = vmatpush1.bf16.msra.mxu0 %v4854
        %4868 = vmatprep.subr.bf16.mxu0 0
        %4869 = vmatpush1.bf16.msra.mxu0 %v4853
        %4870 = vmatprep.subr.bf16.mxu0 0
        %4871 = vmatpush1.bf16.msra.mxu0 %v4852
        %4872 = vmatprep.subr.bf16.mxu0 0
        %4873 = vmatpush1.bf16.msra.mxu0 %v4851
        %4874 = vmatprep.subr.bf16.mxu0 0
        %4875 = vmatpush1.bf16.msra.mxu0 %v4850
        %4876 = vmatprep.subr.bf16.mxu0 0
        %4877 = vmatpush1.bf16.msra.mxu0 %v4849
        %4878 = vmatprep.subr.bf16.mxu0 0
        %4879 = vmatpush1.bf16.msra.mxu0 %v4848
        %4880 = vmatprep.subr.bf16.mxu0 0
        %4881 = vmatpush2.bf16.msra.mxu0 0
        %4882 = vmatprep.subr.bf16.mxu0 0
        %4883 = vmatpush2.bf16.msra.mxu0 0
        %4884 = vmatprep.subr.bf16.mxu0 0
        %4885 = vmatpush2.bf16.msra.mxu0 0
        %4886 = vmatprep.subr.bf16.mxu0 0
        %4887 = vmatpush2.bf16.msra.mxu0 0
        %4888 = vmatprep.subr.bf16.mxu0 0
        %4889 = vmatpush2.bf16.msra.mxu0 0
        %4890 = vmatprep.subr.bf16.mxu0 0
        %4891 = vmatpush2.bf16.msra.mxu0 0
        %4892 = vmatprep.subr.bf16.mxu0 0
        %4893 = vmatpush2.bf16.msra.mxu0 0
        %4894 = vmatprep.subr.bf16.mxu0 0
        %4895 = vmatpush2.bf16.msra.mxu0 0
        %4896 = vmatprep.mubr.bf16.mxu0 0
        %4897 = vmatmul.mubr.bf16.gmra.mxu0 %v4777
        %v4898 = vpop.f32.mrf.mxu0
        %v4899 = vadd.f32 %v4814, %v4898
        %v4900 = vpop.f32.mrf.mxu0
        %v4901 = vpop.f32.mrf.mxu0
        %v4902 = vadd.f32 %v4814, %v4901
        %v4903 = vpop.f32.mrf.mxu0
        %4904 = vmatprep.mubr.bf16.mxu0 0
        %4905 = vmatmul.mubr.bf16.gmra.mxu0 %v4778
        %v4906 = vpop.f32.mrf.mxu0
        %v4907 = vadd.f32 %v4814, %v4906
        %v4908 = vpop.f32.mrf.mxu0
        %v4909 = vpop.f32.mrf.mxu0
        %v4910 = vadd.f32 %v4814, %v4909
        %v4911 = vpop.f32.mrf.mxu0
        %4912 = vmatprep.mubr.bf16.mxu0 0
        %4913 = vmatmul.mubr.bf16.gmra.mxu0 %v4779
        %v4914 = vpop.f32.mrf.mxu0
        %v4915 = vadd.f32 %v4814, %v4914
        %v4916 = vpop.f32.mrf.mxu0
        %v4917 = vpop.f32.mrf.mxu0
        %v4918 = vadd.f32 %v4814, %v4917
        %v4919 = vpop.f32.mrf.mxu0
        %4920 = vmatprep.mubr.bf16.mxu0 0
        %4921 = vmatmul.mubr.bf16.gmra.mxu0 %v4780
        %v4922 = vpop.f32.mrf.mxu0
        %v4923 = vadd.f32 %v4814, %v4922
        %v4924 = vpop.f32.mrf.mxu0
        %v4925 = vpop.f32.mrf.mxu0
        %v4926 = vadd.f32 %v4814, %v4925
        %v4927 = vpop.f32.mrf.mxu0
        %4928 = vmatprep.mubr.bf16.mxu0 0
        %4929 = vmatmul.mubr.bf16.gmra.mxu0 %v4781
        %v4930 = vpop.f32.mrf.mxu0
        %v4931 = vadd.f32 %v4814, %v4930
        %v4932 = vpop.f32.mrf.mxu0
        %v4933 = vpop.f32.mrf.mxu0
        %v4934 = vadd.f32 %v4814, %v4933
        %v4935 = vpop.f32.mrf.mxu0
        %4936 = vmatprep.mubr.bf16.mxu0 0
        %4937 = vmatmul.mubr.bf16.gmra.mxu0 %v4782
        %v4938 = vpop.f32.mrf.mxu0
        %v4939 = vadd.f32 %v4814, %v4938
        %v4940 = vpop.f32.mrf.mxu0
        %v4941 = vpop.f32.mrf.mxu0
        %v4942 = vadd.f32 %v4814, %v4941
        %v4943 = vpop.f32.mrf.mxu0
        %4944 = vmatprep.mubr.bf16.mxu0 0
        %4945 = vmatmul.mubr.bf16.gmra.mxu0 %v4783
        %v4946 = vpop.f32.mrf.mxu0
        %v4947 = vadd.f32 %v4814, %v4946
        %v4948 = vpop.f32.mrf.mxu0
        %v4949 = vpop.f32.mrf.mxu0
        %v4950 = vadd.f32 %v4814, %v4949
        %v4951 = vpop.f32.mrf.mxu0
        %4952 = vmatprep.mubr.bf16.mxu0 0
        %4953 = vmatmul.mubr.bf16.gmra.mxu0 %v4784
        %v4954 = vpop.f32.mrf.mxu0
        %v4955 = vadd.f32 %v4814, %v4954
        %v4956 = vpop.f32.mrf.mxu0
        %v4957 = vpop.f32.mrf.mxu0
        %v4958 = vadd.f32 %v4814, %v4957
        %v4959 = vpop.f32.mrf.mxu0
        %4960 = vmatprep.mubr.bf16.mxu0 0
        %4961 = vmatmul.mubr.bf16.gmra.mxu0 %v4785
        %v4962 = vpop.f32.mrf.mxu0
        %v4963 = vadd.f32 %v4814, %v4962
        %v4964 = vpop.f32.mrf.mxu0
        %v4965 = vpop.f32.mrf.mxu0
        %v4966 = vadd.f32 %v4814, %v4965
        %v4967 = vpop.f32.mrf.mxu0
        %4968 = vmatprep.mubr.bf16.mxu0 0
        %4969 = vmatmul.mubr.bf16.gmra.mxu0 %v4786
        %v4970 = vpop.f32.mrf.mxu0
        %v4971 = vadd.f32 %v4814, %v4970
        %v4972 = vpop.f32.mrf.mxu0
        %v4973 = vpop.f32.mrf.mxu0
        %v4974 = vadd.f32 %v4814, %v4973
        %v4975 = vpop.f32.mrf.mxu0
        %4976 = vmatprep.mubr.bf16.mxu0 0
        %4977 = vmatmul.mubr.bf16.gmra.mxu0 %v4787
        %v4978 = vpop.f32.mrf.mxu0
        %v4979 = vadd.f32 %v4814, %v4978
        %v4980 = vpop.f32.mrf.mxu0
        %v4981 = vpop.f32.mrf.mxu0
        %v4982 = vadd.f32 %v4814, %v4981
        %v4983 = vpop.f32.mrf.mxu0
        %4984 = vmatprep.mubr.bf16.mxu0 0
        %4985 = vmatmul.mubr.bf16.gmra.mxu0 %v4788
        %v4986 = vpop.f32.mrf.mxu0
        %v4987 = vadd.f32 %v4814, %v4986
        %v4988 = vpop.f32.mrf.mxu0
        %v4989 = vpop.f32.mrf.mxu0
        %v4990 = vadd.f32 %v4814, %v4989
        %v4991 = vpop.f32.mrf.mxu0
        %4992 = vmatprep.mubr.bf16.mxu0 0
        %4993 = vmatmul.mubr.bf16.gmra.mxu0 %v4789
        %v4994 = vpop.f32.mrf.mxu0
        %v4995 = vadd.f32 %v4814, %v4994
        %v4996 = vpop.f32.mrf.mxu0
        %v4997 = vpop.f32.mrf.mxu0
        %v4998 = vadd.f32 %v4814, %v4997
        %v4999 = vpop.f32.mrf.mxu0
        %5000 = vmatprep.mubr.bf16.mxu0 0
        %5001 = vmatmul.mubr.bf16.gmra.mxu0 %v4790
        %v5002 = vpop.f32.mrf.mxu0
        %v5003 = vadd.f32 %v4814, %v5002
        %v5004 = vpop.f32.mrf.mxu0
        %v5005 = vpop.f32.mrf.mxu0
        %v5006 = vadd.f32 %v4814, %v5005
        %v5007 = vpop.f32.mrf.mxu0
        %5008 = vmatprep.mubr.bf16.mxu0 0
        %5009 = vmatmul.mubr.bf16.gmra.mxu0 %v4791
        %v5010 = vpop.f32.mrf.mxu0
        %v5011 = vadd.f32 %v4814, %v5010
        %v5012 = vpop.f32.mrf.mxu0
        %v5013 = vpop.f32.mrf.mxu0
        %v5014 = vadd.f32 %v4814, %v5013
        %v5015 = vpop.f32.mrf.mxu0
        %5016 = vmatprep.mubr.bf16.mxu0 0
        %5017 = vmatmul.mubr.bf16.gmra.mxu0 %v4792
        %v5018 = vpop.f32.mrf.mxu0
        %v5019 = vadd.f32 %v4814, %v5018
        %v5020 = vpop.f32.mrf.mxu0
        %v5021 = vpop.f32.mrf.mxu0
        %v5022 = vadd.f32 %v4814, %v5021
        %v5023 = vpop.f32.mrf.mxu0
        %5024 = vdwg.mxu0
        %v5025 = vunpack.c.l.bf16 %v342
        %v5026 = vunpack.c.l.bf16 %v343
        %v5027 = vunpack.c.l.bf16 %v344
        %v5028 = vunpack.c.l.bf16 %v345
        %v5029 = vunpack.c.l.bf16 %v346
        %v5030 = vunpack.c.l.bf16 %v347
        %v5031 = vunpack.c.l.bf16 %v348
        %v5032 = vunpack.c.l.bf16 %v349
        %v5033 = vunpack.c.l.bf16 %v350
        %v5034 = vunpack.c.l.bf16 %v351
        %v5035 = vunpack.c.l.bf16 %v352
        %v5036 = vunpack.c.l.bf16 %v353
        %v5037 = vunpack.c.l.bf16 %v354
        %v5038 = vunpack.c.l.bf16 %v355
        %v5039 = vunpack.c.l.bf16 %v356
        %v5040 = vunpack.c.l.bf16 %v357
        %v5041 = vunpack.c.l.bf16 %v358
        %v5042 = vunpack.c.l.bf16 %v359
        %v5043 = vunpack.c.l.bf16 %v360
        %v5044 = vunpack.c.l.bf16 %v361
        %v5045 = vunpack.c.l.bf16 %v362
        %v5046 = vunpack.c.l.bf16 %v363
        %v5047 = vunpack.c.l.bf16 %v364
        %v5048 = vunpack.c.l.bf16 %v365
        %v5049 = vunpack.c.l.bf16 %v366
        %v5050 = vunpack.c.l.bf16 %v367
        %v5051 = vunpack.c.l.bf16 %v368
        %v5052 = vunpack.c.l.bf16 %v369
        %v5053 = vunpack.c.l.bf16 %v370
        %v5054 = vunpack.c.l.bf16 %v371
        %v5055 = vunpack.c.l.bf16 %v372
        %v5056 = vunpack.c.l.bf16 %v373
        %v5057 = vadd.f32 %v4899, %v5025
        %v5058 = vadd.f32 %v4902, %v5026
        %v5059 = vadd.f32 %v4907, %v5027
        %v5060 = vadd.f32 %v4910, %v5028
        %v5061 = vadd.f32 %v4915, %v5029
        %v5062 = vadd.f32 %v4918, %v5030
        %v5063 = vadd.f32 %v4923, %v5031
        %v5064 = vadd.f32 %v4926, %v5032
        %v5065 = vadd.f32 %v4931, %v5033
        %v5066 = vadd.f32 %v4934, %v5034
        %v5067 = vadd.f32 %v4939, %v5035
        %v5068 = vadd.f32 %v4942, %v5036
        %v5069 = vadd.f32 %v4947, %v5037
        %v5070 = vadd.f32 %v4950, %v5038
        %v5071 = vadd.f32 %v4955, %v5039
        %v5072 = vadd.f32 %v4958, %v5040
        %v5073 = vadd.f32 %v4963, %v5041
        %v5074 = vadd.f32 %v4966, %v5042
        %v5075 = vadd.f32 %v4971, %v5043
        %v5076 = vadd.f32 %v4974, %v5044
        %v5077 = vadd.f32 %v4979, %v5045
        %v5078 = vadd.f32 %v4982, %v5046
        %v5079 = vadd.f32 %v4987, %v5047
        %v5080 = vadd.f32 %v4990, %v5048
        %v5081 = vadd.f32 %v4995, %v5049
        %v5082 = vadd.f32 %v4998, %v5050
        %v5083 = vadd.f32 %v5003, %v5051
        %v5084 = vadd.f32 %v5006, %v5052
        %v5085 = vadd.f32 %v5011, %v5053
        %v5086 = vadd.f32 %v5014, %v5054
        %v5087 = vadd.f32 %v5019, %v5055
        %v5088 = vadd.f32 %v5022, %v5056
        %5089 = vst [vmem:[%s340] sm:$0xff] %v5057
        %5090 = vst [vmem:[%s340 + $0x8] sm:$0xff] %v5058
        %5091 = vst [vmem:[%s340 + $0x10] sm:$0xff] %v5059
        %5092 = vst [vmem:[%s340 + $0x18] sm:$0xff] %v5060
        %5093 = vst [vmem:[%s340 + $0x20] sm:$0xff] %v5061
        %5094 = vst [vmem:[%s340 + $0x28] sm:$0xff] %v5062
        %5095 = vst [vmem:[%s340 + $0x30] sm:$0xff] %v5063
        %5096 = vst [vmem:[%s340 + $0x38] sm:$0xff] %v5064
        %5097 = vst [vmem:[%s340 + $0x40] sm:$0xff] %v5065
        %5098 = vst [vmem:[%s340 + $0x48] sm:$0xff] %v5066
        %5099 = vst [vmem:[%s340 + $0x50] sm:$0xff] %v5067
        %5100 = vst [vmem:[%s340 + $0x58] sm:$0xff] %v5068
        %5101 = vst [vmem:[%s340 + $0x60] sm:$0xff] %v5069
        %5102 = vst [vmem:[%s340 + $0x68] sm:$0xff] %v5070
        %5103 = vst [vmem:[%s340 + $0x70] sm:$0xff] %v5071
        %5104 = vst [vmem:[%s340 + $0x78] sm:$0xff] %v5072
        %5105 = vst [vmem:[%s340 + $0x80] sm:$0xff] %v5073
        %5106 = vst [vmem:[%s340 + $0x88] sm:$0xff] %v5074
        %5107 = vst [vmem:[%s340 + $0x90] sm:$0xff] %v5075
        %5108 = vst [vmem:[%s340 + $0x98] sm:$0xff] %v5076
        %5109 = vst [vmem:[%s340 + $0xa0] sm:$0xff] %v5077
        %5110 = vst [vmem:[%s340 + $0xa8] sm:$0xff] %v5078
        %5111 = vst [vmem:[%s340 + $0xb0] sm:$0xff] %v5079
        %5112 = vst [vmem:[%s340 + $0xb8] sm:$0xff] %v5080
        %5113 = vst [vmem:[%s340 + $0xc0] sm:$0xff] %v5081
        %5114 = vst [vmem:[%s340 + $0xc8] sm:$0xff] %v5082
        %5115 = vst [vmem:[%s340 + $0xd0] sm:$0xff] %v5083
        %5116 = vst [vmem:[%s340 + $0xd8] sm:$0xff] %v5084
        %5117 = vst [vmem:[%s340 + $0xe0] sm:$0xff] %v5085
        %5118 = vst [vmem:[%s340 + $0xe8] sm:$0xff] %v5086
        %5119 = vst [vmem:[%s340 + $0xf0] sm:$0xff] %v5087
        %5120 = vst [vmem:[%s340 + $0xf8] sm:$0xff] %v5088
        %s5121 = sand.u32 %s186, 1
        %s5122 = scalar_lea.sflag [#allocation4], %s5121
        %s5123 = sand.u32 %s186, 1
        %s5124 = smul.addr %s5123, 256
        %s5125 = scalar_lea.vmem [#allocation10], %s5124
        // Predicated region
        $region65: #{tpu_custom_call.1} parent=47 // pred_check
          %p5126 = pneg %p196
        $region66: #{tpu_custom_call.1} parent=47 // pred_check_branch
          %5128 = sbr.rel (%p5126) target = $region68
        $region67: #{tpu_custom_call.1} parent=47 // pred_region
          %s5130 = ssub.s32 4096, 4096
          %5131 = vsyncadd %s5122, %s5130
          %s5132 = smul.addr %s26, 32
          %s5133 = smul.addr %s5132, 128
          %s5134 = scalar_lea.hbm %s7, %s5133
          %s5135 = sshll.u32 %s5125, 4
          %s5136 = int_to_ptr.vmem [resolvable:$true] %s5135
          %5141 = dma.vmem_to_hbm [thread:$0]  %s5136, 4096, %s5134, %s5122, 128, 128, 8
        $region68: #{tpu_custom_call.1} parent=47 // pred_fallthru
          _
      $region48: #{tpu_custom_call.1} parent=5 // pred_fallthru
        _
      %p5142 = scmp.le.s32.totalorder 2, %s21
      // Predicated region
      $region69: #{tpu_custom_call.1} parent=5 // pred_check
        %p5143 = pneg %p5142
      $region70: #{tpu_custom_call.1} parent=5 // pred_check_branch
        %5145 = sbr.rel (%p5143) target = $region72
      $region71: #{tpu_custom_call.1} parent=5 // pred_region
        %s5146 = ssub.s32 %s21, 2
        // Predicated region
        $region73: #{tpu_custom_call.1} parent=71 // pred_check
          %p5147 = pneg %p202
        $region74: #{tpu_custom_call.1} parent=71 // pred_check_branch
          %5149 = sbr.rel (%p5147) target = $region76
        $region75: #{tpu_custom_call.1} parent=71 // pred_region
          %s5150 = sand.u32 %s187, 1
          %s5151 = scalar_lea.sflag [#allocation4], %s5150
          %s5152 = sand.u32 %s187, 1
          %s5153 = smul.addr %s5152, 256
          %s5154 = scalar_lea.vmem [#allocation10], %s5153
          %5155 = dma.done %s5151, 4096
        $region76: #{tpu_custom_call.1} parent=71 // pred_fallthru
          _
      $region72: #{tpu_custom_call.1} parent=5 // pred_fallthru
        _
    $region6: #{tpu_custom_call.1} parent=1 // loop_footer
      %s25 = sadd.s32 1, %s21
    $region7: #{tpu_custom_call.1} parent=1 // loop_footer_branch
      %20 = sbr.rel target = $region3
    $region8: #{tpu_custom_call.1} parent=1 // loop_exit
      _
    %5156 = vsyncpa [#allocation3], 1
    %s5157 = scalar_lea.sflag [#allocation3], 1
    %5158 = vsyncpa %s5157, 1
    %5159 = vsyncpa [#allocation6], 1
    %5160 = vsyncpa [#allocation9], 1
    %5161 = vsyncpa [#allocation4], 1
    %s5162 = scalar_lea.sflag [#allocation4], 1
    %5163 = vsyncpa %s5162, 1

</llo_original>
